<compile_context>
chip_gen: v7x
topology: tpu7x:2x2x1
jax: 0.10.0
libtpu: 0.0.40
codegen_flags: <defaults>
</compile_context>

<pallas_src>
import functools

import jax
import jax.numpy as jnp
from jax.experimental import pallas as pl
from jax.experimental.pallas import tpu as pltpu


def _round_up(x, m):
    return (x + m - 1) // m * m


_INV_SQRT2 = 0.7071067811865476


def _erf(x):
    # Abramowitz & Stegun 7.1.26.  The divide is an EUP approx reciprocal
    # (single instruction in an otherwise idle slot); added error ~2^-12,
    # well below the bf16 rounding applied before the second matmul.
    a1, a2, a3, a4, a5 = (0.254829592, -0.284496736, 1.421413741,
                          -1.453152027, 1.061405429)
    p = 0.3275911
    ax = jnp.abs(x)
    t = pl.reciprocal(1.0 + p * ax, approx=True)
    poly = ((((a5 * t + a4) * t + a3) * t + a2) * t + a1) * t
    y = 1.0 - poly * jnp.exp(-ax * ax)
    return jnp.where(x >= 0.0, y, -y)


def _gelu_exact(x):
    # Matches PyTorch nn.GELU() default (erf-based, not the tanh approximation).
    return 0.5 * x * (1.0 + _erf(x * _INV_SQRT2))


def _ffn_kernel(x_ref, gamma_ref, beta_ref, w1_ref, b1_ref, w2_ref, b2_ref,
                o_ref, xn_ref, acc_ref, *, eps):
    # Grid = (row tiles, hidden tiles).  Row axis is "parallel", hidden axis
    # is an "arbitrary" reduction with acc_ref as the resident accumulator.
    h_idx = pl.program_id(1)

    @pl.when(h_idx == 0)
    def _():
        # LayerNorm once per row tile; cache the bf16 MXU operand in scratch.
        x = x_ref[...].astype(jnp.float32)                     # (TM, D)
        mean = jnp.mean(x, axis=-1, keepdims=True)
        diff = x - mean
        var = jnp.mean(diff * diff, axis=-1, keepdims=True)
        xn = diff * jax.lax.rsqrt(var + eps)
        xn = xn * gamma_ref[...] + beta_ref[...]               # gamma/beta (1, D)
        xn_ref[...] = xn.astype(jnp.bfloat16)
        acc_ref[...] = jnp.zeros_like(acc_ref)

    # Linear1 column tile (bf16 MXU operands, f32 accumulate) + exact GELU.
    h = jnp.dot(xn_ref[...], w1_ref[...],
                preferred_element_type=jnp.float32) + b1_ref[...]   # (TM, TH)
    h = _gelu_exact(h)

    # Linear2 row tile, accumulated over hidden tiles.
    acc_ref[...] += jnp.dot(h.astype(jnp.bfloat16), w2_ref[...],
                            preferred_element_type=jnp.float32)     # (TM, D)

    @pl.when(h_idx == pl.num_programs(1) - 1)
    def _():
        o_ref[...] = (acc_ref[...] + b2_ref[...]).astype(o_ref.dtype)


def feedforward_forward(x, gamma, beta, w1_t, b1, w2_t, b2,
                        *, block_rows=256, block_hidden=512, eps=1e-5):
    """x: (B, N, D) f32.  w1_t: (D, H) bf16, b1: (1, H) f32,
    w2_t: (H, D) bf16, b2: (1, D) f32.  Returns (B, N, D) in x.dtype."""
    B, N, D = x.shape
    H = w1_t.shape[1]
    M = B * N
    xf = x.reshape(M, D)

    # Row tile: 256 rows fills the MXU M-dim and amortizes per-step overhead
    # while keeping VMEM bounded.  Multiple of 16 (bf16 sublane packing).
    tm = block_rows if M >= block_rows else _round_up(M, 16)
    mp = _round_up(M, tm)
    if mp != M:
        # Zero-pad rows: LayerNorm of a zero row is finite (rsqrt(eps)); the
        # padded outputs are sliced off below.  Demo shapes never hit this.
        xf = jnp.pad(xf, ((0, mp - M), (0, 0)))

    # Hidden tile: stream W1 columns / W2 rows so weights never need to be
    # fully resident (mandatory at production D/H on v7x's 64 MiB VMEM).
    th = None
    for cand in (block_hidden, 256, 128):
        if H % cand == 0:
            th = cand
            break
    if th is None:
        th = H  # fall back to whole hidden dim (non-128-multiple H)

    grid = (mp // tm, H // th)

    # Explicit VMEM budget (double-buffered streamed tiles + resident scratch),
    # with 2x headroom, clamped to [32 MiB, 64 MiB] (v7x physical = 64 MiB).
    out_itemsize = jnp.dtype(x.dtype).itemsize
    vmem_needed = (
        2 * tm * D * 4                    # x tiles (f32)
        + 2 * tm * D * out_itemsize       # out tiles
        + 2 * D * th * 2                  # W1 column tiles (bf16)
        + 2 * th * D * 2                  # W2 row tiles (bf16)
        + 2 * (3 * D * 4 + th * 4)        # gamma / beta / b2 / b1
        + tm * D * (2 + 4)                # xn (bf16) + acc (f32) scratch
    )
    vmem_limit = int(min(64 << 20, max(32 << 20, 2 * vmem_needed)))

    out = pl.pallas_call(
        functools.partial(_ffn_kernel, eps=eps),
        out_shape=jax.ShapeDtypeStruct((mp, D), x.dtype),
        grid=grid,
        in_specs=[
            pl.BlockSpec((tm, D), lambda i, h: (i, 0)),    # x row tile
            pl.BlockSpec((1, D), lambda i, h: (0, 0)),     # gamma (invariant)
            pl.BlockSpec((1, D), lambda i, h: (0, 0)),     # beta  (invariant)
            pl.BlockSpec((D, th), lambda i, h: (0, h)),    # W1^T column tile
            pl.BlockSpec((1, th), lambda i, h: (0, h)),    # b1 tile
            pl.BlockSpec((th, D), lambda i, h: (h, 0)),    # W2^T row tile
            pl.BlockSpec((1, D), lambda i, h: (0, 0)),     # b2 (invariant)
        ],
        out_specs=pl.BlockSpec((tm, D), lambda i, h: (i, 0)),
        scratch_shapes=[
            pltpu.VMEM((tm, D), jnp.bfloat16),   # cached LayerNorm output
            pltpu.VMEM((tm, D), jnp.float32),    # second-matmul accumulator
        ],
        compiler_params=pltpu.CompilerParams(
            dimension_semantics=("parallel", "arbitrary"),
            vmem_limit_bytes=vmem_limit),
    )(xf, gamma, beta, w1_t, b1, w2_t, b2)

    if mp != M:
        out = out[:M]
    return out.reshape(B, N, D)


def feedforward_reference(x, gamma, beta, w1_t, b1, w2_t, b2, eps=1e-5):
    """Pure-JAX reference mirroring the PyTorch forward, with the same bf16
    operand rounding as the kernel (f32 accumulation)."""
    xf = x.astype(jnp.float32)
    mean = jnp.mean(xf, axis=-1, keepdims=True)
    var = jnp.mean((xf - mean) ** 2, axis=-1, keepdims=True)
    xn = (xf - mean) / jnp.sqrt(var + eps) * gamma[0] + beta[0]
    w1 = w1_t.astype(jnp.float32)
    w2 = w2_t.astype(jnp.float32)
    h = jnp.dot(xn.astype(jnp.bfloat16).astype(jnp.float32), w1) + b1[0]
    h = jax.nn.gelu(h, approximate=False)                  # exact erf GELU
    y = jnp.dot(h.astype(jnp.bfloat16).astype(jnp.float32), w2) + b2[0]
    return y.astype(x.dtype)


if __name__ == "__main__":
    # Small shapes consistent with the module's forward: x of shape (B, N, dim).
    # dim/hidden lane-dense (multiples of 128); flattened rows B*N = 512 gives
    # a (2, 1) grid with 256-row tiles and a single resident hidden tile.
    B, N, dim, hidden = 2, 256, 128, 256

    key = jax.random.PRNGKey(0)
    kx, k1, k2, kb1, kb2 = jax.random.split(key, 5)

    x = jax.random.normal(kx, (B, N, dim), dtype=jnp.float32)

    # LayerNorm params (PyTorch defaults: ones / zeros); Linear weights in
    # PyTorch (out_features, in_features) layout, pre-transposed + bf16-cast
    # for the kernel's row-major MXU matmuls.
    gamma = jnp.ones((1, dim), dtype=jnp.float32)
    beta = jnp.zeros((1, dim), dtype=jnp.float32)
    w1 = jax.random.normal(k1, (hidden, dim), dtype=jnp.float32) * 0.05
    b1 = jax.random.normal(kb1, (1, hidden), dtype=jnp.float32) * 0.05
    w2 = jax.random.normal(k2, (dim, hidden), dtype=jnp.float32) * 0.05
    b2 = jax.random.normal(kb2, (1, dim), dtype=jnp.float32) * 0.05

    w1_t = w1.T.astype(jnp.bfloat16)   # (dim, hidden)
    w2_t = w2.T.astype(jnp.bfloat16)   # (hidden, dim)

    y = feedforward_forward(x, gamma, beta, w1_t, b1, w2_t, b2)
    y = jax.block_until_ready(y)

    y_ref = feedforward_reference(x, gamma, beta, w1_t, b1, w2_t, b2)
    assert y.shape == (B, N, dim)
    max_diff = float(jnp.max(jnp.abs(y - y_ref)))
    assert jnp.allclose(y, y_ref, atol=2e-2, rtol=2e-2), (
        f"mismatch vs reference: max abs diff {max_diff:.3e}")

    print("KERNEL_OK")
</pallas_src>

<mosaic_0001>
module attributes {stable_mosaic.version = 11 : i64} {
  func.func @_ffn_kernel(%arg0: i32, %arg1: i32, %arg2: memref<256x128xf32, #tpu.memory_space<vmem>>, %arg3: memref<1x128xf32, #tpu.memory_space<vmem>>, %arg4: memref<1x128xf32, #tpu.memory_space<vmem>>, %arg5: memref<128x256xbf16, #tpu.memory_space<vmem>>, %arg6: memref<1x256xf32, #tpu.memory_space<vmem>>, %arg7: memref<256x128xbf16, #tpu.memory_space<vmem>>, %arg8: memref<1x128xf32, #tpu.memory_space<vmem>>, %arg9: memref<256x128xf32, #tpu.memory_space<vmem>>, %arg10: memref<256x128xbf16, #tpu.memory_space<vmem>>, %arg11: memref<256x128xf32, #tpu.memory_space<vmem>>) attributes {dimension_semantics = [#tpu.dimension_semantics<parallel>, #tpu.dimension_semantics<arbitrary>], iteration_bounds = array<i64: 2, 1>, scalar_prefetch = 0 : i64, scratch_operands = 2 : i64, tpu.core_type = #tpu.core_type<tc>, window_params = [{transform_indices = @transform_0, window_bounds = array<i64: 256, 128>}, {pipeline_mode = #tpu.pipeline_mode<synchronous>, transform_indices = @transform_1, window_bounds = array<i64: 1, 128>}, {pipeline_mode = #tpu.pipeline_mode<synchronous>, transform_indices = @transform_2, window_bounds = array<i64: 1, 128>}, {transform_indices = @transform_3, window_bounds = array<i64: 128, 256>}, {transform_indices = @transform_4, window_bounds = array<i64: 1, 256>}, {transform_indices = @transform_5, window_bounds = array<i64: 256, 128>}, {pipeline_mode = #tpu.pipeline_mode<synchronous>, transform_indices = @transform_6, window_bounds = array<i64: 1, 128>}, {transform_indices = @transform_7, window_bounds = array<i64: 256, 128>}]} {
    %c0_i32 = arith.constant 0 : i32
    %0 = arith.cmpi eq, %arg1, %c0_i32 : i32
    %1 = arith.extui %0 : i1 to i32
    %c0_i32_0 = arith.constant 0 : i32
    %2 = arith.cmpi ne, %1, %c0_i32_0 : i32
    scf.if %2 {
      %c0_29 = arith.constant 0 : index
      %c0_30 = arith.constant 0 : index
      %57 = vector.load %arg2[%c0_29, %c0_30] : memref<256x128xf32, #tpu.memory_space<vmem>>, vector<256x128xf32>
      %cst_31 = arith.constant dense<0.000000e+00> : vector<256xf32>
      %58 = vector.multi_reduction <add>, %57, %cst_31 [1] : vector<256x128xf32> to vector<256xf32>
      %59 = vector.shape_cast %58 : vector<256xf32> to vector<256x1xf32>
      %cst_32 = arith.constant 1.280000e+02 : f32
      %60 = vector.broadcast %cst_32 : f32 to vector<256x1xf32>
      %61 = arith.divf %59, %60 : vector<256x1xf32>
      %62 = vector.broadcast %61 : vector<256x1xf32> to vector<256x128xf32>
      %63 = arith.subf %57, %62 : vector<256x128xf32>
      %64 = arith.mulf %63, %63 : vector<256x128xf32>
      %cst_33 = arith.constant dense<0.000000e+00> : vector<256xf32>
      %65 = vector.multi_reduction <add>, %64, %cst_33 [1] : vector<256x128xf32> to vector<256xf32>
      %66 = vector.shape_cast %65 : vector<256xf32> to vector<256x1xf32>
      %cst_34 = arith.constant 1.280000e+02 : f32
      %67 = vector.broadcast %cst_34 : f32 to vector<256x1xf32>
      %68 = arith.divf %66, %67 : vector<256x1xf32>
      %cst_35 = arith.constant 9.99999974E-6 : f32
      %69 = vector.broadcast %cst_35 : f32 to vector<256x1xf32>
      %70 = arith.addf %68, %69 : vector<256x1xf32>
      %71 = math.rsqrt %70 : vector<256x1xf32>
      %72 = vector.broadcast %71 : vector<256x1xf32> to vector<256x128xf32>
      %73 = arith.mulf %63, %72 : vector<256x128xf32>
      %c0_36 = arith.constant 0 : index
      %c0_37 = arith.constant 0 : index
      %74 = vector.load %arg3[%c0_36, %c0_37] : memref<1x128xf32, #tpu.memory_space<vmem>>, vector<1x128xf32>
      %75 = vector.broadcast %74 : vector<1x128xf32> to vector<256x128xf32>
      %76 = arith.mulf %73, %75 : vector<256x128xf32>
      %c0_38 = arith.constant 0 : index
      %c0_39 = arith.constant 0 : index
      %77 = vector.load %arg4[%c0_38, %c0_39] : memref<1x128xf32, #tpu.memory_space<vmem>>, vector<1x128xf32>
      %78 = vector.broadcast %77 : vector<1x128xf32> to vector<256x128xf32>
      %79 = arith.addf %76, %78 : vector<256x128xf32>
      %80 = arith.truncf %79 : vector<256x128xf32> to vector<256x128xbf16>
      %c0_40 = arith.constant 0 : index
      %c0_41 = arith.constant 0 : index
      %81 = vector.load %arg10[%c0_40, %c0_41] : memref<256x128xbf16, #tpu.memory_space<vmem>>, vector<256x128xbf16>
      tpu.vector_store %arg10[%c0_40, %c0_41], %80 {strides = array<i32>} : memref<256x128xbf16, #tpu.memory_space<vmem>>, vector<256x128xbf16>,
      %cst_42 = arith.constant 0.000000e+00 : f32
      %82 = vector.broadcast %cst_42 : f32 to vector<256x128xf32>
      %c0_43 = arith.constant 0 : index
      %c0_44 = arith.constant 0 : index
      %83 = vector.load %arg11[%c0_43, %c0_44] : memref<256x128xf32, #tpu.memory_space<vmem>>, vector<256x128xf32>
      tpu.vector_store %arg11[%c0_43, %c0_44], %82 {strides = array<i32>} : memref<256x128xf32, #tpu.memory_space<vmem>>, vector<256x128xf32>,
    } else {
    }
    %c0 = arith.constant 0 : index
    %c0_1 = arith.constant 0 : index
    %3 = vector.load %arg10[%c0, %c0_1] : memref<256x128xbf16, #tpu.memory_space<vmem>>, vector<256x128xbf16>
    %c0_2 = arith.constant 0 : index
    %c0_3 = arith.constant 0 : index
    %4 = vector.load %arg5[%c0_2, %c0_3] : memref<128x256xbf16, #tpu.memory_space<vmem>>, vector<128x256xbf16>
    %cst = arith.constant dense<0.000000e+00> : vector<256x256xf32>
    %5 = tpu.matmul %3, %4, %cst {dimension_numbers = #tpu.dot_dimension_numbers<[1], [0], [0], [1], [0, 0, 1, 1], [], []>} : vector<256x128xbf16>, vector<128x256xbf16>, vector<256x256xf32> -> vector<256x256xf32>
    %c0_4 = arith.constant 0 : index
    %c0_5 = arith.constant 0 : index
    %6 = vector.load %arg6[%c0_4, %c0_5] : memref<1x256xf32, #tpu.memory_space<vmem>>, vector<1x256xf32>
    %7 = vector.broadcast %6 : vector<1x256xf32> to vector<256x256xf32>
    %8 = arith.addf %5, %7 : vector<256x256xf32>
    %cst_6 = arith.constant 5.000000e-01 : f32
    %9 = vector.broadcast %cst_6 : f32 to vector<256x256xf32>
    %10 = arith.mulf %9, %8 : vector<256x256xf32>
    %cst_7 = arith.constant 0.707106769 : f32
    %11 = vector.broadcast %cst_7 : f32 to vector<256x256xf32>
    %12 = arith.mulf %8, %11 : vector<256x256xf32>
    %13 = math.absf %12 : vector<256x256xf32>
    %cst_8 = arith.constant 0.327591091 : f32
    %14 = vector.broadcast %cst_8 : f32 to vector<256x256xf32>
    %15 = arith.mulf %14, %13 : vector<256x256xf32>
    %cst_9 = arith.constant 1.000000e+00 : f32
    %16 = vector.broadcast %cst_9 : f32 to vector<256x256xf32>
    %17 = arith.addf %16, %15 : vector<256x256xf32>
    %18 = tpu.reciprocal %17 {approx = true} : vector<256x256xf32> -> vector<256x256xf32>
    %cst_10 = arith.constant 1.06140542 : f32
    %19 = vector.broadcast %cst_10 : f32 to vector<256x256xf32>
    %20 = arith.mulf %19, %18 : vector<256x256xf32>
    %cst_11 = arith.constant -1.45315206 : f32
    %21 = vector.broadcast %cst_11 : f32 to vector<256x256xf32>
    %22 = arith.addf %20, %21 : vector<256x256xf32>
    %23 = arith.mulf %22, %18 : vector<256x256xf32>
    %cst_12 = arith.constant 1.42141378 : f32
    %24 = vector.broadcast %cst_12 : f32 to vector<256x256xf32>
    %25 = arith.addf %23, %24 : vector<256x256xf32>
    %26 = arith.mulf %25, %18 : vector<256x256xf32>
    %cst_13 = arith.constant -0.284496725 : f32
    %27 = vector.broadcast %cst_13 : f32 to vector<256x256xf32>
    %28 = arith.addf %26, %27 : vector<256x256xf32>
    %29 = arith.mulf %28, %18 : vector<256x256xf32>
    %cst_14 = arith.constant 0.254829586 : f32
    %30 = vector.broadcast %cst_14 : f32 to vector<256x256xf32>
    %31 = arith.addf %29, %30 : vector<256x256xf32>
    %32 = arith.mulf %31, %18 : vector<256x256xf32>
    %cst_15 = arith.constant 0.000000e+00 : f32
    %33 = vector.broadcast %cst_15 : f32 to vector<256x256xf32>
    %34 = arith.subf %33, %13 : vector<256x256xf32>
    %35 = arith.mulf %34, %13 : vector<256x256xf32>
    %36 = math.exp %35 : vector<256x256xf32>
    %37 = arith.mulf %32, %36 : vector<256x256xf32>
    %cst_16 = arith.constant 1.000000e+00 : f32
    %38 = vector.broadcast %cst_16 : f32 to vector<256x256xf32>
    %39 = arith.subf %38, %37 : vector<256x256xf32>
    %cst_17 = arith.constant 0.000000e+00 : f32
    %40 = vector.broadcast %cst_17 : f32 to vector<256x256xf32>
    %41 = arith.cmpf oge, %12, %40 : vector<256x256xf32>
    %cst_18 = arith.constant 0.000000e+00 : f32
    %42 = vector.broadcast %cst_18 : f32 to vector<256x256xf32>
    %43 = arith.subf %42, %39 : vector<256x256xf32>
    %44 = arith.select %41, %39, %43 : vector<256x256xi1>, vector<256x256xf32>
    %cst_19 = arith.constant 1.000000e+00 : f32
    %45 = vector.broadcast %cst_19 : f32 to vector<256x256xf32>
    %46 = arith.addf %45, %44 : vector<256x256xf32>
    %47 = arith.mulf %10, %46 : vector<256x256xf32>
    %c0_20 = arith.constant 0 : index
    %c0_21 = arith.constant 0 : index
    %48 = vector.load %arg11[%c0_20, %c0_21] : memref<256x128xf32, #tpu.memory_space<vmem>>, vector<256x128xf32>
    %49 = arith.truncf %47 : vector<256x256xf32> to vector<256x256xbf16>
    %c0_22 = arith.constant 0 : index
    %c0_23 = arith.constant 0 : index
    %50 = vector.load %arg7[%c0_22, %c0_23] : memref<256x128xbf16, #tpu.memory_space<vmem>>, vector<256x128xbf16>
    %cst_24 = arith.constant dense<0.000000e+00> : vector<256x128xf32>
    %51 = tpu.matmul %49, %50, %cst_24 {dimension_numbers = #tpu.dot_dimension_numbers<[1], [0], [0], [1], [0, 0, 1, 1], [], []>} : vector<256x256xbf16>, vector<256x128xbf16>, vector<256x128xf32> -> vector<256x128xf32>
    %52 = arith.addf %48, %51 : vector<256x128xf32>
    %c0_25 = arith.constant 0 : index
    %c0_26 = arith.constant 0 : index
    %53 = vector.load %arg11[%c0_25, %c0_26] : memref<256x128xf32, #tpu.memory_space<vmem>>, vector<256x128xf32>
    tpu.vector_store %arg11[%c0_25, %c0_26], %52 {strides = array<i32>} : memref<256x128xf32, #tpu.memory_space<vmem>>, vector<256x128xf32>,
    %c0_i32_27 = arith.constant 0 : i32
    %54 = arith.cmpi eq, %arg1, %c0_i32_27 : i32
    %55 = arith.extui %54 : i1 to i32
    %c0_i32_28 = arith.constant 0 : i32
    %56 = arith.cmpi ne, %55, %c0_i32_28 : i32
    scf.if %56 {
      %c0_29 = arith.constant 0 : index
      %c0_30 = arith.constant 0 : index
      %57 = vector.load %arg11[%c0_29, %c0_30] : memref<256x128xf32, #tpu.memory_space<vmem>>, vector<256x128xf32>
      %c0_31 = arith.constant 0 : index
      %c0_32 = arith.constant 0 : index
      %58 = vector.load %arg8[%c0_31, %c0_32] : memref<1x128xf32, #tpu.memory_space<vmem>>, vector<1x128xf32>
      %59 = vector.broadcast %58 : vector<1x128xf32> to vector<256x128xf32>
      %60 = arith.addf %57, %59 : vector<256x128xf32>
      %c0_33 = arith.constant 0 : index
      %c0_34 = arith.constant 0 : index
      %61 = vector.load %arg9[%c0_33, %c0_34] : memref<256x128xf32, #tpu.memory_space<vmem>>, vector<256x128xf32>
      tpu.vector_store %arg9[%c0_33, %c0_34], %60 {strides = array<i32>} : memref<256x128xf32, #tpu.memory_space<vmem>>, vector<256x128xf32>,
    } else {
    }
    return
  }
  func.func @transform_0(%arg0: i32, %arg1: i32) -> (i32, i32) {
    %c0_i32 = arith.constant 0 : i32
    %c0_i32_0 = arith.constant 0 : i32
    return %arg0, %c0_i32 : i32, i32
  }
  func.func @transform_1(%arg0: i32, %arg1: i32) -> (i32, i32) {
    %c0_i32 = arith.constant 0 : i32
    %c0_i32_0 = arith.constant 0 : i32
    %c0_i32_1 = arith.constant 0 : i32
    return %c0_i32, %c0_i32_0 : i32, i32
  }
  func.func @transform_2(%arg0: i32, %arg1: i32) -> (i32, i32) {
    %c0_i32 = arith.constant 0 : i32
    %c0_i32_0 = arith.constant 0 : i32
    %c0_i32_1 = arith.constant 0 : i32
    return %c0_i32, %c0_i32_0 : i32, i32
  }
  func.func @transform_3(%arg0: i32, %arg1: i32) -> (i32, i32) {
    %c0_i32 = arith.constant 0 : i32
    %c0_i32_0 = arith.constant 0 : i32
    return %c0_i32, %arg1 : i32, i32
  }
  func.func @transform_4(%arg0: i32, %arg1: i32) -> (i32, i32) {
    %c0_i32 = arith.constant 0 : i32
    %c0_i32_0 = arith.constant 0 : i32
    return %c0_i32, %arg1 : i32, i32
  }
  func.func @transform_5(%arg0: i32, %arg1: i32) -> (i32, i32) {
    %c0_i32 = arith.constant 0 : i32
    %c0_i32_0 = arith.constant 0 : i32
    return %arg1, %c0_i32 : i32, i32
  }
  func.func @transform_6(%arg0: i32, %arg1: i32) -> (i32, i32) {
    %c0_i32 = arith.constant 0 : i32
    %c0_i32_0 = arith.constant 0 : i32
    %c0_i32_1 = arith.constant 0 : i32
    return %c0_i32, %c0_i32_0 : i32, i32
  }
  func.func @transform_7(%arg0: i32, %arg1: i32) -> (i32, i32) {
    %c0_i32 = arith.constant 0 : i32
    %c0_i32_0 = arith.constant 0 : i32
    return %arg0, %c0_i32 : i32, i32
  }
}

</mosaic_0001>

<llo_original>
// kernel: tpu_custom_call.1
$region0: #{tpu_custom_call.1}
  #allocation0 [shape = 'u32[]', space=smem, size = 0x4, offset = 0x4, fixed_abs, tag = 'smem constant byte address 0x4 - core index']
  #allocation1 [shape = 'u32[144,128]{1,0:T(1,128)}', space=vmem, size = 0x12000, scoped, tag = 'internal scratch']
  #allocation2 [shape = 'bf16[256,128]{1,0:T(16,128)(2,1)}', space=vmem, size = 0x10000, scoped, tag = 'scratch operand']
  #allocation3 [shape = 'f32[256,128]{1,0:T(8,128)}', space=vmem, size = 0x20000, scoped, tag = 'scratch operand']
  %s0 = inlined_call_operand.hbm [shape: f32[512,128], index: 0, kind: input, shape index: {}]
  %s1 = inlined_call_operand.vmem [shape: f32[1,128], index: 1, kind: input, shape index: {}]
  %s2 = inlined_call_operand.vmem [shape: f32[1,128], index: 2, kind: input, shape index: {}]
  %s3 = inlined_call_operand.hbm [shape: bf16[128,256], index: 3, kind: input, shape index: {}]
  %s4 = inlined_call_operand.vmem [shape: f32[1,256], index: 4, kind: input, shape index: {}]
  %s5 = inlined_call_operand.hbm [shape: bf16[256,128], index: 5, kind: input, shape index: {}]
  %s6 = inlined_call_operand.vmem [shape: f32[1,128], index: 6, kind: input, shape index: {}]
  %s7 = inlined_call_operand.hbm [shape: f32[512,128], index: 7, kind: output, shape index: {}]
  %s8 = sld [smem:[#allocation0]]
  $region81: #{tpu_custom_call.1} parent=0
    _
  %s10 = ssub.s32 1, %s8
  %s11 = scalar_select 0, %s10, %s8
  $region1: #{tpu_custom_call.1} parent=0
    #allocation4 [shape = 'u8[262144]{0}', space=vmem, size = 0x40000, scoped, tag = 'input window, operand 0']
    #allocation5 [shape = 's32[2]{0}', space=sflag, size = 0x8, scoped, tag = 'scoped memory for tpu_custom_call.1']
    #allocation6 [shape = 's32[2]{0}', space=sflag, size = 0x8, scoped, tag = 'scoped memory for tpu_custom_call.1']
    #allocation7 [shape = 'u8[65536]{0}', space=vmem, size = 0x10000, scoped, tag = 'input window, operand 3, single buffered']
    #allocation8 [shape = 's32[1]{0}', space=sflag, size = 0x4, scoped, tag = 'scoped memory for tpu_custom_call.1']
    #allocation9 [shape = 'u8[65536]{0}', space=vmem, size = 0x10000, scoped, tag = 'input window, operand 5, single buffered']
    #allocation10 [shape = 'u8[262144]{0}', space=vmem, size = 0x40000, scoped, tag = 'output window, operand 0']
    %12 = vsyncpa [#allocation5], 0
    %s13 = scalar_lea.sflag [#allocation5], 1
    %14 = vsyncpa %s13, 0
    %15 = vsyncpa [#allocation8], 0
    %16 = vsyncpa [#allocation6], 0
    %s17 = scalar_lea.sflag [#allocation6], 1
    %18 = vsyncpa %s17, 0
    loop: start=0, step=1, limit=4
    $region2: #{tpu_custom_call.1} parent=1 // loop_pre_header
      _
    $region3: #{tpu_custom_call.1} parent=1 // loop_header
      %s20 = sphi 0, %s24
      %p21 = scmp.ge.s32.totalorder %s20, 4
      %s27 = sphi 0, %s39
      %s28 = sphi 0, %s35
      %s29 = sphi 0, %s27
      %s30 = sphi 0, %s28
      %s31 = sphi 0, %s29
      %s32 = sphi 0, %s30
      %s42 = sphi 0, %s44
      %s45 = sphi 0, %s42
      %s46 = sphi 0, %s45
      %s62 = sphi 0, %s46
      %s66 = sphi 0, %s66
      %s68 = sphi 0, %s66
      %s69 = sphi 0, %s68
      %s83 = sphi 0, %s69
      %s87 = sphi 0, %s87
      %s89 = sphi 0, %s87
      %s90 = sphi 0, %s89
      %s104 = sphi 0, %s90
      %s110 = sphi 0, %s112
      %s113 = sphi 0, %s110
      %s114 = sphi 0, %s113
      %s130 = sphi 0, %s114
      %s136 = sphi 0, %s138
      %s139 = sphi 0, %s136
      %s140 = sphi 0, %s139
      %s156 = sphi 0, %s140
      %s162 = sphi 0, %s164
      %s165 = sphi 0, %s162
      %s166 = sphi 0, %s165
      %s182 = sphi 0, %s166
      %s186 = sphi 0, %s186
      %s188 = sphi 0, %s186
      %s189 = sphi 0, %s188
      %s203 = sphi 0, %s189
      %s209 = sphi 0, %s211
      %s212 = sphi 0, %s209
      %s213 = sphi 0, %s212
      %s229 = sphi 0, %s213
    $region4: #{tpu_custom_call.1} parent=1 // loop_header_branch
      %23 = sbr.rel (%p21) target = $region8
    $region5: #{tpu_custom_call.1} parent=1 // loop_body
      %s25 = ssub.s32 %s20, 1
      %s26 = ssub.s32 %s20, 2
      %s33 = sadd.s32 1, %s28
      %p34 = scmp.ge.s32.totalorder %s33, 1
      %s35 = scalar_select %p34, 0, %s33
      %s36 = sadd.s32 1, %s27
      %s37 = scalar_select %p34, %s36, %s27
      %p38 = scmp.ge.s32.totalorder %s37, 2
      %s39 = scalar_select %p38, 0, %s37
      %s40 = ssub.s32 %s27, %s39
      %p41 = scmp.eq.s32.totalorder %s40, 0
      %s43 = sadd.s32 %s42, 1
      %s44 = scalar_select %p41, %s42, %s43
      %p47 = pneg %p41
      %p48 = scmp.eq.s32.totalorder %s20, 1
      %p49 = por %p47, %p48
      %p50 = scmp.ne.s32.totalorder %s42, %s45
      %p51 = scmp.eq.s32.totalorder %s20, 0
      %p52 = por %p50, %p51
      %p53 = scmp.ne.s32.totalorder %s42, %s45
      %p54 = scmp.eq.s32.totalorder %s25, 1
      %p55 = por %p53, %p54
      %p56 = scmp.ne.s32.totalorder %s45, %s46
      %p57 = scmp.eq.s32.totalorder %s25, 0
      %p58 = por %p56, %p57
      %p59 = scmp.ne.s32.totalorder %s45, %s46
      %p60 = scmp.eq.s32.totalorder %s26, 1
      %p61 = por %p59, %p60
      %p63 = scmp.ne.s32.totalorder %s46, %s62
      %p64 = scmp.eq.s32.totalorder %s26, 0
      %p65 = por %p63, %p64
      %s67 = sadd.s32 %s66, 1
      %p70 = scmp.eq.s32.totalorder %s20, 1
      %p71 = scmp.ne.s32.totalorder %s66, %s68
      %p72 = scmp.eq.s32.totalorder %s20, 0
      %p73 = por %p71, %p72
      %p74 = scmp.ne.s32.totalorder %s66, %s68
      %p75 = scmp.eq.s32.totalorder %s25, 1
      %p76 = por %p74, %p75
      %p77 = scmp.ne.s32.totalorder %s68, %s69
      %p78 = scmp.eq.s32.totalorder %s25, 0
      %p79 = por %p77, %p78
      %p80 = scmp.ne.s32.totalorder %s68, %s69
      %p81 = scmp.eq.s32.totalorder %s26, 1
      %p82 = por %p80, %p81
      %p84 = scmp.ne.s32.totalorder %s69, %s83
      %p85 = scmp.eq.s32.totalorder %s26, 0
      %p86 = por %p84, %p85
      %s88 = sadd.s32 %s87, 1
      %p91 = scmp.eq.s32.totalorder %s20, 1
      %p92 = scmp.ne.s32.totalorder %s87, %s89
      %p93 = scmp.eq.s32.totalorder %s20, 0
      %p94 = por %p92, %p93
      %p95 = scmp.ne.s32.totalorder %s87, %s89
      %p96 = scmp.eq.s32.totalorder %s25, 1
      %p97 = por %p95, %p96
      %p98 = scmp.ne.s32.totalorder %s89, %s90
      %p99 = scmp.eq.s32.totalorder %s25, 0
      %p100 = por %p98, %p99
      %p101 = scmp.ne.s32.totalorder %s89, %s90
      %p102 = scmp.eq.s32.totalorder %s26, 1
      %p103 = por %p101, %p102
      %p105 = scmp.ne.s32.totalorder %s90, %s104
      %p106 = scmp.eq.s32.totalorder %s26, 0
      %p107 = por %p105, %p106
      %s108 = ssub.s32 %s28, %s35
      %p109 = scmp.eq.s32.totalorder %s108, 0
      %s111 = sadd.s32 %s110, 1
      %s112 = scalar_select %p109, %s110, %s111
      %p115 = pneg %p109
      %p116 = scmp.eq.s32.totalorder %s20, 1
      %p117 = por %p115, %p116
      %p118 = scmp.ne.s32.totalorder %s110, %s113
      %p119 = scmp.eq.s32.totalorder %s20, 0
      %p120 = por %p118, %p119
      %p121 = scmp.ne.s32.totalorder %s110, %s113
      %p122 = scmp.eq.s32.totalorder %s25, 1
      %p123 = por %p121, %p122
      %p124 = scmp.ne.s32.totalorder %s113, %s114
      %p125 = scmp.eq.s32.totalorder %s25, 0
      %p126 = por %p124, %p125
      %p127 = scmp.ne.s32.totalorder %s113, %s114
      %p128 = scmp.eq.s32.totalorder %s26, 1
      %p129 = por %p127, %p128
      %p131 = scmp.ne.s32.totalorder %s114, %s130
      %p132 = scmp.eq.s32.totalorder %s26, 0
      %p133 = por %p131, %p132
      %s134 = ssub.s32 %s28, %s35
      %p135 = scmp.eq.s32.totalorder %s134, 0
      %s137 = sadd.s32 %s136, 1
      %s138 = scalar_select %p135, %s136, %s137
      %p141 = pneg %p135
      %p142 = scmp.eq.s32.totalorder %s20, 1
      %p143 = por %p141, %p142
      %p144 = scmp.ne.s32.totalorder %s136, %s139
      %p145 = scmp.eq.s32.totalorder %s20, 0
      %p146 = por %p144, %p145
      %p147 = scmp.ne.s32.totalorder %s136, %s139
      %p148 = scmp.eq.s32.totalorder %s25, 1
      %p149 = por %p147, %p148
      %p150 = scmp.ne.s32.totalorder %s139, %s140
      %p151 = scmp.eq.s32.totalorder %s25, 0
      %p152 = por %p150, %p151
      %p153 = scmp.ne.s32.totalorder %s139, %s140
      %p154 = scmp.eq.s32.totalorder %s26, 1
      %p155 = por %p153, %p154
      %p157 = scmp.ne.s32.totalorder %s140, %s156
      %p158 = scmp.eq.s32.totalorder %s26, 0
      %p159 = por %p157, %p158
      %s160 = ssub.s32 %s28, %s35
      %p161 = scmp.eq.s32.totalorder %s160, 0
      %s163 = sadd.s32 %s162, 1
      %s164 = scalar_select %p161, %s162, %s163
      %p167 = pneg %p161
      %p168 = scmp.eq.s32.totalorder %s20, 1
      %p169 = por %p167, %p168
      %p170 = scmp.ne.s32.totalorder %s162, %s165
      %p171 = scmp.eq.s32.totalorder %s20, 0
      %p172 = por %p170, %p171
      %p173 = scmp.ne.s32.totalorder %s162, %s165
      %p174 = scmp.eq.s32.totalorder %s25, 1
      %p175 = por %p173, %p174
      %p176 = scmp.ne.s32.totalorder %s165, %s166
      %p177 = scmp.eq.s32.totalorder %s25, 0
      %p178 = por %p176, %p177
      %p179 = scmp.ne.s32.totalorder %s165, %s166
      %p180 = scmp.eq.s32.totalorder %s26, 1
      %p181 = por %p179, %p180
      %p183 = scmp.ne.s32.totalorder %s166, %s182
      %p184 = scmp.eq.s32.totalorder %s26, 0
      %p185 = por %p183, %p184
      %s187 = sadd.s32 %s186, 1
      %p190 = scmp.eq.s32.totalorder %s20, 1
      %p191 = scmp.ne.s32.totalorder %s186, %s188
      %p192 = scmp.eq.s32.totalorder %s20, 0
      %p193 = por %p191, %p192
      %p194 = scmp.ne.s32.totalorder %s186, %s188
      %p195 = scmp.eq.s32.totalorder %s25, 1
      %p196 = por %p194, %p195
      %p197 = scmp.ne.s32.totalorder %s188, %s189
      %p198 = scmp.eq.s32.totalorder %s25, 0
      %p199 = por %p197, %p198
      %p200 = scmp.ne.s32.totalorder %s188, %s189
      %p201 = scmp.eq.s32.totalorder %s26, 1
      %p202 = por %p200, %p201
      %p204 = scmp.ne.s32.totalorder %s189, %s203
      %p205 = scmp.eq.s32.totalorder %s26, 0
      %p206 = por %p204, %p205
      %s207 = ssub.s32 %s27, %s39
      %p208 = scmp.eq.s32.totalorder %s207, 0
      %s210 = sadd.s32 %s209, 1
      %s211 = scalar_select %p208, %s209, %s210
      %p214 = pneg %p208
      %p215 = scmp.eq.s32.totalorder %s20, 1
      %p216 = por %p214, %p215
      %p217 = scmp.ne.s32.totalorder %s209, %s212
      %p218 = scmp.eq.s32.totalorder %s20, 0
      %p219 = por %p217, %p218
      %p220 = scmp.ne.s32.totalorder %s209, %s212
      %p221 = scmp.eq.s32.totalorder %s25, 1
      %p222 = por %p220, %p221
      %p223 = scmp.ne.s32.totalorder %s212, %s213
      %p224 = scmp.eq.s32.totalorder %s25, 0
      %p225 = por %p223, %p224
      %p226 = scmp.ne.s32.totalorder %s212, %s213
      %p227 = scmp.eq.s32.totalorder %s26, 1
      %p228 = por %p226, %p227
      %p230 = scmp.ne.s32.totalorder %s213, %s229
      %p231 = scmp.eq.s32.totalorder %s26, 0
      %p232 = por %p230, %p231
      %p233 = scmp.le.s32.totalorder 1, %s20
      %p234 = scmp.lt.s32.totalorder %s20, 3
      %p235 = pnand %p233, %p234
      %p236 = pneg %p235
      // Predicated region
      $region9: #{tpu_custom_call.1} parent=5 // pred_check
        _
      $region10: #{tpu_custom_call.1} parent=5 // pred_check_branch
        %238 = sbr.rel (%p235) target = $region12
      $region11: #{tpu_custom_call.1} parent=5 // pred_region
        %s239 = ssub.s32 %s20, 1
        // Predicated region
        $region13: #{tpu_custom_call.1} parent=11 // pred_check
          %p240 = pneg %p79
        $region14: #{tpu_custom_call.1} parent=11 // pred_check_branch
          %242 = sbr.rel (%p240) target = $region16
        $region15: #{tpu_custom_call.1} parent=11 // pred_region
          _
        $region16: #{tpu_custom_call.1} parent=11 // pred_fallthru
          _
        // Predicated region
        $region17: #{tpu_custom_call.1} parent=11 // pred_check
          %p243 = pneg %p100
        $region18: #{tpu_custom_call.1} parent=11 // pred_check_branch
          %245 = sbr.rel (%p243) target = $region20
        $region19: #{tpu_custom_call.1} parent=11 // pred_region
          _
        $region20: #{tpu_custom_call.1} parent=11 // pred_fallthru
          _
        // Predicated region
        $region21: #{tpu_custom_call.1} parent=11 // pred_check
          %p246 = pneg %p126
        $region22: #{tpu_custom_call.1} parent=11 // pred_check_branch
          %248 = sbr.rel (%p246) target = $region24
        $region23: #{tpu_custom_call.1} parent=11 // pred_region
          %s249 = smul.u32 2, %s30
          %s251 = ssub.s32 2048, 2048
          %252 = vsyncadd [#allocation8], %s251
          %s253 = smul.addr %s249, 64
          %s254 = scalar_lea.hbm %s3, %s253
          %s255 = sshll.u32 [#allocation7], 4
          %s256 = int_to_ptr.vmem [resolvable:$true] %s255
          %261 = dma.hbm_to_vmem [thread:$0]  %s254, 2048, %s256, [#allocation8], 128, 128, 8
        $region24: #{tpu_custom_call.1} parent=11 // pred_fallthru
          _
        // Predicated region
        $region25: #{tpu_custom_call.1} parent=11 // pred_check
          %p262 = pneg %p152
        $region26: #{tpu_custom_call.1} parent=11 // pred_check_branch
          %264 = sbr.rel (%p262) target = $region28
        $region27: #{tpu_custom_call.1} parent=11 // pred_region
          %s265 = smul.u32 2, %s30
          %p266 = scmp.lt.s32.totalorder %s265, 1
          %s267 = scalar_select %p266, %s265, 1
          %s268 = scalar_lea.vmem %s4, %s267
          %s269 = smul.u32 2, %s30
        $region28: #{tpu_custom_call.1} parent=11 // pred_fallthru
          _
        // Predicated region
        $region29: #{tpu_custom_call.1} parent=11 // pred_check
          %p270 = pneg %p178
        $region30: #{tpu_custom_call.1} parent=11 // pred_check_branch
          %272 = sbr.rel (%p270) target = $region32
        $region31: #{tpu_custom_call.1} parent=11 // pred_region
          %s273 = smul.u32 32, %s30
          %s275 = ssub.s32 2048, 2048
          %276 = vsyncadd [#allocation8], %s275
          %s277 = smul.addr %s273, 64
          %s278 = scalar_lea.hbm %s5, %s277
          %s279 = sshll.u32 [#allocation9], 4
          %s280 = int_to_ptr.vmem [resolvable:$true] %s279
          %285 = dma.hbm_to_vmem [thread:$0]  %s278, 2048, %s280, [#allocation8], 64, 64, 4
        $region32: #{tpu_custom_call.1} parent=11 // pred_fallthru
          _
        // Predicated region
        $region33: #{tpu_custom_call.1} parent=11 // pred_check
          %p286 = pneg %p199
        $region34: #{tpu_custom_call.1} parent=11 // pred_check_branch
          %288 = sbr.rel (%p286) target = $region36
        $region35: #{tpu_custom_call.1} parent=11 // pred_region
          _
        $region36: #{tpu_custom_call.1} parent=11 // pred_fallthru
          _
      $region12: #{tpu_custom_call.1} parent=5 // pred_fallthru
        _
      %p289 = scmp.lt.s32.totalorder %s20, 2
      // Predicated region
      $region37: #{tpu_custom_call.1} parent=5 // pred_check
        %p290 = pneg %p289
      $region38: #{tpu_custom_call.1} parent=5 // pred_check_branch
        %292 = sbr.rel (%p290) target = $region40
      $region39: #{tpu_custom_call.1} parent=5 // pred_region
        // Predicated region
        $region41: #{tpu_custom_call.1} parent=39 // pred_check
          %p293 = pneg %p52
        $region42: #{tpu_custom_call.1} parent=39 // pred_check_branch
          %295 = sbr.rel (%p293) target = $region44
        $region43: #{tpu_custom_call.1} parent=39 // pred_region
          %s296 = sand.u32 %s42, 1
          %s297 = scalar_lea.sflag [#allocation5], %s296
          %s298 = sand.u32 %s42, 1
          %s299 = smul.addr %s298, 256
          %s300 = scalar_lea.vmem [#allocation4], %s299
          %s301 = smul.u32 32, %s27
          %s303 = ssub.s32 4096, 4096
          %304 = vsyncadd %s297, %s303
          %s305 = smul.addr %s301, 128
          %s306 = scalar_lea.hbm %s0, %s305
          %s307 = sshll.u32 %s300, 4
          %s308 = int_to_ptr.vmem [resolvable:$true] %s307
          %313 = dma.hbm_to_vmem [thread:$0]  %s306, 4096, %s308, %s297, 128, 128, 8
        $region44: #{tpu_custom_call.1} parent=39 // pred_fallthru
          _
      $region40: #{tpu_custom_call.1} parent=5 // pred_fallthru
        _
      %p314 = scmp.le.s32.totalorder 1, %s20
      %p315 = scmp.lt.s32.totalorder %s20, 3
      %p316 = pnand %p314, %p315
      %p317 = pneg %p316
      // Predicated region
      $region45: #{tpu_custom_call.1} parent=5 // pred_check
        _
      $region46: #{tpu_custom_call.1} parent=5 // pred_check_branch
        %319 = sbr.rel (%p316) target = $region48
      $region47: #{tpu_custom_call.1} parent=5 // pred_region
        %s320 = ssub.s32 %s20, 1
        %s321 = sand.u32 %s45, 1
        %s322 = scalar_lea.sflag [#allocation5], %s321
        %s323 = sand.u32 %s45, 1
        %s324 = smul.addr %s323, 256
        %s325 = scalar_lea.vmem [#allocation4], %s324
        // Predicated region
        $region49: #{tpu_custom_call.1} parent=47 // pred_check
          %p326 = pneg %p58
        $region50: #{tpu_custom_call.1} parent=47 // pred_check_branch
          %328 = sbr.rel (%p326) target = $region52
        $region51: #{tpu_custom_call.1} parent=47 // pred_region
          %329 = dma.done %s322, 4096
        $region52: #{tpu_custom_call.1} parent=47 // pred_fallthru
          _
        // Predicated region
        $region53: #{tpu_custom_call.1} parent=47 // pred_check
          %p330 = pneg %p126
        $region54: #{tpu_custom_call.1} parent=47 // pred_check_branch
          %332 = sbr.rel (%p330) target = $region56
        $region55: #{tpu_custom_call.1} parent=47 // pred_region
          %333 = dma.done [#allocation8], 2048
        $region56: #{tpu_custom_call.1} parent=47 // pred_fallthru
          _
        // Predicated region
        $region57: #{tpu_custom_call.1} parent=47 // pred_check
          %p334 = pneg %p178
        $region58: #{tpu_custom_call.1} parent=47 // pred_check_branch
          %336 = sbr.rel (%p334) target = $region60
        $region59: #{tpu_custom_call.1} parent=47 // pred_region
          %337 = dma.done [#allocation8], 2048
        $region60: #{tpu_custom_call.1} parent=47 // pred_fallthru
          _
        %s338 = sand.u32 %s45, 1
        %s339 = scalar_lea.sflag [#allocation5], %s338
        %s340 = sand.u32 %s45, 1
        %s341 = smul.addr %s340, 256
        %s342 = scalar_lea.vmem [#allocation4], %s341
        %p343 = pneg %p58
        %p344 = pneg %p55
        %p345 = pneg %p79
        %p346 = pneg %p76
        %p347 = pneg %p100
        %p348 = pneg %p97
        %p349 = pneg %p126
        %p350 = pneg %p123
        %s351 = smul.u32 2, %s30
        %p352 = scmp.lt.s32.totalorder %s351, 1
        %s353 = scalar_select %p352, %s351, 1
        %s354 = scalar_lea.vmem %s4, %s353
        %p355 = pneg %p152
        %p356 = pneg %p149
        %p357 = pneg %p178
        %p358 = pneg %p175
        %p359 = pneg %p199
        %p360 = pneg %p196
        %p361 = pneg %p225
        %p362 = pneg %p222
        %s363 = sand.u32 %s212, 1
        %s364 = scalar_lea.sflag [#allocation6], %s363
        %s365 = sand.u32 %s212, 1
        %s366 = smul.addr %s365, 256
        %s367 = scalar_lea.vmem [#allocation10], %s366
        %s368 = smul.u32 32, %s29
        %s369 = smul.u32 2, %s30
        %s370 = smul.u32 2, %s30
        %p371 = scmp.lt.s32.totalorder %s370, 1
        %s372 = scalar_select %p371, %s370, 1
        %s373 = scalar_lea.vmem %s4, %s372
        %s374 = smul.u32 2, %s30
        %s375 = smul.u32 32, %s30
        %s376 = smul.u32 32, %s29
        %p378 = scmp.eq.s32.totalorder %s30, 0
        // Predicated region
        $region61: #{tpu_custom_call.1} parent=47 // pred_check
          %p379 = pneg %p378
        $region62: #{tpu_custom_call.1} parent=47 // pred_check_branch
          %381 = sbr.rel (%p379) target = $region64
        $region63: #{tpu_custom_call.1} parent=47 // pred_region
          %v382 = vld [vmem:[%s325] sm:$0xff]
          %v383 = vld [vmem:[%s325 + $0x8] sm:$0xff]
          %v384 = vld [vmem:[%s325 + $0x10] sm:$0xff]
          %v385 = vld [vmem:[%s325 + $0x18] sm:$0xff]
          %v386 = vld [vmem:[%s325 + $0x20] sm:$0xff]
          %v387 = vld [vmem:[%s325 + $0x28] sm:$0xff]
          %v388 = vld [vmem:[%s325 + $0x30] sm:$0xff]
          %v389 = vld [vmem:[%s325 + $0x38] sm:$0xff]
          %v390 = vld [vmem:[%s325 + $0x40] sm:$0xff]
          %v391 = vld [vmem:[%s325 + $0x48] sm:$0xff]
          %v392 = vld [vmem:[%s325 + $0x50] sm:$0xff]
          %v393 = vld [vmem:[%s325 + $0x58] sm:$0xff]
          %v394 = vld [vmem:[%s325 + $0x60] sm:$0xff]
          %v395 = vld [vmem:[%s325 + $0x68] sm:$0xff]
          %v396 = vld [vmem:[%s325 + $0x70] sm:$0xff]
          %v397 = vld [vmem:[%s325 + $0x78] sm:$0xff]
          %v398 = vld [vmem:[%s325 + $0x80] sm:$0xff]
          %v399 = vld [vmem:[%s325 + $0x88] sm:$0xff]
          %v400 = vld [vmem:[%s325 + $0x90] sm:$0xff]
          %v401 = vld [vmem:[%s325 + $0x98] sm:$0xff]
          %v402 = vld [vmem:[%s325 + $0xa0] sm:$0xff]
          %v403 = vld [vmem:[%s325 + $0xa8] sm:$0xff]
          %v404 = vld [vmem:[%s325 + $0xb0] sm:$0xff]
          %v405 = vld [vmem:[%s325 + $0xb8] sm:$0xff]
          %v406 = vld [vmem:[%s325 + $0xc0] sm:$0xff]
          %v407 = vld [vmem:[%s325 + $0xc8] sm:$0xff]
          %v408 = vld [vmem:[%s325 + $0xd0] sm:$0xff]
          %v409 = vld [vmem:[%s325 + $0xd8] sm:$0xff]
          %v410 = vld [vmem:[%s325 + $0xe0] sm:$0xff]
          %v411 = vld [vmem:[%s325 + $0xe8] sm:$0xff]
          %v412 = vld [vmem:[%s325 + $0xf0] sm:$0xff]
          %v413 = vld [vmem:[%s325 + $0xf8] sm:$0xff]
          %414 = vadd.xlane.f32.xlu0 %v382
          %v415 = vpop.xlane.xlu0 %414
          %416 = vadd.xlane.f32.xlu0 %v383
          %v417 = vpop.xlane.xlu0 %416
          %418 = vadd.xlane.f32.xlu0 %v384
          %v419 = vpop.xlane.xlu0 %418
          %420 = vadd.xlane.f32.xlu0 %v385
          %v421 = vpop.xlane.xlu0 %420
          %422 = vadd.xlane.f32.xlu0 %v386
          %v423 = vpop.xlane.xlu0 %422
          %424 = vadd.xlane.f32.xlu0 %v387
          %v425 = vpop.xlane.xlu0 %424
          %426 = vadd.xlane.f32.xlu0 %v388
          %v427 = vpop.xlane.xlu0 %426
          %428 = vadd.xlane.f32.xlu0 %v389
          %v429 = vpop.xlane.xlu0 %428
          %430 = vadd.xlane.f32.xlu0 %v390
          %v431 = vpop.xlane.xlu0 %430
          %432 = vadd.xlane.f32.xlu0 %v391
          %v433 = vpop.xlane.xlu0 %432
          %434 = vadd.xlane.f32.xlu0 %v392
          %v435 = vpop.xlane.xlu0 %434
          %436 = vadd.xlane.f32.xlu0 %v393
          %v437 = vpop.xlane.xlu0 %436
          %438 = vadd.xlane.f32.xlu0 %v394
          %v439 = vpop.xlane.xlu0 %438
          %440 = vadd.xlane.f32.xlu0 %v395
          %v441 = vpop.xlane.xlu0 %440
          %442 = vadd.xlane.f32.xlu0 %v396
          %v443 = vpop.xlane.xlu0 %442
          %444 = vadd.xlane.f32.xlu0 %v397
          %v445 = vpop.xlane.xlu0 %444
          %446 = vadd.xlane.f32.xlu0 %v398
          %v447 = vpop.xlane.xlu0 %446
          %448 = vadd.xlane.f32.xlu0 %v399
          %v449 = vpop.xlane.xlu0 %448
          %450 = vadd.xlane.f32.xlu0 %v400
          %v451 = vpop.xlane.xlu0 %450
          %452 = vadd.xlane.f32.xlu0 %v401
          %v453 = vpop.xlane.xlu0 %452
          %454 = vadd.xlane.f32.xlu0 %v402
          %v455 = vpop.xlane.xlu0 %454
          %456 = vadd.xlane.f32.xlu0 %v403
          %v457 = vpop.xlane.xlu0 %456
          %458 = vadd.xlane.f32.xlu0 %v404
          %v459 = vpop.xlane.xlu0 %458
          %460 = vadd.xlane.f32.xlu0 %v405
          %v461 = vpop.xlane.xlu0 %460
          %462 = vadd.xlane.f32.xlu0 %v406
          %v463 = vpop.xlane.xlu0 %462
          %464 = vadd.xlane.f32.xlu0 %v407
          %v465 = vpop.xlane.xlu0 %464
          %466 = vadd.xlane.f32.xlu0 %v408
          %v467 = vpop.xlane.xlu0 %466
          %468 = vadd.xlane.f32.xlu0 %v409
          %v469 = vpop.xlane.xlu0 %468
          %470 = vadd.xlane.f32.xlu0 %v410
          %v471 = vpop.xlane.xlu0 %470
          %472 = vadd.xlane.f32.xlu0 %v411
          %v473 = vpop.xlane.xlu0 %472
          %474 = vadd.xlane.f32.xlu0 %v412
          %v475 = vpop.xlane.xlu0 %474
          %476 = vadd.xlane.f32.xlu0 %v413
          %v477 = vpop.xlane.xlu0 %476
          %v478 = vrcp.pop 128.0
          %v479 = vmul.f32 %v415, %v478
          %v480 = vmul.f32 %v417, %v478
          %v481 = vmul.f32 %v419, %v478
          %v482 = vmul.f32 %v421, %v478
          %v483 = vmul.f32 %v423, %v478
          %v484 = vmul.f32 %v425, %v478
          %v485 = vmul.f32 %v427, %v478
          %v486 = vmul.f32 %v429, %v478
          %v487 = vmul.f32 %v431, %v478
          %v488 = vmul.f32 %v433, %v478
          %v489 = vmul.f32 %v435, %v478
          %v490 = vmul.f32 %v437, %v478
          %v491 = vmul.f32 %v439, %v478
          %v492 = vmul.f32 %v441, %v478
          %v493 = vmul.f32 %v443, %v478
          %v494 = vmul.f32 %v445, %v478
          %v495 = vmul.f32 %v447, %v478
          %v496 = vmul.f32 %v449, %v478
          %v497 = vmul.f32 %v451, %v478
          %v498 = vmul.f32 %v453, %v478
          %v499 = vmul.f32 %v455, %v478
          %v500 = vmul.f32 %v457, %v478
          %v501 = vmul.f32 %v459, %v478
          %v502 = vmul.f32 %v461, %v478
          %v503 = vmul.f32 %v463, %v478
          %v504 = vmul.f32 %v465, %v478
          %v505 = vmul.f32 %v467, %v478
          %v506 = vmul.f32 %v469, %v478
          %v507 = vmul.f32 %v471, %v478
          %v508 = vmul.f32 %v473, %v478
          %v509 = vmul.f32 %v475, %v478
          %v510 = vmul.f32 %v477, %v478
          %v511 = vsub.f32 %v382, %v479
          %v512 = vsub.f32 %v383, %v480
          %v513 = vsub.f32 %v384, %v481
          %v514 = vsub.f32 %v385, %v482
          %v515 = vsub.f32 %v386, %v483
          %v516 = vsub.f32 %v387, %v484
          %v517 = vsub.f32 %v388, %v485
          %v518 = vsub.f32 %v389, %v486
          %v519 = vsub.f32 %v390, %v487
          %v520 = vsub.f32 %v391, %v488
          %v521 = vsub.f32 %v392, %v489
          %v522 = vsub.f32 %v393, %v490
          %v523 = vsub.f32 %v394, %v491
          %v524 = vsub.f32 %v395, %v492
          %v525 = vsub.f32 %v396, %v493
          %v526 = vsub.f32 %v397, %v494
          %v527 = vsub.f32 %v398, %v495
          %v528 = vsub.f32 %v399, %v496
          %v529 = vsub.f32 %v400, %v497
          %v530 = vsub.f32 %v401, %v498
          %v531 = vsub.f32 %v402, %v499
          %v532 = vsub.f32 %v403, %v500
          %v533 = vsub.f32 %v404, %v501
          %v534 = vsub.f32 %v405, %v502
          %v535 = vsub.f32 %v406, %v503
          %v536 = vsub.f32 %v407, %v504
          %v537 = vsub.f32 %v408, %v505
          %v538 = vsub.f32 %v409, %v506
          %v539 = vsub.f32 %v410, %v507
          %v540 = vsub.f32 %v411, %v508
          %v541 = vsub.f32 %v412, %v509
          %v542 = vsub.f32 %v413, %v510
          %v543 = vmul.f32 %v511, %v511
          %v544 = vmul.f32 %v512, %v512
          %v545 = vmul.f32 %v513, %v513
          %v546 = vmul.f32 %v514, %v514
          %v547 = vmul.f32 %v515, %v515
          %v548 = vmul.f32 %v516, %v516
          %v549 = vmul.f32 %v517, %v517
          %v550 = vmul.f32 %v518, %v518
          %v551 = vmul.f32 %v519, %v519
          %v552 = vmul.f32 %v520, %v520
          %v553 = vmul.f32 %v521, %v521
          %v554 = vmul.f32 %v522, %v522
          %v555 = vmul.f32 %v523, %v523
          %v556 = vmul.f32 %v524, %v524
          %v557 = vmul.f32 %v525, %v525
          %v558 = vmul.f32 %v526, %v526
          %v559 = vmul.f32 %v527, %v527
          %v560 = vmul.f32 %v528, %v528
          %v561 = vmul.f32 %v529, %v529
          %v562 = vmul.f32 %v530, %v530
          %v563 = vmul.f32 %v531, %v531
          %v564 = vmul.f32 %v532, %v532
          %v565 = vmul.f32 %v533, %v533
          %v566 = vmul.f32 %v534, %v534
          %v567 = vmul.f32 %v535, %v535
          %v568 = vmul.f32 %v536, %v536
          %v569 = vmul.f32 %v537, %v537
          %v570 = vmul.f32 %v538, %v538
          %v571 = vmul.f32 %v539, %v539
          %v572 = vmul.f32 %v540, %v540
          %v573 = vmul.f32 %v541, %v541
          %v574 = vmul.f32 %v542, %v542
          %575 = vadd.xlane.f32.xlu0 %v543
          %v576 = vpop.xlane.xlu0 %575
          %577 = vadd.xlane.f32.xlu0 %v544
          %v578 = vpop.xlane.xlu0 %577
          %579 = vadd.xlane.f32.xlu0 %v545
          %v580 = vpop.xlane.xlu0 %579
          %581 = vadd.xlane.f32.xlu0 %v546
          %v582 = vpop.xlane.xlu0 %581
          %583 = vadd.xlane.f32.xlu0 %v547
          %v584 = vpop.xlane.xlu0 %583
          %585 = vadd.xlane.f32.xlu0 %v548
          %v586 = vpop.xlane.xlu0 %585
          %587 = vadd.xlane.f32.xlu0 %v549
          %v588 = vpop.xlane.xlu0 %587
          %589 = vadd.xlane.f32.xlu0 %v550
          %v590 = vpop.xlane.xlu0 %589
          %591 = vadd.xlane.f32.xlu0 %v551
          %v592 = vpop.xlane.xlu0 %591
          %593 = vadd.xlane.f32.xlu0 %v552
          %v594 = vpop.xlane.xlu0 %593
          %595 = vadd.xlane.f32.xlu0 %v553
          %v596 = vpop.xlane.xlu0 %595
          %597 = vadd.xlane.f32.xlu0 %v554
          %v598 = vpop.xlane.xlu0 %597
          %599 = vadd.xlane.f32.xlu0 %v555
          %v600 = vpop.xlane.xlu0 %599
          %601 = vadd.xlane.f32.xlu0 %v556
          %v602 = vpop.xlane.xlu0 %601
          %603 = vadd.xlane.f32.xlu0 %v557
          %v604 = vpop.xlane.xlu0 %603
          %605 = vadd.xlane.f32.xlu0 %v558
          %v606 = vpop.xlane.xlu0 %605
          %607 = vadd.xlane.f32.xlu0 %v559
          %v608 = vpop.xlane.xlu0 %607
          %609 = vadd.xlane.f32.xlu0 %v560
          %v610 = vpop.xlane.xlu0 %609
          %611 = vadd.xlane.f32.xlu0 %v561
          %v612 = vpop.xlane.xlu0 %611
          %613 = vadd.xlane.f32.xlu0 %v562
          %v614 = vpop.xlane.xlu0 %613
          %615 = vadd.xlane.f32.xlu0 %v563
          %v616 = vpop.xlane.xlu0 %615
          %617 = vadd.xlane.f32.xlu0 %v564
          %v618 = vpop.xlane.xlu0 %617
          %619 = vadd.xlane.f32.xlu0 %v565
          %v620 = vpop.xlane.xlu0 %619
          %621 = vadd.xlane.f32.xlu0 %v566
          %v622 = vpop.xlane.xlu0 %621
          %623 = vadd.xlane.f32.xlu0 %v567
          %v624 = vpop.xlane.xlu0 %623
          %625 = vadd.xlane.f32.xlu0 %v568
          %v626 = vpop.xlane.xlu0 %625
          %627 = vadd.xlane.f32.xlu0 %v569
          %v628 = vpop.xlane.xlu0 %627
          %629 = vadd.xlane.f32.xlu0 %v570
          %v630 = vpop.xlane.xlu0 %629
          %631 = vadd.xlane.f32.xlu0 %v571
          %v632 = vpop.xlane.xlu0 %631
          %633 = vadd.xlane.f32.xlu0 %v572
          %v634 = vpop.xlane.xlu0 %633
          %635 = vadd.xlane.f32.xlu0 %v573
          %v636 = vpop.xlane.xlu0 %635
          %637 = vadd.xlane.f32.xlu0 %v574
          %v638 = vpop.xlane.xlu0 %637
          %v639 = vmul.f32 %v576, %v478
          %v640 = vmul.f32 %v578, %v478
          %v641 = vmul.f32 %v580, %v478
          %v642 = vmul.f32 %v582, %v478
          %v643 = vmul.f32 %v584, %v478
          %v644 = vmul.f32 %v586, %v478
          %v645 = vmul.f32 %v588, %v478
          %v646 = vmul.f32 %v590, %v478
          %v647 = vmul.f32 %v592, %v478
          %v648 = vmul.f32 %v594, %v478
          %v649 = vmul.f32 %v596, %v478
          %v650 = vmul.f32 %v598, %v478
          %v651 = vmul.f32 %v600, %v478
          %v652 = vmul.f32 %v602, %v478
          %v653 = vmul.f32 %v604, %v478
          %v654 = vmul.f32 %v606, %v478
          %v655 = vmul.f32 %v608, %v478
          %v656 = vmul.f32 %v610, %v478
          %v657 = vmul.f32 %v612, %v478
          %v658 = vmul.f32 %v614, %v478
          %v659 = vmul.f32 %v616, %v478
          %v660 = vmul.f32 %v618, %v478
          %v661 = vmul.f32 %v620, %v478
          %v662 = vmul.f32 %v622, %v478
          %v663 = vmul.f32 %v624, %v478
          %v664 = vmul.f32 %v626, %v478
          %v665 = vmul.f32 %v628, %v478
          %v666 = vmul.f32 %v630, %v478
          %v667 = vmul.f32 %v632, %v478
          %v668 = vmul.f32 %v634, %v478
          %v669 = vmul.f32 %v636, %v478
          %v670 = vmul.f32 %v638, %v478
          %v671 = vadd.f32 %v639, 1e-05
          %v672 = vadd.f32 %v640, 1e-05
          %v673 = vadd.f32 %v641, 1e-05
          %v674 = vadd.f32 %v642, 1e-05
          %v675 = vadd.f32 %v643, 1e-05
          %v676 = vadd.f32 %v644, 1e-05
          %v677 = vadd.f32 %v645, 1e-05
          %v678 = vadd.f32 %v646, 1e-05
          %v679 = vadd.f32 %v647, 1e-05
          %v680 = vadd.f32 %v648, 1e-05
          %v681 = vadd.f32 %v649, 1e-05
          %v682 = vadd.f32 %v650, 1e-05
          %v683 = vadd.f32 %v651, 1e-05
          %v684 = vadd.f32 %v652, 1e-05
          %v685 = vadd.f32 %v653, 1e-05
          %v686 = vadd.f32 %v654, 1e-05
          %v687 = vadd.f32 %v655, 1e-05
          %v688 = vadd.f32 %v656, 1e-05
          %v689 = vadd.f32 %v657, 1e-05
          %v690 = vadd.f32 %v658, 1e-05
          %v691 = vadd.f32 %v659, 1e-05
          %v692 = vadd.f32 %v660, 1e-05
          %v693 = vadd.f32 %v661, 1e-05
          %v694 = vadd.f32 %v662, 1e-05
          %v695 = vadd.f32 %v663, 1e-05
          %v696 = vadd.f32 %v664, 1e-05
          %v697 = vadd.f32 %v665, 1e-05
          %v698 = vadd.f32 %v666, 1e-05
          %v699 = vadd.f32 %v667, 1e-05
          %v700 = vadd.f32 %v668, 1e-05
          %v701 = vadd.f32 %v669, 1e-05
          %v702 = vadd.f32 %v670, 1e-05
          %v703 = vrsqrt.pop %v671
          %v704 = vrsqrt.pop %v672
          %v705 = vrsqrt.pop %v673
          %v706 = vrsqrt.pop %v674
          %v707 = vrsqrt.pop %v675
          %v708 = vrsqrt.pop %v676
          %v709 = vrsqrt.pop %v677
          %v710 = vrsqrt.pop %v678
          %v711 = vrsqrt.pop %v679
          %v712 = vrsqrt.pop %v680
          %v713 = vrsqrt.pop %v681
          %v714 = vrsqrt.pop %v682
          %v715 = vrsqrt.pop %v683
          %v716 = vrsqrt.pop %v684
          %v717 = vrsqrt.pop %v685
          %v718 = vrsqrt.pop %v686
          %v719 = vrsqrt.pop %v687
          %v720 = vrsqrt.pop %v688
          %v721 = vrsqrt.pop %v689
          %v722 = vrsqrt.pop %v690
          %v723 = vrsqrt.pop %v691
          %v724 = vrsqrt.pop %v692
          %v725 = vrsqrt.pop %v693
          %v726 = vrsqrt.pop %v694
          %v727 = vrsqrt.pop %v695
          %v728 = vrsqrt.pop %v696
          %v729 = vrsqrt.pop %v697
          %v730 = vrsqrt.pop %v698
          %v731 = vrsqrt.pop %v699
          %v732 = vrsqrt.pop %v700
          %v733 = vrsqrt.pop %v701
          %v734 = vrsqrt.pop %v702
          %v735 = vmul.f32 %v511, %v703
          %v736 = vmul.f32 %v512, %v704
          %v737 = vmul.f32 %v513, %v705
          %v738 = vmul.f32 %v514, %v706
          %v739 = vmul.f32 %v515, %v707
          %v740 = vmul.f32 %v516, %v708
          %v741 = vmul.f32 %v517, %v709
          %v742 = vmul.f32 %v518, %v710
          %v743 = vmul.f32 %v519, %v711
          %v744 = vmul.f32 %v520, %v712
          %v745 = vmul.f32 %v521, %v713
          %v746 = vmul.f32 %v522, %v714
          %v747 = vmul.f32 %v523, %v715
          %v748 = vmul.f32 %v524, %v716
          %v749 = vmul.f32 %v525, %v717
          %v750 = vmul.f32 %v526, %v718
          %v751 = vmul.f32 %v527, %v719
          %v752 = vmul.f32 %v528, %v720
          %v753 = vmul.f32 %v529, %v721
          %v754 = vmul.f32 %v530, %v722
          %v755 = vmul.f32 %v531, %v723
          %v756 = vmul.f32 %v532, %v724
          %v757 = vmul.f32 %v533, %v725
          %v758 = vmul.f32 %v534, %v726
          %v759 = vmul.f32 %v535, %v727
          %v760 = vmul.f32 %v536, %v728
          %v761 = vmul.f32 %v537, %v729
          %v762 = vmul.f32 %v538, %v730
          %v763 = vmul.f32 %v539, %v731
          %v764 = vmul.f32 %v540, %v732
          %v765 = vmul.f32 %v541, %v733
          %v766 = vmul.f32 %v542, %v734
          %v767 = vld [vmem:[%s1] sm:$0x1]
          %v769 = vlaneseq
          %v770 = vshrl.u32 %v769, 7
          %v771 = vsub.s32 0, %v770
          %v772 = vrot.slane %v767, %v771
          %v774 = vmul.f32 %v735, %v772
          %v775 = vmul.f32 %v736, %v772
          %v776 = vmul.f32 %v737, %v772
          %v777 = vmul.f32 %v738, %v772
          %v778 = vmul.f32 %v739, %v772
          %v779 = vmul.f32 %v740, %v772
          %v780 = vmul.f32 %v741, %v772
          %v781 = vmul.f32 %v742, %v772
          %v782 = vmul.f32 %v743, %v772
          %v783 = vmul.f32 %v744, %v772
          %v784 = vmul.f32 %v745, %v772
          %v785 = vmul.f32 %v746, %v772
          %v786 = vmul.f32 %v747, %v772
          %v787 = vmul.f32 %v748, %v772
          %v788 = vmul.f32 %v749, %v772
          %v789 = vmul.f32 %v750, %v772
          %v790 = vmul.f32 %v751, %v772
          %v791 = vmul.f32 %v752, %v772
          %v792 = vmul.f32 %v753, %v772
          %v793 = vmul.f32 %v754, %v772
          %v794 = vmul.f32 %v755, %v772
          %v795 = vmul.f32 %v756, %v772
          %v796 = vmul.f32 %v757, %v772
          %v797 = vmul.f32 %v758, %v772
          %v798 = vmul.f32 %v759, %v772
          %v799 = vmul.f32 %v760, %v772
          %v800 = vmul.f32 %v761, %v772
          %v801 = vmul.f32 %v762, %v772
          %v802 = vmul.f32 %v763, %v772
          %v803 = vmul.f32 %v764, %v772
          %v804 = vmul.f32 %v765, %v772
          %v805 = vmul.f32 %v766, %v772
          %v806 = vld [vmem:[%s2] sm:$0x1]
          %v808 = vlaneseq
          %v809 = vshrl.u32 %v808, 7
          %v810 = vsub.s32 0, %v809
          %v811 = vrot.slane %v806, %v810
          %v813 = vadd.f32 %v774, %v811
          %v814 = vadd.f32 %v775, %v811
          %v815 = vadd.f32 %v776, %v811
          %v816 = vadd.f32 %v777, %v811
          %v817 = vadd.f32 %v778, %v811
          %v818 = vadd.f32 %v779, %v811
          %v819 = vadd.f32 %v780, %v811
          %v820 = vadd.f32 %v781, %v811
          %v821 = vadd.f32 %v782, %v811
          %v822 = vadd.f32 %v783, %v811
          %v823 = vadd.f32 %v784, %v811
          %v824 = vadd.f32 %v785, %v811
          %v825 = vadd.f32 %v786, %v811
          %v826 = vadd.f32 %v787, %v811
          %v827 = vadd.f32 %v788, %v811
          %v828 = vadd.f32 %v789, %v811
          %v829 = vadd.f32 %v790, %v811
          %v830 = vadd.f32 %v791, %v811
          %v831 = vadd.f32 %v792, %v811
          %v832 = vadd.f32 %v793, %v811
          %v833 = vadd.f32 %v794, %v811
          %v834 = vadd.f32 %v795, %v811
          %v835 = vadd.f32 %v796, %v811
          %v836 = vadd.f32 %v797, %v811
          %v837 = vadd.f32 %v798, %v811
          %v838 = vadd.f32 %v799, %v811
          %v839 = vadd.f32 %v800, %v811
          %v840 = vadd.f32 %v801, %v811
          %v841 = vadd.f32 %v802, %v811
          %v842 = vadd.f32 %v803, %v811
          %v843 = vadd.f32 %v804, %v811
          %v844 = vadd.f32 %v805, %v811
          %v845 = vpack.c.bf16 %v814, %v813
          %v846 = vpack.c.bf16 %v816, %v815
          %v847 = vpack.c.bf16 %v818, %v817
          %v848 = vpack.c.bf16 %v820, %v819
          %v849 = vpack.c.bf16 %v822, %v821
          %v850 = vpack.c.bf16 %v824, %v823
          %v851 = vpack.c.bf16 %v826, %v825
          %v852 = vpack.c.bf16 %v828, %v827
          %v853 = vpack.c.bf16 %v830, %v829
          %v854 = vpack.c.bf16 %v832, %v831
          %v855 = vpack.c.bf16 %v834, %v833
          %v856 = vpack.c.bf16 %v836, %v835
          %v857 = vpack.c.bf16 %v838, %v837
          %v858 = vpack.c.bf16 %v840, %v839
          %v859 = vpack.c.bf16 %v842, %v841
          %v860 = vpack.c.bf16 %v844, %v843
          %861 = vst [vmem:[#allocation2] sm:$0xff] %v845
          %862 = vst [vmem:[#allocation2 + $0x8] sm:$0xff] %v846
          %863 = vst [vmem:[#allocation2 + $0x10] sm:$0xff] %v847
          %864 = vst [vmem:[#allocation2 + $0x18] sm:$0xff] %v848
          %865 = vst [vmem:[#allocation2 + $0x20] sm:$0xff] %v849
          %866 = vst [vmem:[#allocation2 + $0x28] sm:$0xff] %v850
          %867 = vst [vmem:[#allocation2 + $0x30] sm:$0xff] %v851
          %868 = vst [vmem:[#allocation2 + $0x38] sm:$0xff] %v852
          %869 = vst [vmem:[#allocation2 + $0x40] sm:$0xff] %v853
          %870 = vst [vmem:[#allocation2 + $0x48] sm:$0xff] %v854
          %871 = vst [vmem:[#allocation2 + $0x50] sm:$0xff] %v855
          %872 = vst [vmem:[#allocation2 + $0x58] sm:$0xff] %v856
          %873 = vst [vmem:[#allocation2 + $0x60] sm:$0xff] %v857
          %874 = vst [vmem:[#allocation2 + $0x68] sm:$0xff] %v858
          %875 = vst [vmem:[#allocation2 + $0x70] sm:$0xff] %v859
          %876 = vst [vmem:[#allocation2 + $0x78] sm:$0xff] %v860
          %877 = vst [vmem:[#allocation3] sm:$0xff] 0.0
          %878 = vst [vmem:[#allocation3 + $0x8] sm:$0xff] 0.0
          %879 = vst [vmem:[#allocation3 + $0x10] sm:$0xff] 0.0
          %880 = vst [vmem:[#allocation3 + $0x18] sm:$0xff] 0.0
          %881 = vst [vmem:[#allocation3 + $0x20] sm:$0xff] 0.0
          %882 = vst [vmem:[#allocation3 + $0x28] sm:$0xff] 0.0
          %883 = vst [vmem:[#allocation3 + $0x30] sm:$0xff] 0.0
          %884 = vst [vmem:[#allocation3 + $0x38] sm:$0xff] 0.0
          %885 = vst [vmem:[#allocation3 + $0x40] sm:$0xff] 0.0
          %886 = vst [vmem:[#allocation3 + $0x48] sm:$0xff] 0.0
          %887 = vst [vmem:[#allocation3 + $0x50] sm:$0xff] 0.0
          %888 = vst [vmem:[#allocation3 + $0x58] sm:$0xff] 0.0
          %889 = vst [vmem:[#allocation3 + $0x60] sm:$0xff] 0.0
          %890 = vst [vmem:[#allocation3 + $0x68] sm:$0xff] 0.0
          %891 = vst [vmem:[#allocation3 + $0x70] sm:$0xff] 0.0
          %892 = vst [vmem:[#allocation3 + $0x78] sm:$0xff] 0.0
          %893 = vst [vmem:[#allocation3 + $0x80] sm:$0xff] 0.0
          %894 = vst [vmem:[#allocation3 + $0x88] sm:$0xff] 0.0
          %895 = vst [vmem:[#allocation3 + $0x90] sm:$0xff] 0.0
          %896 = vst [vmem:[#allocation3 + $0x98] sm:$0xff] 0.0
          %897 = vst [vmem:[#allocation3 + $0xa0] sm:$0xff] 0.0
          %898 = vst [vmem:[#allocation3 + $0xa8] sm:$0xff] 0.0
          %899 = vst [vmem:[#allocation3 + $0xb0] sm:$0xff] 0.0
          %900 = vst [vmem:[#allocation3 + $0xb8] sm:$0xff] 0.0
          %901 = vst [vmem:[#allocation3 + $0xc0] sm:$0xff] 0.0
          %902 = vst [vmem:[#allocation3 + $0xc8] sm:$0xff] 0.0
          %903 = vst [vmem:[#allocation3 + $0xd0] sm:$0xff] 0.0
          %904 = vst [vmem:[#allocation3 + $0xd8] sm:$0xff] 0.0
          %905 = vst [vmem:[#allocation3 + $0xe0] sm:$0xff] 0.0
          %906 = vst [vmem:[#allocation3 + $0xe8] sm:$0xff] 0.0
          %907 = vst [vmem:[#allocation3 + $0xf0] sm:$0xff] 0.0
          %908 = vst [vmem:[#allocation3 + $0xf8] sm:$0xff] 0.0
        $region64: #{tpu_custom_call.1} parent=47 // pred_fallthru
          _
        %v909 = vld [vmem:[#allocation2] sm:$0xff]
        %v910 = vld [vmem:[#allocation2 + $0x8] sm:$0xff]
        %v911 = vld [vmem:[#allocation2 + $0x10] sm:$0xff]
        %v912 = vld [vmem:[#allocation2 + $0x18] sm:$0xff]
        %v913 = vld [vmem:[#allocation2 + $0x20] sm:$0xff]
        %v914 = vld [vmem:[#allocation2 + $0x28] sm:$0xff]
        %v915 = vld [vmem:[#allocation2 + $0x30] sm:$0xff]
        %v916 = vld [vmem:[#allocation2 + $0x38] sm:$0xff]
        %v917 = vld [vmem:[#allocation2 + $0x40] sm:$0xff]
        %v918 = vld [vmem:[#allocation2 + $0x48] sm:$0xff]
        %v919 = vld [vmem:[#allocation2 + $0x50] sm:$0xff]
        %v920 = vld [vmem:[#allocation2 + $0x58] sm:$0xff]
        %v921 = vld [vmem:[#allocation2 + $0x60] sm:$0xff]
        %v922 = vld [vmem:[#allocation2 + $0x68] sm:$0xff]
        %v923 = vld [vmem:[#allocation2 + $0x70] sm:$0xff]
        %v924 = vld [vmem:[#allocation2 + $0x78] sm:$0xff]
        %v925 = vld [vmem:[#allocation7] sm:$0xff]
        %v926 = vld [vmem:[#allocation7 + $0x8] sm:$0xff]
        %v927 = vld [vmem:[#allocation7 + $0x10] sm:$0xff]
        %v928 = vld [vmem:[#allocation7 + $0x18] sm:$0xff]
        %v929 = vld [vmem:[#allocation7 + $0x20] sm:$0xff]
        %v930 = vld [vmem:[#allocation7 + $0x28] sm:$0xff]
        %v931 = vld [vmem:[#allocation7 + $0x30] sm:$0xff]
        %v932 = vld [vmem:[#allocation7 + $0x38] sm:$0xff]
        %v933 = vld [vmem:[#allocation7 + $0x40] sm:$0xff]
        %v934 = vld [vmem:[#allocation7 + $0x48] sm:$0xff]
        %v935 = vld [vmem:[#allocation7 + $0x50] sm:$0xff]
        %v936 = vld [vmem:[#allocation7 + $0x58] sm:$0xff]
        %v937 = vld [vmem:[#allocation7 + $0x60] sm:$0xff]
        %v938 = vld [vmem:[#allocation7 + $0x68] sm:$0xff]
        %v939 = vld [vmem:[#allocation7 + $0x70] sm:$0xff]
        %v940 = vld [vmem:[#allocation7 + $0x78] sm:$0xff]
        %v941 = vld [vmem:[%s373] sm:$0x3]
        %v943 = vlaneseq
        %v944 = vshrl.u32 %v943, 7
        %v945 = vsub.s32 0, %v944
        %v946 = vrot.slane %v941, %v945
        %v947 = vlaneseq
        %v948 = vshrl.u32 %v947, 7
        %v949 = vsub.s32 1, %v948
        %v950 = vrot.slane %v941, %v949
        %v969 = vunpack.c.l.b16 %v925
        %v970 = vunpack.c.h.b16 %v925
        %v971 = vunpack.c.l.b16 %v926
        %v972 = vunpack.c.h.b16 %v926
        %v973 = vunpack.c.l.b16 %v927
        %v974 = vunpack.c.h.b16 %v927
        %v975 = vunpack.c.l.b16 %v928
        %v976 = vunpack.c.h.b16 %v928
        %v977 = vunpack.c.l.b16 %v929
        %v978 = vunpack.c.h.b16 %v929
        %v979 = vunpack.c.l.b16 %v930
        %v980 = vunpack.c.h.b16 %v930
        %v981 = vunpack.c.l.b16 %v931
        %v982 = vunpack.c.h.b16 %v931
        %v983 = vunpack.c.l.b16 %v932
        %v984 = vunpack.c.h.b16 %v932
        %v985 = vunpack.c.l.b16 %v933
        %v986 = vunpack.c.h.b16 %v933
        %v987 = vunpack.c.l.b16 %v934
        %v988 = vunpack.c.h.b16 %v934
        %v989 = vunpack.c.l.b16 %v935
        %v990 = vunpack.c.h.b16 %v935
        %v991 = vunpack.c.l.b16 %v936
        %v992 = vunpack.c.h.b16 %v936
        %v993 = vunpack.c.l.b16 %v937
        %v994 = vunpack.c.h.b16 %v937
        %v995 = vunpack.c.l.b16 %v938
        %v996 = vunpack.c.h.b16 %v938
        %v997 = vunpack.c.l.b16 %v939
        %v998 = vunpack.c.h.b16 %v939
        %v999 = vunpack.c.l.b16 %v940
        %v1000 = vunpack.c.h.b16 %v940
        %v1001 = vpack.c.b16 %v971, %v969
        %v1002 = vpack.c.b16 %v972, %v970
        %v1003 = vpack.c.b16 %v975, %v973
        %v1004 = vpack.c.b16 %v976, %v974
        %v1005 = vpack.c.b16 %v979, %v977
        %v1006 = vpack.c.b16 %v980, %v978
        %v1007 = vpack.c.b16 %v983, %v981
        %v1008 = vpack.c.b16 %v984, %v982
        %v1009 = vpack.c.b16 %v987, %v985
        %v1010 = vpack.c.b16 %v988, %v986
        %v1011 = vpack.c.b16 %v991, %v989
        %v1012 = vpack.c.b16 %v992, %v990
        %v1013 = vpack.c.b16 %v995, %v993
        %v1014 = vpack.c.b16 %v996, %v994
        %v1015 = vpack.c.b16 %v999, %v997
        %v1016 = vpack.c.b16 %v1000, %v998
        %1033 = vmatprep.subr.bf16.mxu0 %v1002
        %1034 = vmatpush1.bf16.msra.mxu0 %v1001
        %1035 = vmatprep.subr.bf16.mxu0 %v1004
        %1036 = vmatpush1.bf16.msra.mxu0 %v1003
        %1037 = vmatprep.subr.bf16.mxu0 %v1006
        %1038 = vmatpush1.bf16.msra.mxu0 %v1005
        %1039 = vmatprep.subr.bf16.mxu0 %v1008
        %1040 = vmatpush1.bf16.msra.mxu0 %v1007
        %1041 = vmatprep.subr.bf16.mxu0 %v1010
        %1042 = vmatpush1.bf16.msra.mxu0 %v1009
        %1043 = vmatprep.subr.bf16.mxu0 %v1012
        %1044 = vmatpush1.bf16.msra.mxu0 %v1011
        %1045 = vmatprep.subr.bf16.mxu0 %v1014
        %1046 = vmatpush1.bf16.msra.mxu0 %v1013
        %1047 = vmatprep.subr.bf16.mxu0 %v1016
        %1048 = vmatpush1.bf16.msra.mxu0 %v1015
        %1049 = vmatprep.subr.bf16.mxu0 0
        %1050 = vmatpush1.bf16.msra.mxu0 0
        %1051 = vmatprep.subr.bf16.mxu0 0
        %1052 = vmatpush1.bf16.msra.mxu0 0
        %1053 = vmatprep.subr.bf16.mxu0 0
        %1054 = vmatpush1.bf16.msra.mxu0 0
        %1055 = vmatprep.subr.bf16.mxu0 0
        %1056 = vmatpush1.bf16.msra.mxu0 0
        %1057 = vmatprep.subr.bf16.mxu0 0
        %1058 = vmatpush1.bf16.msra.mxu0 0
        %1059 = vmatprep.subr.bf16.mxu0 0
        %1060 = vmatpush1.bf16.msra.mxu0 0
        %1061 = vmatprep.subr.bf16.mxu0 0
        %1062 = vmatpush1.bf16.msra.mxu0 0
        %1063 = vmatprep.subr.bf16.mxu0 0
        %1064 = vmatpush1.bf16.msra.mxu0 0
        %1065 = vmatprep.mubr.bf16.mxu0 0
        %1066 = vmatmul.mubr.bf16.gmra.mrb[0].mxu0 %v909
        %v1067 = vpop.f32.mrb[0].mxu0
        %v1068 = vadd.f32 %v946, %v1067
        %v1069 = vpop.f32.mrb[0].mxu0
        %v1070 = vadd.f32 %v950, %v1069
        %v1071 = vpop.f32.mrb[0].mxu0
        %v1072 = vadd.f32 %v946, %v1071
        %v1073 = vpop.f32.mrb[0].mxu0
        %v1074 = vadd.f32 %v950, %v1073
        %1075 = vmatprep.mubr.bf16.mxu0 0
        %1076 = vmatmul.mubr.bf16.gmra.mrb[0].mxu0 %v910
        %v1077 = vpop.f32.mrb[0].mxu0
        %v1078 = vadd.f32 %v946, %v1077
        %v1079 = vpop.f32.mrb[0].mxu0
        %v1080 = vadd.f32 %v950, %v1079
        %v1081 = vpop.f32.mrb[0].mxu0
        %v1082 = vadd.f32 %v946, %v1081
        %v1083 = vpop.f32.mrb[0].mxu0
        %v1084 = vadd.f32 %v950, %v1083
        %1085 = vmatprep.mubr.bf16.mxu0 0
        %1086 = vmatmul.mubr.bf16.gmra.mrb[0].mxu0 %v911
        %v1087 = vpop.f32.mrb[0].mxu0
        %v1088 = vadd.f32 %v946, %v1087
        %v1089 = vpop.f32.mrb[0].mxu0
        %v1090 = vadd.f32 %v950, %v1089
        %v1091 = vpop.f32.mrb[0].mxu0
        %v1092 = vadd.f32 %v946, %v1091
        %v1093 = vpop.f32.mrb[0].mxu0
        %v1094 = vadd.f32 %v950, %v1093
        %1095 = vmatprep.mubr.bf16.mxu0 0
        %1096 = vmatmul.mubr.bf16.gmra.mrb[0].mxu0 %v912
        %v1097 = vpop.f32.mrb[0].mxu0
        %v1098 = vadd.f32 %v946, %v1097
        %v1099 = vpop.f32.mrb[0].mxu0
        %v1100 = vadd.f32 %v950, %v1099
        %v1101 = vpop.f32.mrb[0].mxu0
        %v1102 = vadd.f32 %v946, %v1101
        %v1103 = vpop.f32.mrb[0].mxu0
        %v1104 = vadd.f32 %v950, %v1103
        %1105 = vmatprep.mubr.bf16.mxu0 0
        %1106 = vmatmul.mubr.bf16.gmra.mrb[0].mxu0 %v913
        %v1107 = vpop.f32.mrb[0].mxu0
        %v1108 = vadd.f32 %v946, %v1107
        %v1109 = vpop.f32.mrb[0].mxu0
        %v1110 = vadd.f32 %v950, %v1109
        %v1111 = vpop.f32.mrb[0].mxu0
        %v1112 = vadd.f32 %v946, %v1111
        %v1113 = vpop.f32.mrb[0].mxu0
        %v1114 = vadd.f32 %v950, %v1113
        %1115 = vmatprep.mubr.bf16.mxu0 0
        %1116 = vmatmul.mubr.bf16.gmra.mrb[0].mxu0 %v914
        %v1117 = vpop.f32.mrb[0].mxu0
        %v1118 = vadd.f32 %v946, %v1117
        %v1119 = vpop.f32.mrb[0].mxu0
        %v1120 = vadd.f32 %v950, %v1119
        %v1121 = vpop.f32.mrb[0].mxu0
        %v1122 = vadd.f32 %v946, %v1121
        %v1123 = vpop.f32.mrb[0].mxu0
        %v1124 = vadd.f32 %v950, %v1123
        %1125 = vmatprep.mubr.bf16.mxu0 0
        %1126 = vmatmul.mubr.bf16.gmra.mrb[0].mxu0 %v915
        %v1127 = vpop.f32.mrb[0].mxu0
        %v1128 = vadd.f32 %v946, %v1127
        %v1129 = vpop.f32.mrb[0].mxu0
        %v1130 = vadd.f32 %v950, %v1129
        %v1131 = vpop.f32.mrb[0].mxu0
        %v1132 = vadd.f32 %v946, %v1131
        %v1133 = vpop.f32.mrb[0].mxu0
        %v1134 = vadd.f32 %v950, %v1133
        %1135 = vmatprep.mubr.bf16.mxu0 0
        %1136 = vmatmul.mubr.bf16.gmra.mrb[0].mxu0 %v916
        %v1137 = vpop.f32.mrb[0].mxu0
        %v1138 = vadd.f32 %v946, %v1137
        %v1139 = vpop.f32.mrb[0].mxu0
        %v1140 = vadd.f32 %v950, %v1139
        %v1141 = vpop.f32.mrb[0].mxu0
        %v1142 = vadd.f32 %v946, %v1141
        %v1143 = vpop.f32.mrb[0].mxu0
        %v1144 = vadd.f32 %v950, %v1143
        %1145 = vmatprep.mubr.bf16.mxu0 0
        %1146 = vmatmul.mubr.bf16.gmra.mrb[0].mxu0 %v917
        %v1147 = vpop.f32.mrb[0].mxu0
        %v1148 = vadd.f32 %v946, %v1147
        %v1149 = vpop.f32.mrb[0].mxu0
        %v1150 = vadd.f32 %v950, %v1149
        %v1151 = vpop.f32.mrb[0].mxu0
        %v1152 = vadd.f32 %v946, %v1151
        %v1153 = vpop.f32.mrb[0].mxu0
        %v1154 = vadd.f32 %v950, %v1153
        %1155 = vmatprep.mubr.bf16.mxu0 0
        %1156 = vmatmul.mubr.bf16.gmra.mrb[0].mxu0 %v918
        %v1157 = vpop.f32.mrb[0].mxu0
        %v1158 = vadd.f32 %v946, %v1157
        %v1159 = vpop.f32.mrb[0].mxu0
        %v1160 = vadd.f32 %v950, %v1159
        %v1161 = vpop.f32.mrb[0].mxu0
        %v1162 = vadd.f32 %v946, %v1161
        %v1163 = vpop.f32.mrb[0].mxu0
        %v1164 = vadd.f32 %v950, %v1163
        %1165 = vmatprep.mubr.bf16.mxu0 0
        %1166 = vmatmul.mubr.bf16.gmra.mrb[0].mxu0 %v919
        %v1167 = vpop.f32.mrb[0].mxu0
        %v1168 = vadd.f32 %v946, %v1167
        %v1169 = vpop.f32.mrb[0].mxu0
        %v1170 = vadd.f32 %v950, %v1169
        %v1171 = vpop.f32.mrb[0].mxu0
        %v1172 = vadd.f32 %v946, %v1171
        %v1173 = vpop.f32.mrb[0].mxu0
        %v1174 = vadd.f32 %v950, %v1173
        %1175 = vmatprep.mubr.bf16.mxu0 0
        %1176 = vmatmul.mubr.bf16.gmra.mrb[0].mxu0 %v920
        %v1177 = vpop.f32.mrb[0].mxu0
        %v1178 = vadd.f32 %v946, %v1177
        %v1179 = vpop.f32.mrb[0].mxu0
        %v1180 = vadd.f32 %v950, %v1179
        %v1181 = vpop.f32.mrb[0].mxu0
        %v1182 = vadd.f32 %v946, %v1181
        %v1183 = vpop.f32.mrb[0].mxu0
        %v1184 = vadd.f32 %v950, %v1183
        %1185 = vmatprep.mubr.bf16.mxu0 0
        %1186 = vmatmul.mubr.bf16.gmra.mrb[0].mxu0 %v921
        %v1187 = vpop.f32.mrb[0].mxu0
        %v1188 = vadd.f32 %v946, %v1187
        %v1189 = vpop.f32.mrb[0].mxu0
        %v1190 = vadd.f32 %v950, %v1189
        %v1191 = vpop.f32.mrb[0].mxu0
        %v1192 = vadd.f32 %v946, %v1191
        %v1193 = vpop.f32.mrb[0].mxu0
        %v1194 = vadd.f32 %v950, %v1193
        %1195 = vmatprep.mubr.bf16.mxu0 0
        %1196 = vmatmul.mubr.bf16.gmra.mrb[0].mxu0 %v922
        %v1197 = vpop.f32.mrb[0].mxu0
        %v1198 = vadd.f32 %v946, %v1197
        %v1199 = vpop.f32.mrb[0].mxu0
        %v1200 = vadd.f32 %v950, %v1199
        %v1201 = vpop.f32.mrb[0].mxu0
        %v1202 = vadd.f32 %v946, %v1201
        %v1203 = vpop.f32.mrb[0].mxu0
        %v1204 = vadd.f32 %v950, %v1203
        %1205 = vmatprep.mubr.bf16.mxu0 0
        %1206 = vmatmul.mubr.bf16.gmra.mrb[0].mxu0 %v923
        %v1207 = vpop.f32.mrb[0].mxu0
        %v1208 = vadd.f32 %v946, %v1207
        %v1209 = vpop.f32.mrb[0].mxu0
        %v1210 = vadd.f32 %v950, %v1209
        %v1211 = vpop.f32.mrb[0].mxu0
        %v1212 = vadd.f32 %v946, %v1211
        %v1213 = vpop.f32.mrb[0].mxu0
        %v1214 = vadd.f32 %v950, %v1213
        %1215 = vmatprep.mubr.bf16.mxu0 0
        %1216 = vmatmul.mubr.bf16.gmra.mrb[0].mxu0 %v924
        %v1217 = vpop.f32.mrb[0].mxu0
        %v1218 = vadd.f32 %v946, %v1217
        %v1219 = vpop.f32.mrb[0].mxu0
        %v1220 = vadd.f32 %v950, %v1219
        %v1221 = vpop.f32.mrb[0].mxu0
        %v1222 = vadd.f32 %v946, %v1221
        %v1223 = vpop.f32.mrb[0].mxu0
        %v1224 = vadd.f32 %v950, %v1223
        %1225 = vdwg.mxu0
        %v1226 = vmul.f32 %v1068, 0.5
        %v1227 = vmul.f32 %v1070, 0.5
        %v1228 = vmul.f32 %v1072, 0.5
        %v1229 = vmul.f32 %v1074, 0.5
        %v1230 = vmul.f32 %v1078, 0.5
        %v1231 = vmul.f32 %v1080, 0.5
        %v1232 = vmul.f32 %v1082, 0.5
        %v1233 = vmul.f32 %v1084, 0.5
        %v1234 = vmul.f32 %v1088, 0.5
        %v1235 = vmul.f32 %v1090, 0.5
        %v1236 = vmul.f32 %v1092, 0.5
        %v1237 = vmul.f32 %v1094, 0.5
        %v1238 = vmul.f32 %v1098, 0.5
        %v1239 = vmul.f32 %v1100, 0.5
        %v1240 = vmul.f32 %v1102, 0.5
        %v1241 = vmul.f32 %v1104, 0.5
        %v1242 = vmul.f32 %v1108, 0.5
        %v1243 = vmul.f32 %v1110, 0.5
        %v1244 = vmul.f32 %v1112, 0.5
        %v1245 = vmul.f32 %v1114, 0.5
        %v1246 = vmul.f32 %v1118, 0.5
        %v1247 = vmul.f32 %v1120, 0.5
        %v1248 = vmul.f32 %v1122, 0.5
        %v1249 = vmul.f32 %v1124, 0.5
        %v1250 = vmul.f32 %v1128, 0.5
        %v1251 = vmul.f32 %v1130, 0.5
        %v1252 = vmul.f32 %v1132, 0.5
        %v1253 = vmul.f32 %v1134, 0.5
        %v1254 = vmul.f32 %v1138, 0.5
        %v1255 = vmul.f32 %v1140, 0.5
        %v1256 = vmul.f32 %v1142, 0.5
        %v1257 = vmul.f32 %v1144, 0.5
        %v1258 = vmul.f32 %v1148, 0.5
        %v1259 = vmul.f32 %v1150, 0.5
        %v1260 = vmul.f32 %v1152, 0.5
        %v1261 = vmul.f32 %v1154, 0.5
        %v1262 = vmul.f32 %v1158, 0.5
        %v1263 = vmul.f32 %v1160, 0.5
        %v1264 = vmul.f32 %v1162, 0.5
        %v1265 = vmul.f32 %v1164, 0.5
        %v1266 = vmul.f32 %v1168, 0.5
        %v1267 = vmul.f32 %v1170, 0.5
        %v1268 = vmul.f32 %v1172, 0.5
        %v1269 = vmul.f32 %v1174, 0.5
        %v1270 = vmul.f32 %v1178, 0.5
        %v1271 = vmul.f32 %v1180, 0.5
        %v1272 = vmul.f32 %v1182, 0.5
        %v1273 = vmul.f32 %v1184, 0.5
        %v1274 = vmul.f32 %v1188, 0.5
        %v1275 = vmul.f32 %v1190, 0.5
        %v1276 = vmul.f32 %v1192, 0.5
        %v1277 = vmul.f32 %v1194, 0.5
        %v1278 = vmul.f32 %v1198, 0.5
        %v1279 = vmul.f32 %v1200, 0.5
        %v1280 = vmul.f32 %v1202, 0.5
        %v1281 = vmul.f32 %v1204, 0.5
        %v1282 = vmul.f32 %v1208, 0.5
        %v1283 = vmul.f32 %v1210, 0.5
        %v1284 = vmul.f32 %v1212, 0.5
        %v1285 = vmul.f32 %v1214, 0.5
        %v1286 = vmul.f32 %v1218, 0.5
        %v1287 = vmul.f32 %v1220, 0.5
        %v1288 = vmul.f32 %v1222, 0.5
        %v1289 = vmul.f32 %v1224, 0.5
        %v1290 = vmul.f32 %v1068, 0.70710677
        %v1291 = vmul.f32 %v1070, 0.70710677
        %v1292 = vmul.f32 %v1072, 0.70710677
        %v1293 = vmul.f32 %v1074, 0.70710677
        %v1294 = vmul.f32 %v1078, 0.70710677
        %v1295 = vmul.f32 %v1080, 0.70710677
        %v1296 = vmul.f32 %v1082, 0.70710677
        %v1297 = vmul.f32 %v1084, 0.70710677
        %v1298 = vmul.f32 %v1088, 0.70710677
        %v1299 = vmul.f32 %v1090, 0.70710677
        %v1300 = vmul.f32 %v1092, 0.70710677
        %v1301 = vmul.f32 %v1094, 0.70710677
        %v1302 = vmul.f32 %v1098, 0.70710677
        %v1303 = vmul.f32 %v1100, 0.70710677
        %v1304 = vmul.f32 %v1102, 0.70710677
        %v1305 = vmul.f32 %v1104, 0.70710677
        %v1306 = vmul.f32 %v1108, 0.70710677
        %v1307 = vmul.f32 %v1110, 0.70710677
        %v1308 = vmul.f32 %v1112, 0.70710677
        %v1309 = vmul.f32 %v1114, 0.70710677
        %v1310 = vmul.f32 %v1118, 0.70710677
        %v1311 = vmul.f32 %v1120, 0.70710677
        %v1312 = vmul.f32 %v1122, 0.70710677
        %v1313 = vmul.f32 %v1124, 0.70710677
        %v1314 = vmul.f32 %v1128, 0.70710677
        %v1315 = vmul.f32 %v1130, 0.70710677
        %v1316 = vmul.f32 %v1132, 0.70710677
        %v1317 = vmul.f32 %v1134, 0.70710677
        %v1318 = vmul.f32 %v1138, 0.70710677
        %v1319 = vmul.f32 %v1140, 0.70710677
        %v1320 = vmul.f32 %v1142, 0.70710677
        %v1321 = vmul.f32 %v1144, 0.70710677
        %v1322 = vmul.f32 %v1148, 0.70710677
        %v1323 = vmul.f32 %v1150, 0.70710677
        %v1324 = vmul.f32 %v1152, 0.70710677
        %v1325 = vmul.f32 %v1154, 0.70710677
        %v1326 = vmul.f32 %v1158, 0.70710677
        %v1327 = vmul.f32 %v1160, 0.70710677
        %v1328 = vmul.f32 %v1162, 0.70710677
        %v1329 = vmul.f32 %v1164, 0.70710677
        %v1330 = vmul.f32 %v1168, 0.70710677
        %v1331 = vmul.f32 %v1170, 0.70710677
        %v1332 = vmul.f32 %v1172, 0.70710677
        %v1333 = vmul.f32 %v1174, 0.70710677
        %v1334 = vmul.f32 %v1178, 0.70710677
        %v1335 = vmul.f32 %v1180, 0.70710677
        %v1336 = vmul.f32 %v1182, 0.70710677
        %v1337 = vmul.f32 %v1184, 0.70710677
        %v1338 = vmul.f32 %v1188, 0.70710677
        %v1339 = vmul.f32 %v1190, 0.70710677
        %v1340 = vmul.f32 %v1192, 0.70710677
        %v1341 = vmul.f32 %v1194, 0.70710677
        %v1342 = vmul.f32 %v1198, 0.70710677
        %v1343 = vmul.f32 %v1200, 0.70710677
        %v1344 = vmul.f32 %v1202, 0.70710677
        %v1345 = vmul.f32 %v1204, 0.70710677
        %v1346 = vmul.f32 %v1208, 0.70710677
        %v1347 = vmul.f32 %v1210, 0.70710677
        %v1348 = vmul.f32 %v1212, 0.70710677
        %v1349 = vmul.f32 %v1214, 0.70710677
        %v1350 = vmul.f32 %v1218, 0.70710677
        %v1351 = vmul.f32 %v1220, 0.70710677
        %v1352 = vmul.f32 %v1222, 0.70710677
        %v1353 = vmul.f32 %v1224, 0.70710677
        %v1354 = vand.u32 2147483647, %v1290
        %v1355 = vand.u32 2147483647, %v1291
        %v1356 = vand.u32 2147483647, %v1292
        %v1357 = vand.u32 2147483647, %v1293
        %v1358 = vand.u32 2147483647, %v1294
        %v1359 = vand.u32 2147483647, %v1295
        %v1360 = vand.u32 2147483647, %v1296
        %v1361 = vand.u32 2147483647, %v1297
        %v1362 = vand.u32 2147483647, %v1298
        %v1363 = vand.u32 2147483647, %v1299
        %v1364 = vand.u32 2147483647, %v1300
        %v1365 = vand.u32 2147483647, %v1301
        %v1366 = vand.u32 2147483647, %v1302
        %v1367 = vand.u32 2147483647, %v1303
        %v1368 = vand.u32 2147483647, %v1304
        %v1369 = vand.u32 2147483647, %v1305
        %v1370 = vand.u32 2147483647, %v1306
        %v1371 = vand.u32 2147483647, %v1307
        %v1372 = vand.u32 2147483647, %v1308
        %v1373 = vand.u32 2147483647, %v1309
        %v1374 = vand.u32 2147483647, %v1310
        %v1375 = vand.u32 2147483647, %v1311
        %v1376 = vand.u32 2147483647, %v1312
        %v1377 = vand.u32 2147483647, %v1313
        %v1378 = vand.u32 2147483647, %v1314
        %v1379 = vand.u32 2147483647, %v1315
        %v1380 = vand.u32 2147483647, %v1316
        %v1381 = vand.u32 2147483647, %v1317
        %v1382 = vand.u32 2147483647, %v1318
        %v1383 = vand.u32 2147483647, %v1319
        %v1384 = vand.u32 2147483647, %v1320
        %v1385 = vand.u32 2147483647, %v1321
        %v1386 = vand.u32 2147483647, %v1322
        %v1387 = vand.u32 2147483647, %v1323
        %v1388 = vand.u32 2147483647, %v1324
        %v1389 = vand.u32 2147483647, %v1325
        %v1390 = vand.u32 2147483647, %v1326
        %v1391 = vand.u32 2147483647, %v1327
        %v1392 = vand.u32 2147483647, %v1328
        %v1393 = vand.u32 2147483647, %v1329
        %v1394 = vand.u32 2147483647, %v1330
        %v1395 = vand.u32 2147483647, %v1331
        %v1396 = vand.u32 2147483647, %v1332
        %v1397 = vand.u32 2147483647, %v1333
        %v1398 = vand.u32 2147483647, %v1334
        %v1399 = vand.u32 2147483647, %v1335
        %v1400 = vand.u32 2147483647, %v1336
        %v1401 = vand.u32 2147483647, %v1337
        %v1402 = vand.u32 2147483647, %v1338
        %v1403 = vand.u32 2147483647, %v1339
        %v1404 = vand.u32 2147483647, %v1340
        %v1405 = vand.u32 2147483647, %v1341
        %v1406 = vand.u32 2147483647, %v1342
        %v1407 = vand.u32 2147483647, %v1343
        %v1408 = vand.u32 2147483647, %v1344
        %v1409 = vand.u32 2147483647, %v1345
        %v1410 = vand.u32 2147483647, %v1346
        %v1411 = vand.u32 2147483647, %v1347
        %v1412 = vand.u32 2147483647, %v1348
        %v1413 = vand.u32 2147483647, %v1349
        %v1414 = vand.u32 2147483647, %v1350
        %v1415 = vand.u32 2147483647, %v1351
        %v1416 = vand.u32 2147483647, %v1352
        %v1417 = vand.u32 2147483647, %v1353
        %v1418 = vmul.f32 %v1354, 0.3275911
        %v1419 = vmul.f32 %v1355, 0.3275911
        %v1420 = vmul.f32 %v1356, 0.3275911
        %v1421 = vmul.f32 %v1357, 0.3275911
        %v1422 = vmul.f32 %v1358, 0.3275911
        %v1423 = vmul.f32 %v1359, 0.3275911
        %v1424 = vmul.f32 %v1360, 0.3275911
        %v1425 = vmul.f32 %v1361, 0.3275911
        %v1426 = vmul.f32 %v1362, 0.3275911
        %v1427 = vmul.f32 %v1363, 0.3275911
        %v1428 = vmul.f32 %v1364, 0.3275911
        %v1429 = vmul.f32 %v1365, 0.3275911
        %v1430 = vmul.f32 %v1366, 0.3275911
        %v1431 = vmul.f32 %v1367, 0.3275911
        %v1432 = vmul.f32 %v1368, 0.3275911
        %v1433 = vmul.f32 %v1369, 0.3275911
        %v1434 = vmul.f32 %v1370, 0.3275911
        %v1435 = vmul.f32 %v1371, 0.3275911
        %v1436 = vmul.f32 %v1372, 0.3275911
        %v1437 = vmul.f32 %v1373, 0.3275911
        %v1438 = vmul.f32 %v1374, 0.3275911
        %v1439 = vmul.f32 %v1375, 0.3275911
        %v1440 = vmul.f32 %v1376, 0.3275911
        %v1441 = vmul.f32 %v1377, 0.3275911
        %v1442 = vmul.f32 %v1378, 0.3275911
        %v1443 = vmul.f32 %v1379, 0.3275911
        %v1444 = vmul.f32 %v1380, 0.3275911
        %v1445 = vmul.f32 %v1381, 0.3275911
        %v1446 = vmul.f32 %v1382, 0.3275911
        %v1447 = vmul.f32 %v1383, 0.3275911
        %v1448 = vmul.f32 %v1384, 0.3275911
        %v1449 = vmul.f32 %v1385, 0.3275911
        %v1450 = vmul.f32 %v1386, 0.3275911
        %v1451 = vmul.f32 %v1387, 0.3275911
        %v1452 = vmul.f32 %v1388, 0.3275911
        %v1453 = vmul.f32 %v1389, 0.3275911
        %v1454 = vmul.f32 %v1390, 0.3275911
        %v1455 = vmul.f32 %v1391, 0.3275911
        %v1456 = vmul.f32 %v1392, 0.3275911
        %v1457 = vmul.f32 %v1393, 0.3275911
        %v1458 = vmul.f32 %v1394, 0.3275911
        %v1459 = vmul.f32 %v1395, 0.3275911
        %v1460 = vmul.f32 %v1396, 0.3275911
        %v1461 = vmul.f32 %v1397, 0.3275911
        %v1462 = vmul.f32 %v1398, 0.3275911
        %v1463 = vmul.f32 %v1399, 0.3275911
        %v1464 = vmul.f32 %v1400, 0.3275911
        %v1465 = vmul.f32 %v1401, 0.3275911
        %v1466 = vmul.f32 %v1402, 0.3275911
        %v1467 = vmul.f32 %v1403, 0.3275911
        %v1468 = vmul.f32 %v1404, 0.3275911
        %v1469 = vmul.f32 %v1405, 0.3275911
        %v1470 = vmul.f32 %v1406, 0.3275911
        %v1471 = vmul.f32 %v1407, 0.3275911
        %v1472 = vmul.f32 %v1408, 0.3275911
        %v1473 = vmul.f32 %v1409, 0.3275911
        %v1474 = vmul.f32 %v1410, 0.3275911
        %v1475 = vmul.f32 %v1411, 0.3275911
        %v1476 = vmul.f32 %v1412, 0.3275911
        %v1477 = vmul.f32 %v1413, 0.3275911
        %v1478 = vmul.f32 %v1414, 0.3275911
        %v1479 = vmul.f32 %v1415, 0.3275911
        %v1480 = vmul.f32 %v1416, 0.3275911
        %v1481 = vmul.f32 %v1417, 0.3275911
        %v1482 = vadd.f32 %v1418, 1.0
        %v1483 = vadd.f32 %v1419, 1.0
        %v1484 = vadd.f32 %v1420, 1.0
        %v1485 = vadd.f32 %v1421, 1.0
        %v1486 = vadd.f32 %v1422, 1.0
        %v1487 = vadd.f32 %v1423, 1.0
        %v1488 = vadd.f32 %v1424, 1.0
        %v1489 = vadd.f32 %v1425, 1.0
        %v1490 = vadd.f32 %v1426, 1.0
        %v1491 = vadd.f32 %v1427, 1.0
        %v1492 = vadd.f32 %v1428, 1.0
        %v1493 = vadd.f32 %v1429, 1.0
        %v1494 = vadd.f32 %v1430, 1.0
        %v1495 = vadd.f32 %v1431, 1.0
        %v1496 = vadd.f32 %v1432, 1.0
        %v1497 = vadd.f32 %v1433, 1.0
        %v1498 = vadd.f32 %v1434, 1.0
        %v1499 = vadd.f32 %v1435, 1.0
        %v1500 = vadd.f32 %v1436, 1.0
        %v1501 = vadd.f32 %v1437, 1.0
        %v1502 = vadd.f32 %v1438, 1.0
        %v1503 = vadd.f32 %v1439, 1.0
        %v1504 = vadd.f32 %v1440, 1.0
        %v1505 = vadd.f32 %v1441, 1.0
        %v1506 = vadd.f32 %v1442, 1.0
        %v1507 = vadd.f32 %v1443, 1.0
        %v1508 = vadd.f32 %v1444, 1.0
        %v1509 = vadd.f32 %v1445, 1.0
        %v1510 = vadd.f32 %v1446, 1.0
        %v1511 = vadd.f32 %v1447, 1.0
        %v1512 = vadd.f32 %v1448, 1.0
        %v1513 = vadd.f32 %v1449, 1.0
        %v1514 = vadd.f32 %v1450, 1.0
        %v1515 = vadd.f32 %v1451, 1.0
        %v1516 = vadd.f32 %v1452, 1.0
        %v1517 = vadd.f32 %v1453, 1.0
        %v1518 = vadd.f32 %v1454, 1.0
        %v1519 = vadd.f32 %v1455, 1.0
        %v1520 = vadd.f32 %v1456, 1.0
        %v1521 = vadd.f32 %v1457, 1.0
        %v1522 = vadd.f32 %v1458, 1.0
        %v1523 = vadd.f32 %v1459, 1.0
        %v1524 = vadd.f32 %v1460, 1.0
        %v1525 = vadd.f32 %v1461, 1.0
        %v1526 = vadd.f32 %v1462, 1.0
        %v1527 = vadd.f32 %v1463, 1.0
        %v1528 = vadd.f32 %v1464, 1.0
        %v1529 = vadd.f32 %v1465, 1.0
        %v1530 = vadd.f32 %v1466, 1.0
        %v1531 = vadd.f32 %v1467, 1.0
        %v1532 = vadd.f32 %v1468, 1.0
        %v1533 = vadd.f32 %v1469, 1.0
        %v1534 = vadd.f32 %v1470, 1.0
        %v1535 = vadd.f32 %v1471, 1.0
        %v1536 = vadd.f32 %v1472, 1.0
        %v1537 = vadd.f32 %v1473, 1.0
        %v1538 = vadd.f32 %v1474, 1.0
        %v1539 = vadd.f32 %v1475, 1.0
        %v1540 = vadd.f32 %v1476, 1.0
        %v1541 = vadd.f32 %v1477, 1.0
        %v1542 = vadd.f32 %v1478, 1.0
        %v1543 = vadd.f32 %v1479, 1.0
        %v1544 = vadd.f32 %v1480, 1.0
        %v1545 = vadd.f32 %v1481, 1.0
        %v1546 = vrcp.pop %v1482
        %v1547 = vrcp.pop %v1483
        %v1548 = vrcp.pop %v1484
        %v1549 = vrcp.pop %v1485
        %v1550 = vrcp.pop %v1486
        %v1551 = vrcp.pop %v1487
        %v1552 = vrcp.pop %v1488
        %v1553 = vrcp.pop %v1489
        %v1554 = vrcp.pop %v1490
        %v1555 = vrcp.pop %v1491
        %v1556 = vrcp.pop %v1492
        %v1557 = vrcp.pop %v1493
        %v1558 = vrcp.pop %v1494
        %v1559 = vrcp.pop %v1495
        %v1560 = vrcp.pop %v1496
        %v1561 = vrcp.pop %v1497
        %v1562 = vrcp.pop %v1498
        %v1563 = vrcp.pop %v1499
        %v1564 = vrcp.pop %v1500
        %v1565 = vrcp.pop %v1501
        %v1566 = vrcp.pop %v1502
        %v1567 = vrcp.pop %v1503
        %v1568 = vrcp.pop %v1504
        %v1569 = vrcp.pop %v1505
        %v1570 = vrcp.pop %v1506
        %v1571 = vrcp.pop %v1507
        %v1572 = vrcp.pop %v1508
        %v1573 = vrcp.pop %v1509
        %v1574 = vrcp.pop %v1510
        %v1575 = vrcp.pop %v1511
        %v1576 = vrcp.pop %v1512
        %v1577 = vrcp.pop %v1513
        %v1578 = vrcp.pop %v1514
        %v1579 = vrcp.pop %v1515
        %v1580 = vrcp.pop %v1516
        %v1581 = vrcp.pop %v1517
        %v1582 = vrcp.pop %v1518
        %v1583 = vrcp.pop %v1519
        %v1584 = vrcp.pop %v1520
        %v1585 = vrcp.pop %v1521
        %v1586 = vrcp.pop %v1522
        %v1587 = vrcp.pop %v1523
        %v1588 = vrcp.pop %v1524
        %v1589 = vrcp.pop %v1525
        %v1590 = vrcp.pop %v1526
        %v1591 = vrcp.pop %v1527
        %v1592 = vrcp.pop %v1528
        %v1593 = vrcp.pop %v1529
        %v1594 = vrcp.pop %v1530
        %v1595 = vrcp.pop %v1531
        %v1596 = vrcp.pop %v1532
        %v1597 = vrcp.pop %v1533
        %v1598 = vrcp.pop %v1534
        %v1599 = vrcp.pop %v1535
        %v1600 = vrcp.pop %v1536
        %v1601 = vrcp.pop %v1537
        %v1602 = vrcp.pop %v1538
        %v1603 = vrcp.pop %v1539
        %v1604 = vrcp.pop %v1540
        %v1605 = vrcp.pop %v1541
        %v1606 = vrcp.pop %v1542
        %v1607 = vrcp.pop %v1543
        %v1608 = vrcp.pop %v1544
        %v1609 = vrcp.pop %v1545
        %v1610 = vmul.f32 %v1546, 1.0614054
        %v1611 = vmul.f32 %v1547, 1.0614054
        %v1612 = vmul.f32 %v1548, 1.0614054
        %v1613 = vmul.f32 %v1549, 1.0614054
        %v1614 = vmul.f32 %v1550, 1.0614054
        %v1615 = vmul.f32 %v1551, 1.0614054
        %v1616 = vmul.f32 %v1552, 1.0614054
        %v1617 = vmul.f32 %v1553, 1.0614054
        %v1618 = vmul.f32 %v1554, 1.0614054
        %v1619 = vmul.f32 %v1555, 1.0614054
        %v1620 = vmul.f32 %v1556, 1.0614054
        %v1621 = vmul.f32 %v1557, 1.0614054
        %v1622 = vmul.f32 %v1558, 1.0614054
        %v1623 = vmul.f32 %v1559, 1.0614054
        %v1624 = vmul.f32 %v1560, 1.0614054
        %v1625 = vmul.f32 %v1561, 1.0614054
        %v1626 = vmul.f32 %v1562, 1.0614054
        %v1627 = vmul.f32 %v1563, 1.0614054
        %v1628 = vmul.f32 %v1564, 1.0614054
        %v1629 = vmul.f32 %v1565, 1.0614054
        %v1630 = vmul.f32 %v1566, 1.0614054
        %v1631 = vmul.f32 %v1567, 1.0614054
        %v1632 = vmul.f32 %v1568, 1.0614054
        %v1633 = vmul.f32 %v1569, 1.0614054
        %v1634 = vmul.f32 %v1570, 1.0614054
        %v1635 = vmul.f32 %v1571, 1.0614054
        %v1636 = vmul.f32 %v1572, 1.0614054
        %v1637 = vmul.f32 %v1573, 1.0614054
        %v1638 = vmul.f32 %v1574, 1.0614054
        %v1639 = vmul.f32 %v1575, 1.0614054
        %v1640 = vmul.f32 %v1576, 1.0614054
        %v1641 = vmul.f32 %v1577, 1.0614054
        %v1642 = vmul.f32 %v1578, 1.0614054
        %v1643 = vmul.f32 %v1579, 1.0614054
        %v1644 = vmul.f32 %v1580, 1.0614054
        %v1645 = vmul.f32 %v1581, 1.0614054
        %v1646 = vmul.f32 %v1582, 1.0614054
        %v1647 = vmul.f32 %v1583, 1.0614054
        %v1648 = vmul.f32 %v1584, 1.0614054
        %v1649 = vmul.f32 %v1585, 1.0614054
        %v1650 = vmul.f32 %v1586, 1.0614054
        %v1651 = vmul.f32 %v1587, 1.0614054
        %v1652 = vmul.f32 %v1588, 1.0614054
        %v1653 = vmul.f32 %v1589, 1.0614054
        %v1654 = vmul.f32 %v1590, 1.0614054
        %v1655 = vmul.f32 %v1591, 1.0614054
        %v1656 = vmul.f32 %v1592, 1.0614054
        %v1657 = vmul.f32 %v1593, 1.0614054
        %v1658 = vmul.f32 %v1594, 1.0614054
        %v1659 = vmul.f32 %v1595, 1.0614054
        %v1660 = vmul.f32 %v1596, 1.0614054
        %v1661 = vmul.f32 %v1597, 1.0614054
        %v1662 = vmul.f32 %v1598, 1.0614054
        %v1663 = vmul.f32 %v1599, 1.0614054
        %v1664 = vmul.f32 %v1600, 1.0614054
        %v1665 = vmul.f32 %v1601, 1.0614054
        %v1666 = vmul.f32 %v1602, 1.0614054
        %v1667 = vmul.f32 %v1603, 1.0614054
        %v1668 = vmul.f32 %v1604, 1.0614054
        %v1669 = vmul.f32 %v1605, 1.0614054
        %v1670 = vmul.f32 %v1606, 1.0614054
        %v1671 = vmul.f32 %v1607, 1.0614054
        %v1672 = vmul.f32 %v1608, 1.0614054
        %v1673 = vmul.f32 %v1609, 1.0614054
        %v1674 = vadd.f32 %v1610, -1.4531521
        %v1675 = vadd.f32 %v1611, -1.4531521
        %v1676 = vadd.f32 %v1612, -1.4531521
        %v1677 = vadd.f32 %v1613, -1.4531521
        %v1678 = vadd.f32 %v1614, -1.4531521
        %v1679 = vadd.f32 %v1615, -1.4531521
        %v1680 = vadd.f32 %v1616, -1.4531521
        %v1681 = vadd.f32 %v1617, -1.4531521
        %v1682 = vadd.f32 %v1618, -1.4531521
        %v1683 = vadd.f32 %v1619, -1.4531521
        %v1684 = vadd.f32 %v1620, -1.4531521
        %v1685 = vadd.f32 %v1621, -1.4531521
        %v1686 = vadd.f32 %v1622, -1.4531521
        %v1687 = vadd.f32 %v1623, -1.4531521
        %v1688 = vadd.f32 %v1624, -1.4531521
        %v1689 = vadd.f32 %v1625, -1.4531521
        %v1690 = vadd.f32 %v1626, -1.4531521
        %v1691 = vadd.f32 %v1627, -1.4531521
        %v1692 = vadd.f32 %v1628, -1.4531521
        %v1693 = vadd.f32 %v1629, -1.4531521
        %v1694 = vadd.f32 %v1630, -1.4531521
        %v1695 = vadd.f32 %v1631, -1.4531521
        %v1696 = vadd.f32 %v1632, -1.4531521
        %v1697 = vadd.f32 %v1633, -1.4531521
        %v1698 = vadd.f32 %v1634, -1.4531521
        %v1699 = vadd.f32 %v1635, -1.4531521
        %v1700 = vadd.f32 %v1636, -1.4531521
        %v1701 = vadd.f32 %v1637, -1.4531521
        %v1702 = vadd.f32 %v1638, -1.4531521
        %v1703 = vadd.f32 %v1639, -1.4531521
        %v1704 = vadd.f32 %v1640, -1.4531521
        %v1705 = vadd.f32 %v1641, -1.4531521
        %v1706 = vadd.f32 %v1642, -1.4531521
        %v1707 = vadd.f32 %v1643, -1.4531521
        %v1708 = vadd.f32 %v1644, -1.4531521
        %v1709 = vadd.f32 %v1645, -1.4531521
        %v1710 = vadd.f32 %v1646, -1.4531521
        %v1711 = vadd.f32 %v1647, -1.4531521
        %v1712 = vadd.f32 %v1648, -1.4531521
        %v1713 = vadd.f32 %v1649, -1.4531521
        %v1714 = vadd.f32 %v1650, -1.4531521
        %v1715 = vadd.f32 %v1651, -1.4531521
        %v1716 = vadd.f32 %v1652, -1.4531521
        %v1717 = vadd.f32 %v1653, -1.4531521
        %v1718 = vadd.f32 %v1654, -1.4531521
        %v1719 = vadd.f32 %v1655, -1.4531521
        %v1720 = vadd.f32 %v1656, -1.4531521
        %v1721 = vadd.f32 %v1657, -1.4531521
        %v1722 = vadd.f32 %v1658, -1.4531521
        %v1723 = vadd.f32 %v1659, -1.4531521
        %v1724 = vadd.f32 %v1660, -1.4531521
        %v1725 = vadd.f32 %v1661, -1.4531521
        %v1726 = vadd.f32 %v1662, -1.4531521
        %v1727 = vadd.f32 %v1663, -1.4531521
        %v1728 = vadd.f32 %v1664, -1.4531521
        %v1729 = vadd.f32 %v1665, -1.4531521
        %v1730 = vadd.f32 %v1666, -1.4531521
        %v1731 = vadd.f32 %v1667, -1.4531521
        %v1732 = vadd.f32 %v1668, -1.4531521
        %v1733 = vadd.f32 %v1669, -1.4531521
        %v1734 = vadd.f32 %v1670, -1.4531521
        %v1735 = vadd.f32 %v1671, -1.4531521
        %v1736 = vadd.f32 %v1672, -1.4531521
        %v1737 = vadd.f32 %v1673, -1.4531521
        %v1738 = vmul.f32 %v1674, %v1546
        %v1739 = vmul.f32 %v1675, %v1547
        %v1740 = vmul.f32 %v1676, %v1548
        %v1741 = vmul.f32 %v1677, %v1549
        %v1742 = vmul.f32 %v1678, %v1550
        %v1743 = vmul.f32 %v1679, %v1551
        %v1744 = vmul.f32 %v1680, %v1552
        %v1745 = vmul.f32 %v1681, %v1553
        %v1746 = vmul.f32 %v1682, %v1554
        %v1747 = vmul.f32 %v1683, %v1555
        %v1748 = vmul.f32 %v1684, %v1556
        %v1749 = vmul.f32 %v1685, %v1557
        %v1750 = vmul.f32 %v1686, %v1558
        %v1751 = vmul.f32 %v1687, %v1559
        %v1752 = vmul.f32 %v1688, %v1560
        %v1753 = vmul.f32 %v1689, %v1561
        %v1754 = vmul.f32 %v1690, %v1562
        %v1755 = vmul.f32 %v1691, %v1563
        %v1756 = vmul.f32 %v1692, %v1564
        %v1757 = vmul.f32 %v1693, %v1565
        %v1758 = vmul.f32 %v1694, %v1566
        %v1759 = vmul.f32 %v1695, %v1567
        %v1760 = vmul.f32 %v1696, %v1568
        %v1761 = vmul.f32 %v1697, %v1569
        %v1762 = vmul.f32 %v1698, %v1570
        %v1763 = vmul.f32 %v1699, %v1571
        %v1764 = vmul.f32 %v1700, %v1572
        %v1765 = vmul.f32 %v1701, %v1573
        %v1766 = vmul.f32 %v1702, %v1574
        %v1767 = vmul.f32 %v1703, %v1575
        %v1768 = vmul.f32 %v1704, %v1576
        %v1769 = vmul.f32 %v1705, %v1577
        %v1770 = vmul.f32 %v1706, %v1578
        %v1771 = vmul.f32 %v1707, %v1579
        %v1772 = vmul.f32 %v1708, %v1580
        %v1773 = vmul.f32 %v1709, %v1581
        %v1774 = vmul.f32 %v1710, %v1582
        %v1775 = vmul.f32 %v1711, %v1583
        %v1776 = vmul.f32 %v1712, %v1584
        %v1777 = vmul.f32 %v1713, %v1585
        %v1778 = vmul.f32 %v1714, %v1586
        %v1779 = vmul.f32 %v1715, %v1587
        %v1780 = vmul.f32 %v1716, %v1588
        %v1781 = vmul.f32 %v1717, %v1589
        %v1782 = vmul.f32 %v1718, %v1590
        %v1783 = vmul.f32 %v1719, %v1591
        %v1784 = vmul.f32 %v1720, %v1592
        %v1785 = vmul.f32 %v1721, %v1593
        %v1786 = vmul.f32 %v1722, %v1594
        %v1787 = vmul.f32 %v1723, %v1595
        %v1788 = vmul.f32 %v1724, %v1596
        %v1789 = vmul.f32 %v1725, %v1597
        %v1790 = vmul.f32 %v1726, %v1598
        %v1791 = vmul.f32 %v1727, %v1599
        %v1792 = vmul.f32 %v1728, %v1600
        %v1793 = vmul.f32 %v1729, %v1601
        %v1794 = vmul.f32 %v1730, %v1602
        %v1795 = vmul.f32 %v1731, %v1603
        %v1796 = vmul.f32 %v1732, %v1604
        %v1797 = vmul.f32 %v1733, %v1605
        %v1798 = vmul.f32 %v1734, %v1606
        %v1799 = vmul.f32 %v1735, %v1607
        %v1800 = vmul.f32 %v1736, %v1608
        %v1801 = vmul.f32 %v1737, %v1609
        %v1802 = vadd.f32 %v1738, 1.4214138
        %v1803 = vadd.f32 %v1739, 1.4214138
        %v1804 = vadd.f32 %v1740, 1.4214138
        %v1805 = vadd.f32 %v1741, 1.4214138
        %v1806 = vadd.f32 %v1742, 1.4214138
        %v1807 = vadd.f32 %v1743, 1.4214138
        %v1808 = vadd.f32 %v1744, 1.4214138
        %v1809 = vadd.f32 %v1745, 1.4214138
        %v1810 = vadd.f32 %v1746, 1.4214138
        %v1811 = vadd.f32 %v1747, 1.4214138
        %v1812 = vadd.f32 %v1748, 1.4214138
        %v1813 = vadd.f32 %v1749, 1.4214138
        %v1814 = vadd.f32 %v1750, 1.4214138
        %v1815 = vadd.f32 %v1751, 1.4214138
        %v1816 = vadd.f32 %v1752, 1.4214138
        %v1817 = vadd.f32 %v1753, 1.4214138
        %v1818 = vadd.f32 %v1754, 1.4214138
        %v1819 = vadd.f32 %v1755, 1.4214138
        %v1820 = vadd.f32 %v1756, 1.4214138
        %v1821 = vadd.f32 %v1757, 1.4214138
        %v1822 = vadd.f32 %v1758, 1.4214138
        %v1823 = vadd.f32 %v1759, 1.4214138
        %v1824 = vadd.f32 %v1760, 1.4214138
        %v1825 = vadd.f32 %v1761, 1.4214138
        %v1826 = vadd.f32 %v1762, 1.4214138
        %v1827 = vadd.f32 %v1763, 1.4214138
        %v1828 = vadd.f32 %v1764, 1.4214138
        %v1829 = vadd.f32 %v1765, 1.4214138
        %v1830 = vadd.f32 %v1766, 1.4214138
        %v1831 = vadd.f32 %v1767, 1.4214138
        %v1832 = vadd.f32 %v1768, 1.4214138
        %v1833 = vadd.f32 %v1769, 1.4214138
        %v1834 = vadd.f32 %v1770, 1.4214138
        %v1835 = vadd.f32 %v1771, 1.4214138
        %v1836 = vadd.f32 %v1772, 1.4214138
        %v1837 = vadd.f32 %v1773, 1.4214138
        %v1838 = vadd.f32 %v1774, 1.4214138
        %v1839 = vadd.f32 %v1775, 1.4214138
        %v1840 = vadd.f32 %v1776, 1.4214138
        %v1841 = vadd.f32 %v1777, 1.4214138
        %v1842 = vadd.f32 %v1778, 1.4214138
        %v1843 = vadd.f32 %v1779, 1.4214138
        %v1844 = vadd.f32 %v1780, 1.4214138
        %v1845 = vadd.f32 %v1781, 1.4214138
        %v1846 = vadd.f32 %v1782, 1.4214138
        %v1847 = vadd.f32 %v1783, 1.4214138
        %v1848 = vadd.f32 %v1784, 1.4214138
        %v1849 = vadd.f32 %v1785, 1.4214138
        %v1850 = vadd.f32 %v1786, 1.4214138
        %v1851 = vadd.f32 %v1787, 1.4214138
        %v1852 = vadd.f32 %v1788, 1.4214138
        %v1853 = vadd.f32 %v1789, 1.4214138
        %v1854 = vadd.f32 %v1790, 1.4214138
        %v1855 = vadd.f32 %v1791, 1.4214138
        %v1856 = vadd.f32 %v1792, 1.4214138
        %v1857 = vadd.f32 %v1793, 1.4214138
        %v1858 = vadd.f32 %v1794, 1.4214138
        %v1859 = vadd.f32 %v1795, 1.4214138
        %v1860 = vadd.f32 %v1796, 1.4214138
        %v1861 = vadd.f32 %v1797, 1.4214138
        %v1862 = vadd.f32 %v1798, 1.4214138
        %v1863 = vadd.f32 %v1799, 1.4214138
        %v1864 = vadd.f32 %v1800, 1.4214138
        %v1865 = vadd.f32 %v1801, 1.4214138
        %v1866 = vmul.f32 %v1802, %v1546
        %v1867 = vmul.f32 %v1803, %v1547
        %v1868 = vmul.f32 %v1804, %v1548
        %v1869 = vmul.f32 %v1805, %v1549
        %v1870 = vmul.f32 %v1806, %v1550
        %v1871 = vmul.f32 %v1807, %v1551
        %v1872 = vmul.f32 %v1808, %v1552
        %v1873 = vmul.f32 %v1809, %v1553
        %v1874 = vmul.f32 %v1810, %v1554
        %v1875 = vmul.f32 %v1811, %v1555
        %v1876 = vmul.f32 %v1812, %v1556
        %v1877 = vmul.f32 %v1813, %v1557
        %v1878 = vmul.f32 %v1814, %v1558
        %v1879 = vmul.f32 %v1815, %v1559
        %v1880 = vmul.f32 %v1816, %v1560
        %v1881 = vmul.f32 %v1817, %v1561
        %v1882 = vmul.f32 %v1818, %v1562
        %v1883 = vmul.f32 %v1819, %v1563
        %v1884 = vmul.f32 %v1820, %v1564
        %v1885 = vmul.f32 %v1821, %v1565
        %v1886 = vmul.f32 %v1822, %v1566
        %v1887 = vmul.f32 %v1823, %v1567
        %v1888 = vmul.f32 %v1824, %v1568
        %v1889 = vmul.f32 %v1825, %v1569
        %v1890 = vmul.f32 %v1826, %v1570
        %v1891 = vmul.f32 %v1827, %v1571
        %v1892 = vmul.f32 %v1828, %v1572
        %v1893 = vmul.f32 %v1829, %v1573
        %v1894 = vmul.f32 %v1830, %v1574
        %v1895 = vmul.f32 %v1831, %v1575
        %v1896 = vmul.f32 %v1832, %v1576
        %v1897 = vmul.f32 %v1833, %v1577
        %v1898 = vmul.f32 %v1834, %v1578
        %v1899 = vmul.f32 %v1835, %v1579
        %v1900 = vmul.f32 %v1836, %v1580
        %v1901 = vmul.f32 %v1837, %v1581
        %v1902 = vmul.f32 %v1838, %v1582
        %v1903 = vmul.f32 %v1839, %v1583
        %v1904 = vmul.f32 %v1840, %v1584
        %v1905 = vmul.f32 %v1841, %v1585
        %v1906 = vmul.f32 %v1842, %v1586
        %v1907 = vmul.f32 %v1843, %v1587
        %v1908 = vmul.f32 %v1844, %v1588
        %v1909 = vmul.f32 %v1845, %v1589
        %v1910 = vmul.f32 %v1846, %v1590
        %v1911 = vmul.f32 %v1847, %v1591
        %v1912 = vmul.f32 %v1848, %v1592
        %v1913 = vmul.f32 %v1849, %v1593
        %v1914 = vmul.f32 %v1850, %v1594
        %v1915 = vmul.f32 %v1851, %v1595
        %v1916 = vmul.f32 %v1852, %v1596
        %v1917 = vmul.f32 %v1853, %v1597
        %v1918 = vmul.f32 %v1854, %v1598
        %v1919 = vmul.f32 %v1855, %v1599
        %v1920 = vmul.f32 %v1856, %v1600
        %v1921 = vmul.f32 %v1857, %v1601
        %v1922 = vmul.f32 %v1858, %v1602
        %v1923 = vmul.f32 %v1859, %v1603
        %v1924 = vmul.f32 %v1860, %v1604
        %v1925 = vmul.f32 %v1861, %v1605
        %v1926 = vmul.f32 %v1862, %v1606
        %v1927 = vmul.f32 %v1863, %v1607
        %v1928 = vmul.f32 %v1864, %v1608
        %v1929 = vmul.f32 %v1865, %v1609
        %v1930 = vadd.f32 %v1866, -0.28449672
        %v1931 = vadd.f32 %v1867, -0.28449672
        %v1932 = vadd.f32 %v1868, -0.28449672
        %v1933 = vadd.f32 %v1869, -0.28449672
        %v1934 = vadd.f32 %v1870, -0.28449672
        %v1935 = vadd.f32 %v1871, -0.28449672
        %v1936 = vadd.f32 %v1872, -0.28449672
        %v1937 = vadd.f32 %v1873, -0.28449672
        %v1938 = vadd.f32 %v1874, -0.28449672
        %v1939 = vadd.f32 %v1875, -0.28449672
        %v1940 = vadd.f32 %v1876, -0.28449672
        %v1941 = vadd.f32 %v1877, -0.28449672
        %v1942 = vadd.f32 %v1878, -0.28449672
        %v1943 = vadd.f32 %v1879, -0.28449672
        %v1944 = vadd.f32 %v1880, -0.28449672
        %v1945 = vadd.f32 %v1881, -0.28449672
        %v1946 = vadd.f32 %v1882, -0.28449672
        %v1947 = vadd.f32 %v1883, -0.28449672
        %v1948 = vadd.f32 %v1884, -0.28449672
        %v1949 = vadd.f32 %v1885, -0.28449672
        %v1950 = vadd.f32 %v1886, -0.28449672
        %v1951 = vadd.f32 %v1887, -0.28449672
        %v1952 = vadd.f32 %v1888, -0.28449672
        %v1953 = vadd.f32 %v1889, -0.28449672
        %v1954 = vadd.f32 %v1890, -0.28449672
        %v1955 = vadd.f32 %v1891, -0.28449672
        %v1956 = vadd.f32 %v1892, -0.28449672
        %v1957 = vadd.f32 %v1893, -0.28449672
        %v1958 = vadd.f32 %v1894, -0.28449672
        %v1959 = vadd.f32 %v1895, -0.28449672
        %v1960 = vadd.f32 %v1896, -0.28449672
        %v1961 = vadd.f32 %v1897, -0.28449672
        %v1962 = vadd.f32 %v1898, -0.28449672
        %v1963 = vadd.f32 %v1899, -0.28449672
        %v1964 = vadd.f32 %v1900, -0.28449672
        %v1965 = vadd.f32 %v1901, -0.28449672
        %v1966 = vadd.f32 %v1902, -0.28449672
        %v1967 = vadd.f32 %v1903, -0.28449672
        %v1968 = vadd.f32 %v1904, -0.28449672
        %v1969 = vadd.f32 %v1905, -0.28449672
        %v1970 = vadd.f32 %v1906, -0.28449672
        %v1971 = vadd.f32 %v1907, -0.28449672
        %v1972 = vadd.f32 %v1908, -0.28449672
        %v1973 = vadd.f32 %v1909, -0.28449672
        %v1974 = vadd.f32 %v1910, -0.28449672
        %v1975 = vadd.f32 %v1911, -0.28449672
        %v1976 = vadd.f32 %v1912, -0.28449672
        %v1977 = vadd.f32 %v1913, -0.28449672
        %v1978 = vadd.f32 %v1914, -0.28449672
        %v1979 = vadd.f32 %v1915, -0.28449672
        %v1980 = vadd.f32 %v1916, -0.28449672
        %v1981 = vadd.f32 %v1917, -0.28449672
        %v1982 = vadd.f32 %v1918, -0.28449672
        %v1983 = vadd.f32 %v1919, -0.28449672
        %v1984 = vadd.f32 %v1920, -0.28449672
        %v1985 = vadd.f32 %v1921, -0.28449672
        %v1986 = vadd.f32 %v1922, -0.28449672
        %v1987 = vadd.f32 %v1923, -0.28449672
        %v1988 = vadd.f32 %v1924, -0.28449672
        %v1989 = vadd.f32 %v1925, -0.28449672
        %v1990 = vadd.f32 %v1926, -0.28449672
        %v1991 = vadd.f32 %v1927, -0.28449672
        %v1992 = vadd.f32 %v1928, -0.28449672
        %v1993 = vadd.f32 %v1929, -0.28449672
        %v1994 = vmul.f32 %v1930, %v1546
        %v1995 = vmul.f32 %v1931, %v1547
        %v1996 = vmul.f32 %v1932, %v1548
        %v1997 = vmul.f32 %v1933, %v1549
        %v1998 = vmul.f32 %v1934, %v1550
        %v1999 = vmul.f32 %v1935, %v1551
        %v2000 = vmul.f32 %v1936, %v1552
        %v2001 = vmul.f32 %v1937, %v1553
        %v2002 = vmul.f32 %v1938, %v1554
        %v2003 = vmul.f32 %v1939, %v1555
        %v2004 = vmul.f32 %v1940, %v1556
        %v2005 = vmul.f32 %v1941, %v1557
        %v2006 = vmul.f32 %v1942, %v1558
        %v2007 = vmul.f32 %v1943, %v1559
        %v2008 = vmul.f32 %v1944, %v1560
        %v2009 = vmul.f32 %v1945, %v1561
        %v2010 = vmul.f32 %v1946, %v1562
        %v2011 = vmul.f32 %v1947, %v1563
        %v2012 = vmul.f32 %v1948, %v1564
        %v2013 = vmul.f32 %v1949, %v1565
        %v2014 = vmul.f32 %v1950, %v1566
        %v2015 = vmul.f32 %v1951, %v1567
        %v2016 = vmul.f32 %v1952, %v1568
        %v2017 = vmul.f32 %v1953, %v1569
        %v2018 = vmul.f32 %v1954, %v1570
        %v2019 = vmul.f32 %v1955, %v1571
        %v2020 = vmul.f32 %v1956, %v1572
        %v2021 = vmul.f32 %v1957, %v1573
        %v2022 = vmul.f32 %v1958, %v1574
        %v2023 = vmul.f32 %v1959, %v1575
        %v2024 = vmul.f32 %v1960, %v1576
        %v2025 = vmul.f32 %v1961, %v1577
        %v2026 = vmul.f32 %v1962, %v1578
        %v2027 = vmul.f32 %v1963, %v1579
        %v2028 = vmul.f32 %v1964, %v1580
        %v2029 = vmul.f32 %v1965, %v1581
        %v2030 = vmul.f32 %v1966, %v1582
        %v2031 = vmul.f32 %v1967, %v1583
        %v2032 = vmul.f32 %v1968, %v1584
        %v2033 = vmul.f32 %v1969, %v1585
        %v2034 = vmul.f32 %v1970, %v1586
        %v2035 = vmul.f32 %v1971, %v1587
        %v2036 = vmul.f32 %v1972, %v1588
        %v2037 = vmul.f32 %v1973, %v1589
        %v2038 = vmul.f32 %v1974, %v1590
        %v2039 = vmul.f32 %v1975, %v1591
        %v2040 = vmul.f32 %v1976, %v1592
        %v2041 = vmul.f32 %v1977, %v1593
        %v2042 = vmul.f32 %v1978, %v1594
        %v2043 = vmul.f32 %v1979, %v1595
        %v2044 = vmul.f32 %v1980, %v1596
        %v2045 = vmul.f32 %v1981, %v1597
        %v2046 = vmul.f32 %v1982, %v1598
        %v2047 = vmul.f32 %v1983, %v1599
        %v2048 = vmul.f32 %v1984, %v1600
        %v2049 = vmul.f32 %v1985, %v1601
        %v2050 = vmul.f32 %v1986, %v1602
        %v2051 = vmul.f32 %v1987, %v1603
        %v2052 = vmul.f32 %v1988, %v1604
        %v2053 = vmul.f32 %v1989, %v1605
        %v2054 = vmul.f32 %v1990, %v1606
        %v2055 = vmul.f32 %v1991, %v1607
        %v2056 = vmul.f32 %v1992, %v1608
        %v2057 = vmul.f32 %v1993, %v1609
        %v2058 = vadd.f32 %v1994, 0.2548296
        %v2059 = vadd.f32 %v1995, 0.2548296
        %v2060 = vadd.f32 %v1996, 0.2548296
        %v2061 = vadd.f32 %v1997, 0.2548296
        %v2062 = vadd.f32 %v1998, 0.2548296
        %v2063 = vadd.f32 %v1999, 0.2548296
        %v2064 = vadd.f32 %v2000, 0.2548296
        %v2065 = vadd.f32 %v2001, 0.2548296
        %v2066 = vadd.f32 %v2002, 0.2548296
        %v2067 = vadd.f32 %v2003, 0.2548296
        %v2068 = vadd.f32 %v2004, 0.2548296
        %v2069 = vadd.f32 %v2005, 0.2548296
        %v2070 = vadd.f32 %v2006, 0.2548296
        %v2071 = vadd.f32 %v2007, 0.2548296
        %v2072 = vadd.f32 %v2008, 0.2548296
        %v2073 = vadd.f32 %v2009, 0.2548296
        %v2074 = vadd.f32 %v2010, 0.2548296
        %v2075 = vadd.f32 %v2011, 0.2548296
        %v2076 = vadd.f32 %v2012, 0.2548296
        %v2077 = vadd.f32 %v2013, 0.2548296
        %v2078 = vadd.f32 %v2014, 0.2548296
        %v2079 = vadd.f32 %v2015, 0.2548296
        %v2080 = vadd.f32 %v2016, 0.2548296
        %v2081 = vadd.f32 %v2017, 0.2548296
        %v2082 = vadd.f32 %v2018, 0.2548296
        %v2083 = vadd.f32 %v2019, 0.2548296
        %v2084 = vadd.f32 %v2020, 0.2548296
        %v2085 = vadd.f32 %v2021, 0.2548296
        %v2086 = vadd.f32 %v2022, 0.2548296
        %v2087 = vadd.f32 %v2023, 0.2548296
        %v2088 = vadd.f32 %v2024, 0.2548296
        %v2089 = vadd.f32 %v2025, 0.2548296
        %v2090 = vadd.f32 %v2026, 0.2548296
        %v2091 = vadd.f32 %v2027, 0.2548296
        %v2092 = vadd.f32 %v2028, 0.2548296
        %v2093 = vadd.f32 %v2029, 0.2548296
        %v2094 = vadd.f32 %v2030, 0.2548296
        %v2095 = vadd.f32 %v2031, 0.2548296
        %v2096 = vadd.f32 %v2032, 0.2548296
        %v2097 = vadd.f32 %v2033, 0.2548296
        %v2098 = vadd.f32 %v2034, 0.2548296
        %v2099 = vadd.f32 %v2035, 0.2548296
        %v2100 = vadd.f32 %v2036, 0.2548296
        %v2101 = vadd.f32 %v2037, 0.2548296
        %v2102 = vadd.f32 %v2038, 0.2548296
        %v2103 = vadd.f32 %v2039, 0.2548296
        %v2104 = vadd.f32 %v2040, 0.2548296
        %v2105 = vadd.f32 %v2041, 0.2548296
        %v2106 = vadd.f32 %v2042, 0.2548296
        %v2107 = vadd.f32 %v2043, 0.2548296
        %v2108 = vadd.f32 %v2044, 0.2548296
        %v2109 = vadd.f32 %v2045, 0.2548296
        %v2110 = vadd.f32 %v2046, 0.2548296
        %v2111 = vadd.f32 %v2047, 0.2548296
        %v2112 = vadd.f32 %v2048, 0.2548296
        %v2113 = vadd.f32 %v2049, 0.2548296
        %v2114 = vadd.f32 %v2050, 0.2548296
        %v2115 = vadd.f32 %v2051, 0.2548296
        %v2116 = vadd.f32 %v2052, 0.2548296
        %v2117 = vadd.f32 %v2053, 0.2548296
        %v2118 = vadd.f32 %v2054, 0.2548296
        %v2119 = vadd.f32 %v2055, 0.2548296
        %v2120 = vadd.f32 %v2056, 0.2548296
        %v2121 = vadd.f32 %v2057, 0.2548296
        %v2122 = vmul.f32 %v2058, %v1546
        %v2123 = vmul.f32 %v2059, %v1547
        %v2124 = vmul.f32 %v2060, %v1548
        %v2125 = vmul.f32 %v2061, %v1549
        %v2126 = vmul.f32 %v2062, %v1550
        %v2127 = vmul.f32 %v2063, %v1551
        %v2128 = vmul.f32 %v2064, %v1552
        %v2129 = vmul.f32 %v2065, %v1553
        %v2130 = vmul.f32 %v2066, %v1554
        %v2131 = vmul.f32 %v2067, %v1555
        %v2132 = vmul.f32 %v2068, %v1556
        %v2133 = vmul.f32 %v2069, %v1557
        %v2134 = vmul.f32 %v2070, %v1558
        %v2135 = vmul.f32 %v2071, %v1559
        %v2136 = vmul.f32 %v2072, %v1560
        %v2137 = vmul.f32 %v2073, %v1561
        %v2138 = vmul.f32 %v2074, %v1562
        %v2139 = vmul.f32 %v2075, %v1563
        %v2140 = vmul.f32 %v2076, %v1564
        %v2141 = vmul.f32 %v2077, %v1565
        %v2142 = vmul.f32 %v2078, %v1566
        %v2143 = vmul.f32 %v2079, %v1567
        %v2144 = vmul.f32 %v2080, %v1568
        %v2145 = vmul.f32 %v2081, %v1569
        %v2146 = vmul.f32 %v2082, %v1570
        %v2147 = vmul.f32 %v2083, %v1571
        %v2148 = vmul.f32 %v2084, %v1572
        %v2149 = vmul.f32 %v2085, %v1573
        %v2150 = vmul.f32 %v2086, %v1574
        %v2151 = vmul.f32 %v2087, %v1575
        %v2152 = vmul.f32 %v2088, %v1576
        %v2153 = vmul.f32 %v2089, %v1577
        %v2154 = vmul.f32 %v2090, %v1578
        %v2155 = vmul.f32 %v2091, %v1579
        %v2156 = vmul.f32 %v2092, %v1580
        %v2157 = vmul.f32 %v2093, %v1581
        %v2158 = vmul.f32 %v2094, %v1582
        %v2159 = vmul.f32 %v2095, %v1583
        %v2160 = vmul.f32 %v2096, %v1584
        %v2161 = vmul.f32 %v2097, %v1585
        %v2162 = vmul.f32 %v2098, %v1586
        %v2163 = vmul.f32 %v2099, %v1587
        %v2164 = vmul.f32 %v2100, %v1588
        %v2165 = vmul.f32 %v2101, %v1589
        %v2166 = vmul.f32 %v2102, %v1590
        %v2167 = vmul.f32 %v2103, %v1591
        %v2168 = vmul.f32 %v2104, %v1592
        %v2169 = vmul.f32 %v2105, %v1593
        %v2170 = vmul.f32 %v2106, %v1594
        %v2171 = vmul.f32 %v2107, %v1595
        %v2172 = vmul.f32 %v2108, %v1596
        %v2173 = vmul.f32 %v2109, %v1597
        %v2174 = vmul.f32 %v2110, %v1598
        %v2175 = vmul.f32 %v2111, %v1599
        %v2176 = vmul.f32 %v2112, %v1600
        %v2177 = vmul.f32 %v2113, %v1601
        %v2178 = vmul.f32 %v2114, %v1602
        %v2179 = vmul.f32 %v2115, %v1603
        %v2180 = vmul.f32 %v2116, %v1604
        %v2181 = vmul.f32 %v2117, %v1605
        %v2182 = vmul.f32 %v2118, %v1606
        %v2183 = vmul.f32 %v2119, %v1607
        %v2184 = vmul.f32 %v2120, %v1608
        %v2185 = vmul.f32 %v2121, %v1609
        %v2186 = vsub.f32 0.0, %v1354
        %v2187 = vsub.f32 0.0, %v1355
        %v2188 = vsub.f32 0.0, %v1356
        %v2189 = vsub.f32 0.0, %v1357
        %v2190 = vsub.f32 0.0, %v1358
        %v2191 = vsub.f32 0.0, %v1359
        %v2192 = vsub.f32 0.0, %v1360
        %v2193 = vsub.f32 0.0, %v1361
        %v2194 = vsub.f32 0.0, %v1362
        %v2195 = vsub.f32 0.0, %v1363
        %v2196 = vsub.f32 0.0, %v1364
        %v2197 = vsub.f32 0.0, %v1365
        %v2198 = vsub.f32 0.0, %v1366
        %v2199 = vsub.f32 0.0, %v1367
        %v2200 = vsub.f32 0.0, %v1368
        %v2201 = vsub.f32 0.0, %v1369
        %v2202 = vsub.f32 0.0, %v1370
        %v2203 = vsub.f32 0.0, %v1371
        %v2204 = vsub.f32 0.0, %v1372
        %v2205 = vsub.f32 0.0, %v1373
        %v2206 = vsub.f32 0.0, %v1374
        %v2207 = vsub.f32 0.0, %v1375
        %v2208 = vsub.f32 0.0, %v1376
        %v2209 = vsub.f32 0.0, %v1377
        %v2210 = vsub.f32 0.0, %v1378
        %v2211 = vsub.f32 0.0, %v1379
        %v2212 = vsub.f32 0.0, %v1380
        %v2213 = vsub.f32 0.0, %v1381
        %v2214 = vsub.f32 0.0, %v1382
        %v2215 = vsub.f32 0.0, %v1383
        %v2216 = vsub.f32 0.0, %v1384
        %v2217 = vsub.f32 0.0, %v1385
        %v2218 = vsub.f32 0.0, %v1386
        %v2219 = vsub.f32 0.0, %v1387
        %v2220 = vsub.f32 0.0, %v1388
        %v2221 = vsub.f32 0.0, %v1389
        %v2222 = vsub.f32 0.0, %v1390
        %v2223 = vsub.f32 0.0, %v1391
        %v2224 = vsub.f32 0.0, %v1392
        %v2225 = vsub.f32 0.0, %v1393
        %v2226 = vsub.f32 0.0, %v1394
        %v2227 = vsub.f32 0.0, %v1395
        %v2228 = vsub.f32 0.0, %v1396
        %v2229 = vsub.f32 0.0, %v1397
        %v2230 = vsub.f32 0.0, %v1398
        %v2231 = vsub.f32 0.0, %v1399
        %v2232 = vsub.f32 0.0, %v1400
        %v2233 = vsub.f32 0.0, %v1401
        %v2234 = vsub.f32 0.0, %v1402
        %v2235 = vsub.f32 0.0, %v1403
        %v2236 = vsub.f32 0.0, %v1404
        %v2237 = vsub.f32 0.0, %v1405
        %v2238 = vsub.f32 0.0, %v1406
        %v2239 = vsub.f32 0.0, %v1407
        %v2240 = vsub.f32 0.0, %v1408
        %v2241 = vsub.f32 0.0, %v1409
        %v2242 = vsub.f32 0.0, %v1410
        %v2243 = vsub.f32 0.0, %v1411
        %v2244 = vsub.f32 0.0, %v1412
        %v2245 = vsub.f32 0.0, %v1413
        %v2246 = vsub.f32 0.0, %v1414
        %v2247 = vsub.f32 0.0, %v1415
        %v2248 = vsub.f32 0.0, %v1416
        %v2249 = vsub.f32 0.0, %v1417
        %v2250 = vmul.f32 %v2186, %v1354
        %v2251 = vmul.f32 %v2187, %v1355
        %v2252 = vmul.f32 %v2188, %v1356
        %v2253 = vmul.f32 %v2189, %v1357
        %v2254 = vmul.f32 %v2190, %v1358
        %v2255 = vmul.f32 %v2191, %v1359
        %v2256 = vmul.f32 %v2192, %v1360
        %v2257 = vmul.f32 %v2193, %v1361
        %v2258 = vmul.f32 %v2194, %v1362
        %v2259 = vmul.f32 %v2195, %v1363
        %v2260 = vmul.f32 %v2196, %v1364
        %v2261 = vmul.f32 %v2197, %v1365
        %v2262 = vmul.f32 %v2198, %v1366
        %v2263 = vmul.f32 %v2199, %v1367
        %v2264 = vmul.f32 %v2200, %v1368
        %v2265 = vmul.f32 %v2201, %v1369
        %v2266 = vmul.f32 %v2202, %v1370
        %v2267 = vmul.f32 %v2203, %v1371
        %v2268 = vmul.f32 %v2204, %v1372
        %v2269 = vmul.f32 %v2205, %v1373
        %v2270 = vmul.f32 %v2206, %v1374
        %v2271 = vmul.f32 %v2207, %v1375
        %v2272 = vmul.f32 %v2208, %v1376
        %v2273 = vmul.f32 %v2209, %v1377
        %v2274 = vmul.f32 %v2210, %v1378
        %v2275 = vmul.f32 %v2211, %v1379
        %v2276 = vmul.f32 %v2212, %v1380
        %v2277 = vmul.f32 %v2213, %v1381
        %v2278 = vmul.f32 %v2214, %v1382
        %v2279 = vmul.f32 %v2215, %v1383
        %v2280 = vmul.f32 %v2216, %v1384
        %v2281 = vmul.f32 %v2217, %v1385
        %v2282 = vmul.f32 %v2218, %v1386
        %v2283 = vmul.f32 %v2219, %v1387
        %v2284 = vmul.f32 %v2220, %v1388
        %v2285 = vmul.f32 %v2221, %v1389
        %v2286 = vmul.f32 %v2222, %v1390
        %v2287 = vmul.f32 %v2223, %v1391
        %v2288 = vmul.f32 %v2224, %v1392
        %v2289 = vmul.f32 %v2225, %v1393
        %v2290 = vmul.f32 %v2226, %v1394
        %v2291 = vmul.f32 %v2227, %v1395
        %v2292 = vmul.f32 %v2228, %v1396
        %v2293 = vmul.f32 %v2229, %v1397
        %v2294 = vmul.f32 %v2230, %v1398
        %v2295 = vmul.f32 %v2231, %v1399
        %v2296 = vmul.f32 %v2232, %v1400
        %v2297 = vmul.f32 %v2233, %v1401
        %v2298 = vmul.f32 %v2234, %v1402
        %v2299 = vmul.f32 %v2235, %v1403
        %v2300 = vmul.f32 %v2236, %v1404
        %v2301 = vmul.f32 %v2237, %v1405
        %v2302 = vmul.f32 %v2238, %v1406
        %v2303 = vmul.f32 %v2239, %v1407
        %v2304 = vmul.f32 %v2240, %v1408
        %v2305 = vmul.f32 %v2241, %v1409
        %v2306 = vmul.f32 %v2242, %v1410
        %v2307 = vmul.f32 %v2243, %v1411
        %v2308 = vmul.f32 %v2244, %v1412
        %v2309 = vmul.f32 %v2245, %v1413
        %v2310 = vmul.f32 %v2246, %v1414
        %v2311 = vmul.f32 %v2247, %v1415
        %v2312 = vmul.f32 %v2248, %v1416
        %v2313 = vmul.f32 %v2249, %v1417
        %v2314 = vmul.f32 %v2250, 1.442695
        %v2315 = vpow.pop %v2314
        %v2316 = vmul.f32 %v2251, 1.442695
        %v2317 = vpow.pop %v2316
        %v2318 = vmul.f32 %v2252, 1.442695
        %v2319 = vpow.pop %v2318
        %v2320 = vmul.f32 %v2253, 1.442695
        %v2321 = vpow.pop %v2320
        %v2322 = vmul.f32 %v2254, 1.442695
        %v2323 = vpow.pop %v2322
        %v2324 = vmul.f32 %v2255, 1.442695
        %v2325 = vpow.pop %v2324
        %v2326 = vmul.f32 %v2256, 1.442695
        %v2327 = vpow.pop %v2326
        %v2328 = vmul.f32 %v2257, 1.442695
        %v2329 = vpow.pop %v2328
        %v2330 = vmul.f32 %v2258, 1.442695
        %v2331 = vpow.pop %v2330
        %v2332 = vmul.f32 %v2259, 1.442695
        %v2333 = vpow.pop %v2332
        %v2334 = vmul.f32 %v2260, 1.442695
        %v2335 = vpow.pop %v2334
        %v2336 = vmul.f32 %v2261, 1.442695
        %v2337 = vpow.pop %v2336
        %v2338 = vmul.f32 %v2262, 1.442695
        %v2339 = vpow.pop %v2338
        %v2340 = vmul.f32 %v2263, 1.442695
        %v2341 = vpow.pop %v2340
        %v2342 = vmul.f32 %v2264, 1.442695
        %v2343 = vpow.pop %v2342
        %v2344 = vmul.f32 %v2265, 1.442695
        %v2345 = vpow.pop %v2344
        %v2346 = vmul.f32 %v2266, 1.442695
        %v2347 = vpow.pop %v2346
        %v2348 = vmul.f32 %v2267, 1.442695
        %v2349 = vpow.pop %v2348
        %v2350 = vmul.f32 %v2268, 1.442695
        %v2351 = vpow.pop %v2350
        %v2352 = vmul.f32 %v2269, 1.442695
        %v2353 = vpow.pop %v2352
        %v2354 = vmul.f32 %v2270, 1.442695
        %v2355 = vpow.pop %v2354
        %v2356 = vmul.f32 %v2271, 1.442695
        %v2357 = vpow.pop %v2356
        %v2358 = vmul.f32 %v2272, 1.442695
        %v2359 = vpow.pop %v2358
        %v2360 = vmul.f32 %v2273, 1.442695
        %v2361 = vpow.pop %v2360
        %v2362 = vmul.f32 %v2274, 1.442695
        %v2363 = vpow.pop %v2362
        %v2364 = vmul.f32 %v2275, 1.442695
        %v2365 = vpow.pop %v2364
        %v2366 = vmul.f32 %v2276, 1.442695
        %v2367 = vpow.pop %v2366
        %v2368 = vmul.f32 %v2277, 1.442695
        %v2369 = vpow.pop %v2368
        %v2370 = vmul.f32 %v2278, 1.442695
        %v2371 = vpow.pop %v2370
        %v2372 = vmul.f32 %v2279, 1.442695
        %v2373 = vpow.pop %v2372
        %v2374 = vmul.f32 %v2280, 1.442695
        %v2375 = vpow.pop %v2374
        %v2376 = vmul.f32 %v2281, 1.442695
        %v2377 = vpow.pop %v2376
        %v2378 = vmul.f32 %v2282, 1.442695
        %v2379 = vpow.pop %v2378
        %v2380 = vmul.f32 %v2283, 1.442695
        %v2381 = vpow.pop %v2380
        %v2382 = vmul.f32 %v2284, 1.442695
        %v2383 = vpow.pop %v2382
        %v2384 = vmul.f32 %v2285, 1.442695
        %v2385 = vpow.pop %v2384
        %v2386 = vmul.f32 %v2286, 1.442695
        %v2387 = vpow.pop %v2386
        %v2388 = vmul.f32 %v2287, 1.442695
        %v2389 = vpow.pop %v2388
        %v2390 = vmul.f32 %v2288, 1.442695
        %v2391 = vpow.pop %v2390
        %v2392 = vmul.f32 %v2289, 1.442695
        %v2393 = vpow.pop %v2392
        %v2394 = vmul.f32 %v2290, 1.442695
        %v2395 = vpow.pop %v2394
        %v2396 = vmul.f32 %v2291, 1.442695
        %v2397 = vpow.pop %v2396
        %v2398 = vmul.f32 %v2292, 1.442695
        %v2399 = vpow.pop %v2398
        %v2400 = vmul.f32 %v2293, 1.442695
        %v2401 = vpow.pop %v2400
        %v2402 = vmul.f32 %v2294, 1.442695
        %v2403 = vpow.pop %v2402
        %v2404 = vmul.f32 %v2295, 1.442695
        %v2405 = vpow.pop %v2404
        %v2406 = vmul.f32 %v2296, 1.442695
        %v2407 = vpow.pop %v2406
        %v2408 = vmul.f32 %v2297, 1.442695
        %v2409 = vpow.pop %v2408
        %v2410 = vmul.f32 %v2298, 1.442695
        %v2411 = vpow.pop %v2410
        %v2412 = vmul.f32 %v2299, 1.442695
        %v2413 = vpow.pop %v2412
        %v2414 = vmul.f32 %v2300, 1.442695
        %v2415 = vpow.pop %v2414
        %v2416 = vmul.f32 %v2301, 1.442695
        %v2417 = vpow.pop %v2416
        %v2418 = vmul.f32 %v2302, 1.442695
        %v2419 = vpow.pop %v2418
        %v2420 = vmul.f32 %v2303, 1.442695
        %v2421 = vpow.pop %v2420
        %v2422 = vmul.f32 %v2304, 1.442695
        %v2423 = vpow.pop %v2422
        %v2424 = vmul.f32 %v2305, 1.442695
        %v2425 = vpow.pop %v2424
        %v2426 = vmul.f32 %v2306, 1.442695
        %v2427 = vpow.pop %v2426
        %v2428 = vmul.f32 %v2307, 1.442695
        %v2429 = vpow.pop %v2428
        %v2430 = vmul.f32 %v2308, 1.442695
        %v2431 = vpow.pop %v2430
        %v2432 = vmul.f32 %v2309, 1.442695
        %v2433 = vpow.pop %v2432
        %v2434 = vmul.f32 %v2310, 1.442695
        %v2435 = vpow.pop %v2434
        %v2436 = vmul.f32 %v2311, 1.442695
        %v2437 = vpow.pop %v2436
        %v2438 = vmul.f32 %v2312, 1.442695
        %v2439 = vpow.pop %v2438
        %v2440 = vmul.f32 %v2313, 1.442695
        %v2441 = vpow.pop %v2440
        %v2442 = vmul.f32 %v2122, %v2315
        %v2443 = vmul.f32 %v2123, %v2317
        %v2444 = vmul.f32 %v2124, %v2319
        %v2445 = vmul.f32 %v2125, %v2321
        %v2446 = vmul.f32 %v2126, %v2323
        %v2447 = vmul.f32 %v2127, %v2325
        %v2448 = vmul.f32 %v2128, %v2327
        %v2449 = vmul.f32 %v2129, %v2329
        %v2450 = vmul.f32 %v2130, %v2331
        %v2451 = vmul.f32 %v2131, %v2333
        %v2452 = vmul.f32 %v2132, %v2335
        %v2453 = vmul.f32 %v2133, %v2337
        %v2454 = vmul.f32 %v2134, %v2339
        %v2455 = vmul.f32 %v2135, %v2341
        %v2456 = vmul.f32 %v2136, %v2343
        %v2457 = vmul.f32 %v2137, %v2345
        %v2458 = vmul.f32 %v2138, %v2347
        %v2459 = vmul.f32 %v2139, %v2349
        %v2460 = vmul.f32 %v2140, %v2351
        %v2461 = vmul.f32 %v2141, %v2353
        %v2462 = vmul.f32 %v2142, %v2355
        %v2463 = vmul.f32 %v2143, %v2357
        %v2464 = vmul.f32 %v2144, %v2359
        %v2465 = vmul.f32 %v2145, %v2361
        %v2466 = vmul.f32 %v2146, %v2363
        %v2467 = vmul.f32 %v2147, %v2365
        %v2468 = vmul.f32 %v2148, %v2367
        %v2469 = vmul.f32 %v2149, %v2369
        %v2470 = vmul.f32 %v2150, %v2371
        %v2471 = vmul.f32 %v2151, %v2373
        %v2472 = vmul.f32 %v2152, %v2375
        %v2473 = vmul.f32 %v2153, %v2377
        %v2474 = vmul.f32 %v2154, %v2379
        %v2475 = vmul.f32 %v2155, %v2381
        %v2476 = vmul.f32 %v2156, %v2383
        %v2477 = vmul.f32 %v2157, %v2385
        %v2478 = vmul.f32 %v2158, %v2387
        %v2479 = vmul.f32 %v2159, %v2389
        %v2480 = vmul.f32 %v2160, %v2391
        %v2481 = vmul.f32 %v2161, %v2393
        %v2482 = vmul.f32 %v2162, %v2395
        %v2483 = vmul.f32 %v2163, %v2397
        %v2484 = vmul.f32 %v2164, %v2399
        %v2485 = vmul.f32 %v2165, %v2401
        %v2486 = vmul.f32 %v2166, %v2403
        %v2487 = vmul.f32 %v2167, %v2405
        %v2488 = vmul.f32 %v2168, %v2407
        %v2489 = vmul.f32 %v2169, %v2409
        %v2490 = vmul.f32 %v2170, %v2411
        %v2491 = vmul.f32 %v2171, %v2413
        %v2492 = vmul.f32 %v2172, %v2415
        %v2493 = vmul.f32 %v2173, %v2417
        %v2494 = vmul.f32 %v2174, %v2419
        %v2495 = vmul.f32 %v2175, %v2421
        %v2496 = vmul.f32 %v2176, %v2423
        %v2497 = vmul.f32 %v2177, %v2425
        %v2498 = vmul.f32 %v2178, %v2427
        %v2499 = vmul.f32 %v2179, %v2429
        %v2500 = vmul.f32 %v2180, %v2431
        %v2501 = vmul.f32 %v2181, %v2433
        %v2502 = vmul.f32 %v2182, %v2435
        %v2503 = vmul.f32 %v2183, %v2437
        %v2504 = vmul.f32 %v2184, %v2439
        %v2505 = vmul.f32 %v2185, %v2441
        %v2506 = vsub.f32 1.0, %v2442
        %v2507 = vsub.f32 1.0, %v2443
        %v2508 = vsub.f32 1.0, %v2444
        %v2509 = vsub.f32 1.0, %v2445
        %v2510 = vsub.f32 1.0, %v2446
        %v2511 = vsub.f32 1.0, %v2447
        %v2512 = vsub.f32 1.0, %v2448
        %v2513 = vsub.f32 1.0, %v2449
        %v2514 = vsub.f32 1.0, %v2450
        %v2515 = vsub.f32 1.0, %v2451
        %v2516 = vsub.f32 1.0, %v2452
        %v2517 = vsub.f32 1.0, %v2453
        %v2518 = vsub.f32 1.0, %v2454
        %v2519 = vsub.f32 1.0, %v2455
        %v2520 = vsub.f32 1.0, %v2456
        %v2521 = vsub.f32 1.0, %v2457
        %v2522 = vsub.f32 1.0, %v2458
        %v2523 = vsub.f32 1.0, %v2459
        %v2524 = vsub.f32 1.0, %v2460
        %v2525 = vsub.f32 1.0, %v2461
        %v2526 = vsub.f32 1.0, %v2462
        %v2527 = vsub.f32 1.0, %v2463
        %v2528 = vsub.f32 1.0, %v2464
        %v2529 = vsub.f32 1.0, %v2465
        %v2530 = vsub.f32 1.0, %v2466
        %v2531 = vsub.f32 1.0, %v2467
        %v2532 = vsub.f32 1.0, %v2468
        %v2533 = vsub.f32 1.0, %v2469
        %v2534 = vsub.f32 1.0, %v2470
        %v2535 = vsub.f32 1.0, %v2471
        %v2536 = vsub.f32 1.0, %v2472
        %v2537 = vsub.f32 1.0, %v2473
        %v2538 = vsub.f32 1.0, %v2474
        %v2539 = vsub.f32 1.0, %v2475
        %v2540 = vsub.f32 1.0, %v2476
        %v2541 = vsub.f32 1.0, %v2477
        %v2542 = vsub.f32 1.0, %v2478
        %v2543 = vsub.f32 1.0, %v2479
        %v2544 = vsub.f32 1.0, %v2480
        %v2545 = vsub.f32 1.0, %v2481
        %v2546 = vsub.f32 1.0, %v2482
        %v2547 = vsub.f32 1.0, %v2483
        %v2548 = vsub.f32 1.0, %v2484
        %v2549 = vsub.f32 1.0, %v2485
        %v2550 = vsub.f32 1.0, %v2486
        %v2551 = vsub.f32 1.0, %v2487
        %v2552 = vsub.f32 1.0, %v2488
        %v2553 = vsub.f32 1.0, %v2489
        %v2554 = vsub.f32 1.0, %v2490
        %v2555 = vsub.f32 1.0, %v2491
        %v2556 = vsub.f32 1.0, %v2492
        %v2557 = vsub.f32 1.0, %v2493
        %v2558 = vsub.f32 1.0, %v2494
        %v2559 = vsub.f32 1.0, %v2495
        %v2560 = vsub.f32 1.0, %v2496
        %v2561 = vsub.f32 1.0, %v2497
        %v2562 = vsub.f32 1.0, %v2498
        %v2563 = vsub.f32 1.0, %v2499
        %v2564 = vsub.f32 1.0, %v2500
        %v2565 = vsub.f32 1.0, %v2501
        %v2566 = vsub.f32 1.0, %v2502
        %v2567 = vsub.f32 1.0, %v2503
        %v2568 = vsub.f32 1.0, %v2504
        %v2569 = vsub.f32 1.0, %v2505
        %vm2570 = vcmp.ge.f32.partialorder %v1290, 0.0
        %vm2571 = vcmp.ge.f32.partialorder %v1291, 0.0
        %vm2572 = vcmp.ge.f32.partialorder %v1292, 0.0
        %vm2573 = vcmp.ge.f32.partialorder %v1293, 0.0
        %vm2574 = vcmp.ge.f32.partialorder %v1294, 0.0
        %vm2575 = vcmp.ge.f32.partialorder %v1295, 0.0
        %vm2576 = vcmp.ge.f32.partialorder %v1296, 0.0
        %vm2577 = vcmp.ge.f32.partialorder %v1297, 0.0
        %vm2578 = vcmp.ge.f32.partialorder %v1298, 0.0
        %vm2579 = vcmp.ge.f32.partialorder %v1299, 0.0
        %vm2580 = vcmp.ge.f32.partialorder %v1300, 0.0
        %vm2581 = vcmp.ge.f32.partialorder %v1301, 0.0
        %vm2582 = vcmp.ge.f32.partialorder %v1302, 0.0
        %vm2583 = vcmp.ge.f32.partialorder %v1303, 0.0
        %vm2584 = vcmp.ge.f32.partialorder %v1304, 0.0
        %vm2585 = vcmp.ge.f32.partialorder %v1305, 0.0
        %vm2586 = vcmp.ge.f32.partialorder %v1306, 0.0
        %vm2587 = vcmp.ge.f32.partialorder %v1307, 0.0
        %vm2588 = vcmp.ge.f32.partialorder %v1308, 0.0
        %vm2589 = vcmp.ge.f32.partialorder %v1309, 0.0
        %vm2590 = vcmp.ge.f32.partialorder %v1310, 0.0
        %vm2591 = vcmp.ge.f32.partialorder %v1311, 0.0
        %vm2592 = vcmp.ge.f32.partialorder %v1312, 0.0
        %vm2593 = vcmp.ge.f32.partialorder %v1313, 0.0
        %vm2594 = vcmp.ge.f32.partialorder %v1314, 0.0
        %vm2595 = vcmp.ge.f32.partialorder %v1315, 0.0
        %vm2596 = vcmp.ge.f32.partialorder %v1316, 0.0
        %vm2597 = vcmp.ge.f32.partialorder %v1317, 0.0
        %vm2598 = vcmp.ge.f32.partialorder %v1318, 0.0
        %vm2599 = vcmp.ge.f32.partialorder %v1319, 0.0
        %vm2600 = vcmp.ge.f32.partialorder %v1320, 0.0
        %vm2601 = vcmp.ge.f32.partialorder %v1321, 0.0
        %vm2602 = vcmp.ge.f32.partialorder %v1322, 0.0
        %vm2603 = vcmp.ge.f32.partialorder %v1323, 0.0
        %vm2604 = vcmp.ge.f32.partialorder %v1324, 0.0
        %vm2605 = vcmp.ge.f32.partialorder %v1325, 0.0
        %vm2606 = vcmp.ge.f32.partialorder %v1326, 0.0
        %vm2607 = vcmp.ge.f32.partialorder %v1327, 0.0
        %vm2608 = vcmp.ge.f32.partialorder %v1328, 0.0
        %vm2609 = vcmp.ge.f32.partialorder %v1329, 0.0
        %vm2610 = vcmp.ge.f32.partialorder %v1330, 0.0
        %vm2611 = vcmp.ge.f32.partialorder %v1331, 0.0
        %vm2612 = vcmp.ge.f32.partialorder %v1332, 0.0
        %vm2613 = vcmp.ge.f32.partialorder %v1333, 0.0
        %vm2614 = vcmp.ge.f32.partialorder %v1334, 0.0
        %vm2615 = vcmp.ge.f32.partialorder %v1335, 0.0
        %vm2616 = vcmp.ge.f32.partialorder %v1336, 0.0
        %vm2617 = vcmp.ge.f32.partialorder %v1337, 0.0
        %vm2618 = vcmp.ge.f32.partialorder %v1338, 0.0
        %vm2619 = vcmp.ge.f32.partialorder %v1339, 0.0
        %vm2620 = vcmp.ge.f32.partialorder %v1340, 0.0
        %vm2621 = vcmp.ge.f32.partialorder %v1341, 0.0
        %vm2622 = vcmp.ge.f32.partialorder %v1342, 0.0
        %vm2623 = vcmp.ge.f32.partialorder %v1343, 0.0
        %vm2624 = vcmp.ge.f32.partialorder %v1344, 0.0
        %vm2625 = vcmp.ge.f32.partialorder %v1345, 0.0
        %vm2626 = vcmp.ge.f32.partialorder %v1346, 0.0
        %vm2627 = vcmp.ge.f32.partialorder %v1347, 0.0
        %vm2628 = vcmp.ge.f32.partialorder %v1348, 0.0
        %vm2629 = vcmp.ge.f32.partialorder %v1349, 0.0
        %vm2630 = vcmp.ge.f32.partialorder %v1350, 0.0
        %vm2631 = vcmp.ge.f32.partialorder %v1351, 0.0
        %vm2632 = vcmp.ge.f32.partialorder %v1352, 0.0
        %vm2633 = vcmp.ge.f32.partialorder %v1353, 0.0
        %v2634 = vsub.f32 0.0, %v2506
        %v2635 = vsub.f32 0.0, %v2507
        %v2636 = vsub.f32 0.0, %v2508
        %v2637 = vsub.f32 0.0, %v2509
        %v2638 = vsub.f32 0.0, %v2510
        %v2639 = vsub.f32 0.0, %v2511
        %v2640 = vsub.f32 0.0, %v2512
        %v2641 = vsub.f32 0.0, %v2513
        %v2642 = vsub.f32 0.0, %v2514
        %v2643 = vsub.f32 0.0, %v2515
        %v2644 = vsub.f32 0.0, %v2516
        %v2645 = vsub.f32 0.0, %v2517
        %v2646 = vsub.f32 0.0, %v2518
        %v2647 = vsub.f32 0.0, %v2519
        %v2648 = vsub.f32 0.0, %v2520
        %v2649 = vsub.f32 0.0, %v2521
        %v2650 = vsub.f32 0.0, %v2522
        %v2651 = vsub.f32 0.0, %v2523
        %v2652 = vsub.f32 0.0, %v2524
        %v2653 = vsub.f32 0.0, %v2525
        %v2654 = vsub.f32 0.0, %v2526
        %v2655 = vsub.f32 0.0, %v2527
        %v2656 = vsub.f32 0.0, %v2528
        %v2657 = vsub.f32 0.0, %v2529
        %v2658 = vsub.f32 0.0, %v2530
        %v2659 = vsub.f32 0.0, %v2531
        %v2660 = vsub.f32 0.0, %v2532
        %v2661 = vsub.f32 0.0, %v2533
        %v2662 = vsub.f32 0.0, %v2534
        %v2663 = vsub.f32 0.0, %v2535
        %v2664 = vsub.f32 0.0, %v2536
        %v2665 = vsub.f32 0.0, %v2537
        %v2666 = vsub.f32 0.0, %v2538
        %v2667 = vsub.f32 0.0, %v2539
        %v2668 = vsub.f32 0.0, %v2540
        %v2669 = vsub.f32 0.0, %v2541
        %v2670 = vsub.f32 0.0, %v2542
        %v2671 = vsub.f32 0.0, %v2543
        %v2672 = vsub.f32 0.0, %v2544
        %v2673 = vsub.f32 0.0, %v2545
        %v2674 = vsub.f32 0.0, %v2546
        %v2675 = vsub.f32 0.0, %v2547
        %v2676 = vsub.f32 0.0, %v2548
        %v2677 = vsub.f32 0.0, %v2549
        %v2678 = vsub.f32 0.0, %v2550
        %v2679 = vsub.f32 0.0, %v2551
        %v2680 = vsub.f32 0.0, %v2552
        %v2681 = vsub.f32 0.0, %v2553
        %v2682 = vsub.f32 0.0, %v2554
        %v2683 = vsub.f32 0.0, %v2555
        %v2684 = vsub.f32 0.0, %v2556
        %v2685 = vsub.f32 0.0, %v2557
        %v2686 = vsub.f32 0.0, %v2558
        %v2687 = vsub.f32 0.0, %v2559
        %v2688 = vsub.f32 0.0, %v2560
        %v2689 = vsub.f32 0.0, %v2561
        %v2690 = vsub.f32 0.0, %v2562
        %v2691 = vsub.f32 0.0, %v2563
        %v2692 = vsub.f32 0.0, %v2564
        %v2693 = vsub.f32 0.0, %v2565
        %v2694 = vsub.f32 0.0, %v2566
        %v2695 = vsub.f32 0.0, %v2567
        %v2696 = vsub.f32 0.0, %v2568
        %v2697 = vsub.f32 0.0, %v2569
        %v2698 = vsel %vm2570, %v2506, %v2634
        %v2699 = vsel %vm2571, %v2507, %v2635
        %v2700 = vsel %vm2572, %v2508, %v2636
        %v2701 = vsel %vm2573, %v2509, %v2637
        %v2702 = vsel %vm2574, %v2510, %v2638
        %v2703 = vsel %vm2575, %v2511, %v2639
        %v2704 = vsel %vm2576, %v2512, %v2640
        %v2705 = vsel %vm2577, %v2513, %v2641
        %v2706 = vsel %vm2578, %v2514, %v2642
        %v2707 = vsel %vm2579, %v2515, %v2643
        %v2708 = vsel %vm2580, %v2516, %v2644
        %v2709 = vsel %vm2581, %v2517, %v2645
        %v2710 = vsel %vm2582, %v2518, %v2646
        %v2711 = vsel %vm2583, %v2519, %v2647
        %v2712 = vsel %vm2584, %v2520, %v2648
        %v2713 = vsel %vm2585, %v2521, %v2649
        %v2714 = vsel %vm2586, %v2522, %v2650
        %v2715 = vsel %vm2587, %v2523, %v2651
        %v2716 = vsel %vm2588, %v2524, %v2652
        %v2717 = vsel %vm2589, %v2525, %v2653
        %v2718 = vsel %vm2590, %v2526, %v2654
        %v2719 = vsel %vm2591, %v2527, %v2655
        %v2720 = vsel %vm2592, %v2528, %v2656
        %v2721 = vsel %vm2593, %v2529, %v2657
        %v2722 = vsel %vm2594, %v2530, %v2658
        %v2723 = vsel %vm2595, %v2531, %v2659
        %v2724 = vsel %vm2596, %v2532, %v2660
        %v2725 = vsel %vm2597, %v2533, %v2661
        %v2726 = vsel %vm2598, %v2534, %v2662
        %v2727 = vsel %vm2599, %v2535, %v2663
        %v2728 = vsel %vm2600, %v2536, %v2664
        %v2729 = vsel %vm2601, %v2537, %v2665
        %v2730 = vsel %vm2602, %v2538, %v2666
        %v2731 = vsel %vm2603, %v2539, %v2667
        %v2732 = vsel %vm2604, %v2540, %v2668
        %v2733 = vsel %vm2605, %v2541, %v2669
        %v2734 = vsel %vm2606, %v2542, %v2670
        %v2735 = vsel %vm2607, %v2543, %v2671
        %v2736 = vsel %vm2608, %v2544, %v2672
        %v2737 = vsel %vm2609, %v2545, %v2673
        %v2738 = vsel %vm2610, %v2546, %v2674
        %v2739 = vsel %vm2611, %v2547, %v2675
        %v2740 = vsel %vm2612, %v2548, %v2676
        %v2741 = vsel %vm2613, %v2549, %v2677
        %v2742 = vsel %vm2614, %v2550, %v2678
        %v2743 = vsel %vm2615, %v2551, %v2679
        %v2744 = vsel %vm2616, %v2552, %v2680
        %v2745 = vsel %vm2617, %v2553, %v2681
        %v2746 = vsel %vm2618, %v2554, %v2682
        %v2747 = vsel %vm2619, %v2555, %v2683
        %v2748 = vsel %vm2620, %v2556, %v2684
        %v2749 = vsel %vm2621, %v2557, %v2685
        %v2750 = vsel %vm2622, %v2558, %v2686
        %v2751 = vsel %vm2623, %v2559, %v2687
        %v2752 = vsel %vm2624, %v2560, %v2688
        %v2753 = vsel %vm2625, %v2561, %v2689
        %v2754 = vsel %vm2626, %v2562, %v2690
        %v2755 = vsel %vm2627, %v2563, %v2691
        %v2756 = vsel %vm2628, %v2564, %v2692
        %v2757 = vsel %vm2629, %v2565, %v2693
        %v2758 = vsel %vm2630, %v2566, %v2694
        %v2759 = vsel %vm2631, %v2567, %v2695
        %v2760 = vsel %vm2632, %v2568, %v2696
        %v2761 = vsel %vm2633, %v2569, %v2697
        %v2762 = vadd.f32 %v2698, 1.0
        %v2763 = vadd.f32 %v2699, 1.0
        %v2764 = vadd.f32 %v2700, 1.0
        %v2765 = vadd.f32 %v2701, 1.0
        %v2766 = vadd.f32 %v2702, 1.0
        %v2767 = vadd.f32 %v2703, 1.0
        %v2768 = vadd.f32 %v2704, 1.0
        %v2769 = vadd.f32 %v2705, 1.0
        %v2770 = vadd.f32 %v2706, 1.0
        %v2771 = vadd.f32 %v2707, 1.0
        %v2772 = vadd.f32 %v2708, 1.0
        %v2773 = vadd.f32 %v2709, 1.0
        %v2774 = vadd.f32 %v2710, 1.0
        %v2775 = vadd.f32 %v2711, 1.0
        %v2776 = vadd.f32 %v2712, 1.0
        %v2777 = vadd.f32 %v2713, 1.0
        %v2778 = vadd.f32 %v2714, 1.0
        %v2779 = vadd.f32 %v2715, 1.0
        %v2780 = vadd.f32 %v2716, 1.0
        %v2781 = vadd.f32 %v2717, 1.0
        %v2782 = vadd.f32 %v2718, 1.0
        %v2783 = vadd.f32 %v2719, 1.0
        %v2784 = vadd.f32 %v2720, 1.0
        %v2785 = vadd.f32 %v2721, 1.0
        %v2786 = vadd.f32 %v2722, 1.0
        %v2787 = vadd.f32 %v2723, 1.0
        %v2788 = vadd.f32 %v2724, 1.0
        %v2789 = vadd.f32 %v2725, 1.0
        %v2790 = vadd.f32 %v2726, 1.0
        %v2791 = vadd.f32 %v2727, 1.0
        %v2792 = vadd.f32 %v2728, 1.0
        %v2793 = vadd.f32 %v2729, 1.0
        %v2794 = vadd.f32 %v2730, 1.0
        %v2795 = vadd.f32 %v2731, 1.0
        %v2796 = vadd.f32 %v2732, 1.0
        %v2797 = vadd.f32 %v2733, 1.0
        %v2798 = vadd.f32 %v2734, 1.0
        %v2799 = vadd.f32 %v2735, 1.0
        %v2800 = vadd.f32 %v2736, 1.0
        %v2801 = vadd.f32 %v2737, 1.0
        %v2802 = vadd.f32 %v2738, 1.0
        %v2803 = vadd.f32 %v2739, 1.0
        %v2804 = vadd.f32 %v2740, 1.0
        %v2805 = vadd.f32 %v2741, 1.0
        %v2806 = vadd.f32 %v2742, 1.0
        %v2807 = vadd.f32 %v2743, 1.0
        %v2808 = vadd.f32 %v2744, 1.0
        %v2809 = vadd.f32 %v2745, 1.0
        %v2810 = vadd.f32 %v2746, 1.0
        %v2811 = vadd.f32 %v2747, 1.0
        %v2812 = vadd.f32 %v2748, 1.0
        %v2813 = vadd.f32 %v2749, 1.0
        %v2814 = vadd.f32 %v2750, 1.0
        %v2815 = vadd.f32 %v2751, 1.0
        %v2816 = vadd.f32 %v2752, 1.0
        %v2817 = vadd.f32 %v2753, 1.0
        %v2818 = vadd.f32 %v2754, 1.0
        %v2819 = vadd.f32 %v2755, 1.0
        %v2820 = vadd.f32 %v2756, 1.0
        %v2821 = vadd.f32 %v2757, 1.0
        %v2822 = vadd.f32 %v2758, 1.0
        %v2823 = vadd.f32 %v2759, 1.0
        %v2824 = vadd.f32 %v2760, 1.0
        %v2825 = vadd.f32 %v2761, 1.0
        %v2826 = vmul.f32 %v1226, %v2762
        %v2827 = vmul.f32 %v1227, %v2763
        %v2828 = vmul.f32 %v1228, %v2764
        %v2829 = vmul.f32 %v1229, %v2765
        %v2830 = vmul.f32 %v1230, %v2766
        %v2831 = vmul.f32 %v1231, %v2767
        %v2832 = vmul.f32 %v1232, %v2768
        %v2833 = vmul.f32 %v1233, %v2769
        %v2834 = vmul.f32 %v1234, %v2770
        %v2835 = vmul.f32 %v1235, %v2771
        %v2836 = vmul.f32 %v1236, %v2772
        %v2837 = vmul.f32 %v1237, %v2773
        %v2838 = vmul.f32 %v1238, %v2774
        %v2839 = vmul.f32 %v1239, %v2775
        %v2840 = vmul.f32 %v1240, %v2776
        %v2841 = vmul.f32 %v1241, %v2777
        %v2842 = vmul.f32 %v1242, %v2778
        %v2843 = vmul.f32 %v1243, %v2779
        %v2844 = vmul.f32 %v1244, %v2780
        %v2845 = vmul.f32 %v1245, %v2781
        %v2846 = vmul.f32 %v1246, %v2782
        %v2847 = vmul.f32 %v1247, %v2783
        %v2848 = vmul.f32 %v1248, %v2784
        %v2849 = vmul.f32 %v1249, %v2785
        %v2850 = vmul.f32 %v1250, %v2786
        %v2851 = vmul.f32 %v1251, %v2787
        %v2852 = vmul.f32 %v1252, %v2788
        %v2853 = vmul.f32 %v1253, %v2789
        %v2854 = vmul.f32 %v1254, %v2790
        %v2855 = vmul.f32 %v1255, %v2791
        %v2856 = vmul.f32 %v1256, %v2792
        %v2857 = vmul.f32 %v1257, %v2793
        %v2858 = vmul.f32 %v1258, %v2794
        %v2859 = vmul.f32 %v1259, %v2795
        %v2860 = vmul.f32 %v1260, %v2796
        %v2861 = vmul.f32 %v1261, %v2797
        %v2862 = vmul.f32 %v1262, %v2798
        %v2863 = vmul.f32 %v1263, %v2799
        %v2864 = vmul.f32 %v1264, %v2800
        %v2865 = vmul.f32 %v1265, %v2801
        %v2866 = vmul.f32 %v1266, %v2802
        %v2867 = vmul.f32 %v1267, %v2803
        %v2868 = vmul.f32 %v1268, %v2804
        %v2869 = vmul.f32 %v1269, %v2805
        %v2870 = vmul.f32 %v1270, %v2806
        %v2871 = vmul.f32 %v1271, %v2807
        %v2872 = vmul.f32 %v1272, %v2808
        %v2873 = vmul.f32 %v1273, %v2809
        %v2874 = vmul.f32 %v1274, %v2810
        %v2875 = vmul.f32 %v1275, %v2811
        %v2876 = vmul.f32 %v1276, %v2812
        %v2877 = vmul.f32 %v1277, %v2813
        %v2878 = vmul.f32 %v1278, %v2814
        %v2879 = vmul.f32 %v1279, %v2815
        %v2880 = vmul.f32 %v1280, %v2816
        %v2881 = vmul.f32 %v1281, %v2817
        %v2882 = vmul.f32 %v1282, %v2818
        %v2883 = vmul.f32 %v1283, %v2819
        %v2884 = vmul.f32 %v1284, %v2820
        %v2885 = vmul.f32 %v1285, %v2821
        %v2886 = vmul.f32 %v1286, %v2822
        %v2887 = vmul.f32 %v1287, %v2823
        %v2888 = vmul.f32 %v1288, %v2824
        %v2889 = vmul.f32 %v1289, %v2825
        %v2890 = vld [vmem:[#allocation3] sm:$0xff]
        %v2891 = vld [vmem:[#allocation3 + $0x8] sm:$0xff]
        %v2892 = vld [vmem:[#allocation3 + $0x10] sm:$0xff]
        %v2893 = vld [vmem:[#allocation3 + $0x18] sm:$0xff]
        %v2894 = vld [vmem:[#allocation3 + $0x20] sm:$0xff]
        %v2895 = vld [vmem:[#allocation3 + $0x28] sm:$0xff]
        %v2896 = vld [vmem:[#allocation3 + $0x30] sm:$0xff]
        %v2897 = vld [vmem:[#allocation3 + $0x38] sm:$0xff]
        %v2898 = vld [vmem:[#allocation3 + $0x40] sm:$0xff]
        %v2899 = vld [vmem:[#allocation3 + $0x48] sm:$0xff]
        %v2900 = vld [vmem:[#allocation3 + $0x50] sm:$0xff]
        %v2901 = vld [vmem:[#allocation3 + $0x58] sm:$0xff]
        %v2902 = vld [vmem:[#allocation3 + $0x60] sm:$0xff]
        %v2903 = vld [vmem:[#allocation3 + $0x68] sm:$0xff]
        %v2904 = vld [vmem:[#allocation3 + $0x70] sm:$0xff]
        %v2905 = vld [vmem:[#allocation3 + $0x78] sm:$0xff]
        %v2906 = vld [vmem:[#allocation3 + $0x80] sm:$0xff]
        %v2907 = vld [vmem:[#allocation3 + $0x88] sm:$0xff]
        %v2908 = vld [vmem:[#allocation3 + $0x90] sm:$0xff]
        %v2909 = vld [vmem:[#allocation3 + $0x98] sm:$0xff]
        %v2910 = vld [vmem:[#allocation3 + $0xa0] sm:$0xff]
        %v2911 = vld [vmem:[#allocation3 + $0xa8] sm:$0xff]
        %v2912 = vld [vmem:[#allocation3 + $0xb0] sm:$0xff]
        %v2913 = vld [vmem:[#allocation3 + $0xb8] sm:$0xff]
        %v2914 = vld [vmem:[#allocation3 + $0xc0] sm:$0xff]
        %v2915 = vld [vmem:[#allocation3 + $0xc8] sm:$0xff]
        %v2916 = vld [vmem:[#allocation3 + $0xd0] sm:$0xff]
        %v2917 = vld [vmem:[#allocation3 + $0xd8] sm:$0xff]
        %v2918 = vld [vmem:[#allocation3 + $0xe0] sm:$0xff]
        %v2919 = vld [vmem:[#allocation3 + $0xe8] sm:$0xff]
        %v2920 = vld [vmem:[#allocation3 + $0xf0] sm:$0xff]
        %v2921 = vld [vmem:[#allocation3 + $0xf8] sm:$0xff]
        %v2922 = vpack.c.bf16 %v2828, %v2826
        %v2923 = vpack.c.bf16 %v2829, %v2827
        %v2924 = vpack.c.bf16 %v2832, %v2830
        %v2925 = vpack.c.bf16 %v2833, %v2831
        %v2926 = vpack.c.bf16 %v2836, %v2834
        %v2927 = vpack.c.bf16 %v2837, %v2835
        %v2928 = vpack.c.bf16 %v2840, %v2838
        %v2929 = vpack.c.bf16 %v2841, %v2839
        %v2930 = vpack.c.bf16 %v2844, %v2842
        %v2931 = vpack.c.bf16 %v2845, %v2843
        %v2932 = vpack.c.bf16 %v2848, %v2846
        %v2933 = vpack.c.bf16 %v2849, %v2847
        %v2934 = vpack.c.bf16 %v2852, %v2850
        %v2935 = vpack.c.bf16 %v2853, %v2851
        %v2936 = vpack.c.bf16 %v2856, %v2854
        %v2937 = vpack.c.bf16 %v2857, %v2855
        %v2938 = vpack.c.bf16 %v2860, %v2858
        %v2939 = vpack.c.bf16 %v2861, %v2859
        %v2940 = vpack.c.bf16 %v2864, %v2862
        %v2941 = vpack.c.bf16 %v2865, %v2863
        %v2942 = vpack.c.bf16 %v2868, %v2866
        %v2943 = vpack.c.bf16 %v2869, %v2867
        %v2944 = vpack.c.bf16 %v2872, %v2870
        %v2945 = vpack.c.bf16 %v2873, %v2871
        %v2946 = vpack.c.bf16 %v2876, %v2874
        %v2947 = vpack.c.bf16 %v2877, %v2875
        %v2948 = vpack.c.bf16 %v2880, %v2878
        %v2949 = vpack.c.bf16 %v2881, %v2879
        %v2950 = vpack.c.bf16 %v2884, %v2882
        %v2951 = vpack.c.bf16 %v2885, %v2883
        %v2952 = vpack.c.bf16 %v2888, %v2886
        %v2953 = vpack.c.bf16 %v2889, %v2887
        %v2954 = vld [vmem:[#allocation9] sm:$0xf]
        %v2955 = vld [vmem:[#allocation9 + $0x4] sm:$0xf]
        %v2956 = vld [vmem:[#allocation9 + $0x8] sm:$0xf]
        %v2957 = vld [vmem:[#allocation9 + $0xc] sm:$0xf]
        %v2958 = vld [vmem:[#allocation9 + $0x10] sm:$0xf]
        %v2959 = vld [vmem:[#allocation9 + $0x14] sm:$0xf]
        %v2960 = vld [vmem:[#allocation9 + $0x18] sm:$0xf]
        %v2961 = vld [vmem:[#allocation9 + $0x1c] sm:$0xf]
        %v2962 = vld [vmem:[#allocation9 + $0x20] sm:$0xf]
        %v2963 = vld [vmem:[#allocation9 + $0x24] sm:$0xf]
        %v2964 = vld [vmem:[#allocation9 + $0x28] sm:$0xf]
        %v2965 = vld [vmem:[#allocation9 + $0x2c] sm:$0xf]
        %v2966 = vld [vmem:[#allocation9 + $0x30] sm:$0xf]
        %v2967 = vld [vmem:[#allocation9 + $0x34] sm:$0xf]
        %v2968 = vld [vmem:[#allocation9 + $0x38] sm:$0xf]
        %v2969 = vld [vmem:[#allocation9 + $0x3c] sm:$0xf]
        %v2970 = vld [vmem:[#allocation9 + $0x40] sm:$0xf]
        %v2971 = vld [vmem:[#allocation9 + $0x44] sm:$0xf]
        %v2972 = vld [vmem:[#allocation9 + $0x48] sm:$0xf]
        %v2973 = vld [vmem:[#allocation9 + $0x4c] sm:$0xf]
        %v2974 = vld [vmem:[#allocation9 + $0x50] sm:$0xf]
        %v2975 = vld [vmem:[#allocation9 + $0x54] sm:$0xf]
        %v2976 = vld [vmem:[#allocation9 + $0x58] sm:$0xf]
        %v2977 = vld [vmem:[#allocation9 + $0x5c] sm:$0xf]
        %v2978 = vld [vmem:[#allocation9 + $0x60] sm:$0xf]
        %v2979 = vld [vmem:[#allocation9 + $0x64] sm:$0xf]
        %v2980 = vld [vmem:[#allocation9 + $0x68] sm:$0xf]
        %v2981 = vld [vmem:[#allocation9 + $0x6c] sm:$0xf]
        %v2982 = vld [vmem:[#allocation9 + $0x70] sm:$0xf]
        %v2983 = vld [vmem:[#allocation9 + $0x74] sm:$0xf]
        %v2984 = vld [vmem:[#allocation9 + $0x78] sm:$0xf]
        %v2985 = vld [vmem:[#allocation9 + $0x7c] sm:$0xf]
        %v3018 = vunpack.c.l.b16 %v2954
        %v3019 = vunpack.c.l.b16 %v2955
        %v3020 = vunpack.c.l.b16 %v2956
        %v3021 = vunpack.c.l.b16 %v2957
        %v3022 = vunpack.c.l.b16 %v2958
        %v3023 = vunpack.c.l.b16 %v2959
        %v3024 = vunpack.c.l.b16 %v2960
        %v3025 = vunpack.c.l.b16 %v2961
        %v3026 = vunpack.c.l.b16 %v2962
        %v3027 = vunpack.c.l.b16 %v2963
        %v3028 = vunpack.c.l.b16 %v2964
        %v3029 = vunpack.c.l.b16 %v2965
        %v3030 = vunpack.c.l.b16 %v2966
        %v3031 = vunpack.c.l.b16 %v2967
        %v3032 = vunpack.c.l.b16 %v2968
        %v3033 = vunpack.c.l.b16 %v2969
        %v3034 = vunpack.c.l.b16 %v2970
        %v3035 = vunpack.c.l.b16 %v2971
        %v3036 = vunpack.c.l.b16 %v2972
        %v3037 = vunpack.c.l.b16 %v2973
        %v3038 = vunpack.c.l.b16 %v2974
        %v3039 = vunpack.c.l.b16 %v2975
        %v3040 = vunpack.c.l.b16 %v2976
        %v3041 = vunpack.c.l.b16 %v2977
        %v3042 = vunpack.c.l.b16 %v2978
        %v3043 = vunpack.c.l.b16 %v2979
        %v3044 = vunpack.c.l.b16 %v2980
        %v3045 = vunpack.c.l.b16 %v2981
        %v3046 = vunpack.c.l.b16 %v2982
        %v3047 = vunpack.c.l.b16 %v2983
        %v3048 = vunpack.c.l.b16 %v2984
        %v3049 = vunpack.c.l.b16 %v2985
        %v3050 = vpack.c.b16 %v3019, %v3018
        %v3051 = vpack.c.b16 %v3021, %v3020
        %v3052 = vpack.c.b16 %v3023, %v3022
        %v3053 = vpack.c.b16 %v3025, %v3024
        %v3054 = vpack.c.b16 %v3027, %v3026
        %v3055 = vpack.c.b16 %v3029, %v3028
        %v3056 = vpack.c.b16 %v3031, %v3030
        %v3057 = vpack.c.b16 %v3033, %v3032
        %v3058 = vpack.c.b16 %v3035, %v3034
        %v3059 = vpack.c.b16 %v3037, %v3036
        %v3060 = vpack.c.b16 %v3039, %v3038
        %v3061 = vpack.c.b16 %v3041, %v3040
        %v3062 = vpack.c.b16 %v3043, %v3042
        %v3063 = vpack.c.b16 %v3045, %v3044
        %v3064 = vpack.c.b16 %v3047, %v3046
        %v3065 = vpack.c.b16 %v3049, %v3048
        %3082 = vmatprep.subr.bf16.mxu0 0
        %3083 = vmatpush1.bf16.msra.mxu0 %v3050
        %3084 = vmatprep.subr.bf16.mxu0 0
        %3085 = vmatpush1.bf16.msra.mxu0 %v3051
        %3086 = vmatprep.subr.bf16.mxu0 0
        %3087 = vmatpush1.bf16.msra.mxu0 %v3052
        %3088 = vmatprep.subr.bf16.mxu0 0
        %3089 = vmatpush1.bf16.msra.mxu0 %v3053
        %3090 = vmatprep.subr.bf16.mxu0 0
        %3091 = vmatpush1.bf16.msra.mxu0 %v3054
        %3092 = vmatprep.subr.bf16.mxu0 0
        %3093 = vmatpush1.bf16.msra.mxu0 %v3055
        %3094 = vmatprep.subr.bf16.mxu0 0
        %3095 = vmatpush1.bf16.msra.mxu0 %v3056
        %3096 = vmatprep.subr.bf16.mxu0 0
        %3097 = vmatpush1.bf16.msra.mxu0 %v3057
        %3098 = vmatprep.subr.bf16.mxu0 0
        %3099 = vmatpush1.bf16.msra.mxu0 %v3058
        %3100 = vmatprep.subr.bf16.mxu0 0
        %3101 = vmatpush1.bf16.msra.mxu0 %v3059
        %3102 = vmatprep.subr.bf16.mxu0 0
        %3103 = vmatpush1.bf16.msra.mxu0 %v3060
        %3104 = vmatprep.subr.bf16.mxu0 0
        %3105 = vmatpush1.bf16.msra.mxu0 %v3061
        %3106 = vmatprep.subr.bf16.mxu0 0
        %3107 = vmatpush1.bf16.msra.mxu0 %v3062
        %3108 = vmatprep.subr.bf16.mxu0 0
        %3109 = vmatpush1.bf16.msra.mxu0 %v3063
        %3110 = vmatprep.subr.bf16.mxu0 0
        %3111 = vmatpush1.bf16.msra.mxu0 %v3064
        %3112 = vmatprep.subr.bf16.mxu0 0
        %3113 = vmatpush1.bf16.msra.mxu0 %v3065
        %3114 = vmatprep.mubr.bf16.mxu0 %v2923
        %3115 = vmatmul.mubr.bf16.gmra.mrb[0].mxu0 %v2922
        %v3116 = vpop.f32.mrb[0].mxu0
        %v3117 = vadd.f32 0.0, %v3116
        %v3118 = vpop.f32.mrb[0].mxu0
        %v3119 = vpop.f32.mrb[0].mxu0
        %v3120 = vadd.f32 0.0, %v3119
        %v3121 = vpop.f32.mrb[0].mxu0
        %3122 = vmatprep.mubr.bf16.mxu0 %v2925
        %3123 = vmatmul.mubr.bf16.gmra.mrb[0].mxu0 %v2924
        %v3124 = vpop.f32.mrb[0].mxu0
        %v3125 = vadd.f32 0.0, %v3124
        %v3126 = vpop.f32.mrb[0].mxu0
        %v3127 = vpop.f32.mrb[0].mxu0
        %v3128 = vadd.f32 0.0, %v3127
        %v3129 = vpop.f32.mrb[0].mxu0
        %3130 = vmatprep.mubr.bf16.mxu0 %v2927
        %3131 = vmatmul.mubr.bf16.gmra.mrb[0].mxu0 %v2926
        %v3132 = vpop.f32.mrb[0].mxu0
        %v3133 = vadd.f32 0.0, %v3132
        %v3134 = vpop.f32.mrb[0].mxu0
        %v3135 = vpop.f32.mrb[0].mxu0
        %v3136 = vadd.f32 0.0, %v3135
        %v3137 = vpop.f32.mrb[0].mxu0
        %3138 = vmatprep.mubr.bf16.mxu0 %v2929
        %3139 = vmatmul.mubr.bf16.gmra.mrb[0].mxu0 %v2928
        %v3140 = vpop.f32.mrb[0].mxu0
        %v3141 = vadd.f32 0.0, %v3140
        %v3142 = vpop.f32.mrb[0].mxu0
        %v3143 = vpop.f32.mrb[0].mxu0
        %v3144 = vadd.f32 0.0, %v3143
        %v3145 = vpop.f32.mrb[0].mxu0
        %3146 = vmatprep.mubr.bf16.mxu0 %v2931
        %3147 = vmatmul.mubr.bf16.gmra.mrb[0].mxu0 %v2930
        %v3148 = vpop.f32.mrb[0].mxu0
        %v3149 = vadd.f32 0.0, %v3148
        %v3150 = vpop.f32.mrb[0].mxu0
        %v3151 = vpop.f32.mrb[0].mxu0
        %v3152 = vadd.f32 0.0, %v3151
        %v3153 = vpop.f32.mrb[0].mxu0
        %3154 = vmatprep.mubr.bf16.mxu0 %v2933
        %3155 = vmatmul.mubr.bf16.gmra.mrb[0].mxu0 %v2932
        %v3156 = vpop.f32.mrb[0].mxu0
        %v3157 = vadd.f32 0.0, %v3156
        %v3158 = vpop.f32.mrb[0].mxu0
        %v3159 = vpop.f32.mrb[0].mxu0
        %v3160 = vadd.f32 0.0, %v3159
        %v3161 = vpop.f32.mrb[0].mxu0
        %3162 = vmatprep.mubr.bf16.mxu0 %v2935
        %3163 = vmatmul.mubr.bf16.gmra.mrb[0].mxu0 %v2934
        %v3164 = vpop.f32.mrb[0].mxu0
        %v3165 = vadd.f32 0.0, %v3164
        %v3166 = vpop.f32.mrb[0].mxu0
        %v3167 = vpop.f32.mrb[0].mxu0
        %v3168 = vadd.f32 0.0, %v3167
        %v3169 = vpop.f32.mrb[0].mxu0
        %3170 = vmatprep.mubr.bf16.mxu0 %v2937
        %3171 = vmatmul.mubr.bf16.gmra.mrb[0].mxu0 %v2936
        %v3172 = vpop.f32.mrb[0].mxu0
        %v3173 = vadd.f32 0.0, %v3172
        %v3174 = vpop.f32.mrb[0].mxu0
        %v3175 = vpop.f32.mrb[0].mxu0
        %v3176 = vadd.f32 0.0, %v3175
        %v3177 = vpop.f32.mrb[0].mxu0
        %3178 = vmatprep.mubr.bf16.mxu0 %v2939
        %3179 = vmatmul.mubr.bf16.gmra.mrb[0].mxu0 %v2938
        %v3180 = vpop.f32.mrb[0].mxu0
        %v3181 = vadd.f32 0.0, %v3180
        %v3182 = vpop.f32.mrb[0].mxu0
        %v3183 = vpop.f32.mrb[0].mxu0
        %v3184 = vadd.f32 0.0, %v3183
        %v3185 = vpop.f32.mrb[0].mxu0
        %3186 = vmatprep.mubr.bf16.mxu0 %v2941
        %3187 = vmatmul.mubr.bf16.gmra.mrb[0].mxu0 %v2940
        %v3188 = vpop.f32.mrb[0].mxu0
        %v3189 = vadd.f32 0.0, %v3188
        %v3190 = vpop.f32.mrb[0].mxu0
        %v3191 = vpop.f32.mrb[0].mxu0
        %v3192 = vadd.f32 0.0, %v3191
        %v3193 = vpop.f32.mrb[0].mxu0
        %3194 = vmatprep.mubr.bf16.mxu0 %v2943
        %3195 = vmatmul.mubr.bf16.gmra.mrb[0].mxu0 %v2942
        %v3196 = vpop.f32.mrb[0].mxu0
        %v3197 = vadd.f32 0.0, %v3196
        %v3198 = vpop.f32.mrb[0].mxu0
        %v3199 = vpop.f32.mrb[0].mxu0
        %v3200 = vadd.f32 0.0, %v3199
        %v3201 = vpop.f32.mrb[0].mxu0
        %3202 = vmatprep.mubr.bf16.mxu0 %v2945
        %3203 = vmatmul.mubr.bf16.gmra.mrb[0].mxu0 %v2944
        %v3204 = vpop.f32.mrb[0].mxu0
        %v3205 = vadd.f32 0.0, %v3204
        %v3206 = vpop.f32.mrb[0].mxu0
        %v3207 = vpop.f32.mrb[0].mxu0
        %v3208 = vadd.f32 0.0, %v3207
        %v3209 = vpop.f32.mrb[0].mxu0
        %3210 = vmatprep.mubr.bf16.mxu0 %v2947
        %3211 = vmatmul.mubr.bf16.gmra.mrb[0].mxu0 %v2946
        %v3212 = vpop.f32.mrb[0].mxu0
        %v3213 = vadd.f32 0.0, %v3212
        %v3214 = vpop.f32.mrb[0].mxu0
        %v3215 = vpop.f32.mrb[0].mxu0
        %v3216 = vadd.f32 0.0, %v3215
        %v3217 = vpop.f32.mrb[0].mxu0
        %3218 = vmatprep.mubr.bf16.mxu0 %v2949
        %3219 = vmatmul.mubr.bf16.gmra.mrb[0].mxu0 %v2948
        %v3220 = vpop.f32.mrb[0].mxu0
        %v3221 = vadd.f32 0.0, %v3220
        %v3222 = vpop.f32.mrb[0].mxu0
        %v3223 = vpop.f32.mrb[0].mxu0
        %v3224 = vadd.f32 0.0, %v3223
        %v3225 = vpop.f32.mrb[0].mxu0
        %3226 = vmatprep.mubr.bf16.mxu0 %v2951
        %3227 = vmatmul.mubr.bf16.gmra.mrb[0].mxu0 %v2950
        %v3228 = vpop.f32.mrb[0].mxu0
        %v3229 = vadd.f32 0.0, %v3228
        %v3230 = vpop.f32.mrb[0].mxu0
        %v3231 = vpop.f32.mrb[0].mxu0
        %v3232 = vadd.f32 0.0, %v3231
        %v3233 = vpop.f32.mrb[0].mxu0
        %3234 = vmatprep.mubr.bf16.mxu0 %v2953
        %3235 = vmatmul.mubr.bf16.gmra.mrb[0].mxu0 %v2952
        %v3236 = vpop.f32.mrb[0].mxu0
        %v3237 = vadd.f32 0.0, %v3236
        %v3238 = vpop.f32.mrb[0].mxu0
        %v3239 = vpop.f32.mrb[0].mxu0
        %v3240 = vadd.f32 0.0, %v3239
        %v3241 = vpop.f32.mrb[0].mxu0
        %3242 = vdwg.mxu0
        %v3243 = vadd.f32 %v2890, %v3117
        %v3244 = vadd.f32 %v2891, %v3120
        %v3245 = vadd.f32 %v2892, %v3125
        %v3246 = vadd.f32 %v2893, %v3128
        %v3247 = vadd.f32 %v2894, %v3133
        %v3248 = vadd.f32 %v2895, %v3136
        %v3249 = vadd.f32 %v2896, %v3141
        %v3250 = vadd.f32 %v2897, %v3144
        %v3251 = vadd.f32 %v2898, %v3149
        %v3252 = vadd.f32 %v2899, %v3152
        %v3253 = vadd.f32 %v2900, %v3157
        %v3254 = vadd.f32 %v2901, %v3160
        %v3255 = vadd.f32 %v2902, %v3165
        %v3256 = vadd.f32 %v2903, %v3168
        %v3257 = vadd.f32 %v2904, %v3173
        %v3258 = vadd.f32 %v2905, %v3176
        %v3259 = vadd.f32 %v2906, %v3181
        %v3260 = vadd.f32 %v2907, %v3184
        %v3261 = vadd.f32 %v2908, %v3189
        %v3262 = vadd.f32 %v2909, %v3192
        %v3263 = vadd.f32 %v2910, %v3197
        %v3264 = vadd.f32 %v2911, %v3200
        %v3265 = vadd.f32 %v2912, %v3205
        %v3266 = vadd.f32 %v2913, %v3208
        %v3267 = vadd.f32 %v2914, %v3213
        %v3268 = vadd.f32 %v2915, %v3216
        %v3269 = vadd.f32 %v2916, %v3221
        %v3270 = vadd.f32 %v2917, %v3224
        %v3271 = vadd.f32 %v2918, %v3229
        %v3272 = vadd.f32 %v2919, %v3232
        %v3273 = vadd.f32 %v2920, %v3237
        %v3274 = vadd.f32 %v2921, %v3240
        %3275 = vst [vmem:[#allocation3] sm:$0xff] %v3243
        %3276 = vst [vmem:[#allocation3 + $0x8] sm:$0xff] %v3244
        %3277 = vst [vmem:[#allocation3 + $0x10] sm:$0xff] %v3245
        %3278 = vst [vmem:[#allocation3 + $0x18] sm:$0xff] %v3246
        %3279 = vst [vmem:[#allocation3 + $0x20] sm:$0xff] %v3247
        %3280 = vst [vmem:[#allocation3 + $0x28] sm:$0xff] %v3248
        %3281 = vst [vmem:[#allocation3 + $0x30] sm:$0xff] %v3249
        %3282 = vst [vmem:[#allocation3 + $0x38] sm:$0xff] %v3250
        %3283 = vst [vmem:[#allocation3 + $0x40] sm:$0xff] %v3251
        %3284 = vst [vmem:[#allocation3 + $0x48] sm:$0xff] %v3252
        %3285 = vst [vmem:[#allocation3 + $0x50] sm:$0xff] %v3253
        %3286 = vst [vmem:[#allocation3 + $0x58] sm:$0xff] %v3254
        %3287 = vst [vmem:[#allocation3 + $0x60] sm:$0xff] %v3255
        %3288 = vst [vmem:[#allocation3 + $0x68] sm:$0xff] %v3256
        %3289 = vst [vmem:[#allocation3 + $0x70] sm:$0xff] %v3257
        %3290 = vst [vmem:[#allocation3 + $0x78] sm:$0xff] %v3258
        %3291 = vst [vmem:[#allocation3 + $0x80] sm:$0xff] %v3259
        %3292 = vst [vmem:[#allocation3 + $0x88] sm:$0xff] %v3260
        %3293 = vst [vmem:[#allocation3 + $0x90] sm:$0xff] %v3261
        %3294 = vst [vmem:[#allocation3 + $0x98] sm:$0xff] %v3262
        %3295 = vst [vmem:[#allocation3 + $0xa0] sm:$0xff] %v3263
        %3296 = vst [vmem:[#allocation3 + $0xa8] sm:$0xff] %v3264
        %3297 = vst [vmem:[#allocation3 + $0xb0] sm:$0xff] %v3265
        %3298 = vst [vmem:[#allocation3 + $0xb8] sm:$0xff] %v3266
        %3299 = vst [vmem:[#allocation3 + $0xc0] sm:$0xff] %v3267
        %3300 = vst [vmem:[#allocation3 + $0xc8] sm:$0xff] %v3268
        %3301 = vst [vmem:[#allocation3 + $0xd0] sm:$0xff] %v3269
        %3302 = vst [vmem:[#allocation3 + $0xd8] sm:$0xff] %v3270
        %3303 = vst [vmem:[#allocation3 + $0xe0] sm:$0xff] %v3271
        %3304 = vst [vmem:[#allocation3 + $0xe8] sm:$0xff] %v3272
        %3305 = vst [vmem:[#allocation3 + $0xf0] sm:$0xff] %v3273
        %3306 = vst [vmem:[#allocation3 + $0xf8] sm:$0xff] %v3274
        // Predicated region
        $region65: #{tpu_custom_call.1} parent=47 // pred_check
          %p3307 = pneg %p378
        $region66: #{tpu_custom_call.1} parent=47 // pred_check_branch
          %3309 = sbr.rel (%p3307) target = $region68
        $region67: #{tpu_custom_call.1} parent=47 // pred_region
          %v3310 = vld [vmem:[#allocation3] sm:$0xff]
          %v3311 = vld [vmem:[#allocation3 + $0x8] sm:$0xff]
          %v3312 = vld [vmem:[#allocation3 + $0x10] sm:$0xff]
          %v3313 = vld [vmem:[#allocation3 + $0x18] sm:$0xff]
          %v3314 = vld [vmem:[#allocation3 + $0x20] sm:$0xff]
          %v3315 = vld [vmem:[#allocation3 + $0x28] sm:$0xff]
          %v3316 = vld [vmem:[#allocation3 + $0x30] sm:$0xff]
          %v3317 = vld [vmem:[#allocation3 + $0x38] sm:$0xff]
          %v3318 = vld [vmem:[#allocation3 + $0x40] sm:$0xff]
          %v3319 = vld [vmem:[#allocation3 + $0x48] sm:$0xff]
          %v3320 = vld [vmem:[#allocation3 + $0x50] sm:$0xff]
          %v3321 = vld [vmem:[#allocation3 + $0x58] sm:$0xff]
          %v3322 = vld [vmem:[#allocation3 + $0x60] sm:$0xff]
          %v3323 = vld [vmem:[#allocation3 + $0x68] sm:$0xff]
          %v3324 = vld [vmem:[#allocation3 + $0x70] sm:$0xff]
          %v3325 = vld [vmem:[#allocation3 + $0x78] sm:$0xff]
          %v3326 = vld [vmem:[#allocation3 + $0x80] sm:$0xff]
          %v3327 = vld [vmem:[#allocation3 + $0x88] sm:$0xff]
          %v3328 = vld [vmem:[#allocation3 + $0x90] sm:$0xff]
          %v3329 = vld [vmem:[#allocation3 + $0x98] sm:$0xff]
          %v3330 = vld [vmem:[#allocation3 + $0xa0] sm:$0xff]
          %v3331 = vld [vmem:[#allocation3 + $0xa8] sm:$0xff]
          %v3332 = vld [vmem:[#allocation3 + $0xb0] sm:$0xff]
          %v3333 = vld [vmem:[#allocation3 + $0xb8] sm:$0xff]
          %v3334 = vld [vmem:[#allocation3 + $0xc0] sm:$0xff]
          %v3335 = vld [vmem:[#allocation3 + $0xc8] sm:$0xff]
          %v3336 = vld [vmem:[#allocation3 + $0xd0] sm:$0xff]
          %v3337 = vld [vmem:[#allocation3 + $0xd8] sm:$0xff]
          %v3338 = vld [vmem:[#allocation3 + $0xe0] sm:$0xff]
          %v3339 = vld [vmem:[#allocation3 + $0xe8] sm:$0xff]
          %v3340 = vld [vmem:[#allocation3 + $0xf0] sm:$0xff]
          %v3341 = vld [vmem:[#allocation3 + $0xf8] sm:$0xff]
          %v3342 = vld [vmem:[%s6] sm:$0x1]
          %v3344 = vlaneseq
          %v3345 = vshrl.u32 %v3344, 7
          %v3346 = vsub.s32 0, %v3345
          %v3347 = vrot.slane %v3342, %v3346
          %v3349 = vadd.f32 %v3310, %v3347
          %v3350 = vadd.f32 %v3311, %v3347
          %v3351 = vadd.f32 %v3312, %v3347
          %v3352 = vadd.f32 %v3313, %v3347
          %v3353 = vadd.f32 %v3314, %v3347
          %v3354 = vadd.f32 %v3315, %v3347
          %v3355 = vadd.f32 %v3316, %v3347
          %v3356 = vadd.f32 %v3317, %v3347
          %v3357 = vadd.f32 %v3318, %v3347
          %v3358 = vadd.f32 %v3319, %v3347
          %v3359 = vadd.f32 %v3320, %v3347
          %v3360 = vadd.f32 %v3321, %v3347
          %v3361 = vadd.f32 %v3322, %v3347
          %v3362 = vadd.f32 %v3323, %v3347
          %v3363 = vadd.f32 %v3324, %v3347
          %v3364 = vadd.f32 %v3325, %v3347
          %v3365 = vadd.f32 %v3326, %v3347
          %v3366 = vadd.f32 %v3327, %v3347
          %v3367 = vadd.f32 %v3328, %v3347
          %v3368 = vadd.f32 %v3329, %v3347
          %v3369 = vadd.f32 %v3330, %v3347
          %v3370 = vadd.f32 %v3331, %v3347
          %v3371 = vadd.f32 %v3332, %v3347
          %v3372 = vadd.f32 %v3333, %v3347
          %v3373 = vadd.f32 %v3334, %v3347
          %v3374 = vadd.f32 %v3335, %v3347
          %v3375 = vadd.f32 %v3336, %v3347
          %v3376 = vadd.f32 %v3337, %v3347
          %v3377 = vadd.f32 %v3338, %v3347
          %v3378 = vadd.f32 %v3339, %v3347
          %v3379 = vadd.f32 %v3340, %v3347
          %v3380 = vadd.f32 %v3341, %v3347
          %3381 = vst [vmem:[%s367] sm:$0xff] %v3349
          %3382 = vst [vmem:[%s367 + $0x8] sm:$0xff] %v3350
          %3383 = vst [vmem:[%s367 + $0x10] sm:$0xff] %v3351
          %3384 = vst [vmem:[%s367 + $0x18] sm:$0xff] %v3352
          %3385 = vst [vmem:[%s367 + $0x20] sm:$0xff] %v3353
          %3386 = vst [vmem:[%s367 + $0x28] sm:$0xff] %v3354
          %3387 = vst [vmem:[%s367 + $0x30] sm:$0xff] %v3355
          %3388 = vst [vmem:[%s367 + $0x38] sm:$0xff] %v3356
          %3389 = vst [vmem:[%s367 + $0x40] sm:$0xff] %v3357
          %3390 = vst [vmem:[%s367 + $0x48] sm:$0xff] %v3358
          %3391 = vst [vmem:[%s367 + $0x50] sm:$0xff] %v3359
          %3392 = vst [vmem:[%s367 + $0x58] sm:$0xff] %v3360
          %3393 = vst [vmem:[%s367 + $0x60] sm:$0xff] %v3361
          %3394 = vst [vmem:[%s367 + $0x68] sm:$0xff] %v3362
          %3395 = vst [vmem:[%s367 + $0x70] sm:$0xff] %v3363
          %3396 = vst [vmem:[%s367 + $0x78] sm:$0xff] %v3364
          %3397 = vst [vmem:[%s367 + $0x80] sm:$0xff] %v3365
          %3398 = vst [vmem:[%s367 + $0x88] sm:$0xff] %v3366
          %3399 = vst [vmem:[%s367 + $0x90] sm:$0xff] %v3367
          %3400 = vst [vmem:[%s367 + $0x98] sm:$0xff] %v3368
          %3401 = vst [vmem:[%s367 + $0xa0] sm:$0xff] %v3369
          %3402 = vst [vmem:[%s367 + $0xa8] sm:$0xff] %v3370
          %3403 = vst [vmem:[%s367 + $0xb0] sm:$0xff] %v3371
          %3404 = vst [vmem:[%s367 + $0xb8] sm:$0xff] %v3372
          %3405 = vst [vmem:[%s367 + $0xc0] sm:$0xff] %v3373
          %3406 = vst [vmem:[%s367 + $0xc8] sm:$0xff] %v3374
          %3407 = vst [vmem:[%s367 + $0xd0] sm:$0xff] %v3375
          %3408 = vst [vmem:[%s367 + $0xd8] sm:$0xff] %v3376
          %3409 = vst [vmem:[%s367 + $0xe0] sm:$0xff] %v3377
          %3410 = vst [vmem:[%s367 + $0xe8] sm:$0xff] %v3378
          %3411 = vst [vmem:[%s367 + $0xf0] sm:$0xff] %v3379
          %3412 = vst [vmem:[%s367 + $0xf8] sm:$0xff] %v3380
        $region68: #{tpu_custom_call.1} parent=47 // pred_fallthru
          _
        %s3413 = sand.u32 %s212, 1
        %s3414 = scalar_lea.sflag [#allocation6], %s3413
        %s3415 = sand.u32 %s212, 1
        %s3416 = smul.addr %s3415, 256
        %s3417 = scalar_lea.vmem [#allocation10], %s3416
        // Predicated region
        $region69: #{tpu_custom_call.1} parent=47 // pred_check
          %p3418 = pneg %p222
        $region70: #{tpu_custom_call.1} parent=47 // pred_check_branch
          %3420 = sbr.rel (%p3418) target = $region72
        $region71: #{tpu_custom_call.1} parent=47 // pred_region
          %s3421 = smul.u32 32, %s29
          %s3423 = ssub.s32 4096, 4096
          %3424 = vsyncadd %s3414, %s3423
          %s3425 = smul.addr %s3421, 128
          %s3426 = scalar_lea.hbm %s7, %s3425
          %s3427 = sshll.u32 %s3417, 4
          %s3428 = int_to_ptr.vmem [resolvable:$true] %s3427
          %3433 = dma.vmem_to_hbm [thread:$0]  %s3428, 4096, %s3426, %s3414, 128, 128, 8
        $region72: #{tpu_custom_call.1} parent=47 // pred_fallthru
          _
      $region48: #{tpu_custom_call.1} parent=5 // pred_fallthru
        _
      %p3434 = scmp.le.s32.totalorder 2, %s20
      // Predicated region
      $region73: #{tpu_custom_call.1} parent=5 // pred_check
        %p3435 = pneg %p3434
      $region74: #{tpu_custom_call.1} parent=5 // pred_check_branch
        %3437 = sbr.rel (%p3435) target = $region76
      $region75: #{tpu_custom_call.1} parent=5 // pred_region
        %s3438 = ssub.s32 %s20, 2
        // Predicated region
        $region77: #{tpu_custom_call.1} parent=75 // pred_check
          %p3439 = pneg %p228
        $region78: #{tpu_custom_call.1} parent=75 // pred_check_branch
          %3441 = sbr.rel (%p3439) target = $region80
        $region79: #{tpu_custom_call.1} parent=75 // pred_region
          %s3442 = sand.u32 %s213, 1
          %s3443 = scalar_lea.sflag [#allocation6], %s3442
          %s3444 = sand.u32 %s213, 1
          %s3445 = smul.addr %s3444, 256
          %s3446 = scalar_lea.vmem [#allocation10], %s3445
          %3447 = dma.done %s3443, 4096
        $region80: #{tpu_custom_call.1} parent=75 // pred_fallthru
          _
      $region76: #{tpu_custom_call.1} parent=5 // pred_fallthru
        _
    $region6: #{tpu_custom_call.1} parent=1 // loop_footer
      %s24 = sadd.s32 1, %s20
    $region7: #{tpu_custom_call.1} parent=1 // loop_footer_branch
      %19 = sbr.rel target = $region3
    $region8: #{tpu_custom_call.1} parent=1 // loop_exit
      _
    %3448 = vsyncpa [#allocation5], 1
    %s3449 = scalar_lea.sflag [#allocation5], 1
    %3450 = vsyncpa %s3449, 1
    %3451 = vsyncpa [#allocation8], 1
    %3452 = vsyncpa [#allocation6], 1
    %s3453 = scalar_lea.sflag [#allocation6], 1
    %3454 = vsyncpa %s3453, 1

</llo_original>
